<compile_context>
chip_gen: v5e
topology: v5e:2x2
jax: 0.10.0
libtpu: 0.0.40
codegen_flags: <defaults>
</compile_context>

<pallas_src>
import functools

import jax
import jax.numpy as jnp
from jax.experimental import pallas as pl
from jax.experimental.pallas import tpu as pltpu


# ----------------------------- Pallas kernel -------------------------------

def _par_fused_kernel(xcat_ref, wcat_ref, bcat_ref, pbr_ref, bias_ref, o_ref):
    """Fused PAR block for one (HW, :) row-tile (one batch element).

    xcat_ref : (HW, Kpad)    bf16  [x | im2col(rate_i)...] rows, zero padded
    wcat_ref : (Kpad, Bn*N)  bf16  block-diagonal conv weights (BN folded)
    bcat_ref : (1, Bn*N)     f32   concatenated per-branch BN biases
    pbr_ref  : (Bn*N, N)     bf16  projection rows for the conv branches
    bias_ref : (1, 1, N)     f32   per-batch pool contribution + proj BN bias
    o_ref    : (HW, N)       f32   output rows
    """
    # All conv branches in one MXU pass, then per-branch bias + ReLU.
    y = jnp.dot(xcat_ref[...], wcat_ref[...],
                preferred_element_type=jnp.float32)
    y = jnp.maximum(y + bcat_ref[...], 0.0)

    # Concat-free projection: one (Bn*N, N) matmul over all branch outputs,
    # pooled-branch + projection bias folded in, final ReLU.
    acc = jnp.dot(y.astype(pbr_ref.dtype), pbr_ref[...],
                  preferred_element_type=jnp.float32)
    acc = acc + bias_ref[0]
    # Dropout(0.5) is identity at inference.
    o_ref[...] = jnp.maximum(acc, 0.0).astype(o_ref.dtype)


# ------------------------------- glue (JAX) --------------------------------

def im2col_dilated3x3(x_nhwc, dilation):
    """3x3 conv, padding=dilation (same spatial) -> (B*H*W, 9*C) columns."""
    B, H, W, C = x_nhwc.shape
    d = dilation
    xp = jnp.pad(x_nhwc, ((0, 0), (d, d), (d, d), (0, 0)))
    patches = [xp[:, ky * d:ky * d + H, kx * d:kx * d + W, :]
               for ky in range(3) for kx in range(3)]
    cols = jnp.concatenate(patches, axis=-1)          # (B, H, W, 9*C)
    return cols.reshape(B * H * W, 9 * C)


def init_params(key, in_channels, out_channels=256, rates=(2, 4, 8)):
    eps = 1e-5

    def bn_fold(c):
        gamma = jnp.ones((c,), jnp.float32)
        beta = jnp.zeros((c,), jnp.float32)
        mean = jnp.zeros((c,), jnp.float32)
        var = jnp.ones((c,), jnp.float32)
        scale = gamma / jnp.sqrt(var + eps)
        bias = beta - mean * scale
        return scale, bias

    R = len(rates)
    N = out_channels
    keys = jax.random.split(key, 3 + R)

    # branch 0: 1x1 conv (Cin -> N) as (Cin, Cout); fold BN scale.
    w0 = 0.05 * jax.random.normal(keys[0], (in_channels, N), jnp.float32)
    s0, b0 = bn_fold(N)
    # atrous branches: 3x3 dilated conv as (9*Cin, Cout), (ky,kx,cin) order.
    wa, ba = [], []
    for i in range(R):
        w = 0.05 * jax.random.normal(keys[1 + i], (9 * in_channels, N),
                                     jnp.float32)
        s, b = bn_fold(N)
        wa.append(w * s[None, :])
        ba.append(b)
    # pooling branch 1x1 conv.
    wp = 0.05 * jax.random.normal(keys[1 + R], (in_channels, N), jnp.float32)
    sp, bp = bn_fold(N)
    # projection 1x1 conv ((2+R)*N -> N); rows ordered [branch0, atrous..., pool].
    wproj = 0.05 * jax.random.normal(keys[2 + R], ((2 + R) * N, N),
                                     jnp.float32)
    sproj, bproj = bn_fold(N)
    wproj = wproj * sproj[None, :]

    return {
        "w0": w0 * s0[None, :], "b0": b0,
        "wa": jnp.stack(wa), "ba": jnp.stack(ba),
        "wp": wp * sp[None, :], "bp": bp,
        "wproj_br": wproj[: (1 + R) * N],     # branch0 + atrous projection rows
        "wproj_pool": wproj[(1 + R) * N:],    # pooling-branch projection rows
        "bproj": bproj,
    }


def par_forward(x_nchw, params, rates=(2, 4, 8), out_channels=256):
    B, Cin, H, W = x_nchw.shape
    HW = H * W
    N = out_channels
    R = len(rates)
    Bn = 1 + R                      # conv branches fused into the big matmul
    assert HW % 8 == 0 and N % 128 == 0

    x = jnp.transpose(x_nchw, (0, 2, 3, 1)).astype(jnp.float32)   # NHWC
    xf = x.reshape(B * HW, Cin)

    # Stack [x | im2col(rate_i)...] so all conv branches become ONE matmul;
    # pad the contraction dim to a lane-dense multiple of 128 (zeros).
    xcat = jnp.concatenate(
        [xf] + [im2col_dilated3x3(x, r) for r in rates], axis=-1)
    Kc = Cin + R * 9 * Cin
    Kpad = -(-Kc // 128) * 128
    xcat = jnp.pad(xcat, ((0, 0), (0, Kpad - Kc)))

    # Block-structured conv weight (Kpad, Bn*N): branch i's rows only hit its
    # N-wide output slice (BN scales already folded in).
    wcat = jnp.zeros((Kpad, Bn * N), jnp.float32)
    wcat = wcat.at[:Cin, :N].set(params["w0"])
    for i in range(R):
        r0 = Cin + i * 9 * Cin
        wcat = wcat.at[r0:r0 + 9 * Cin,
                       (i + 1) * N:(i + 2) * N].set(params["wa"][i])
    bcat = jnp.concatenate([params["b0"][None, :], params["ba"]],
                           axis=0).reshape(1, Bn * N)

    # Pooling branch (tiny): global avg pool -> 1x1 conv + BN + ReLU -> its
    # projection rows; bilinear upsample from 1x1 == broadcast, so fold it
    # together with the projection BN bias into one per-batch additive vector.
    pooled = jnp.mean(x, axis=(1, 2))                              # (B, Cin)
    ypool = jnp.maximum(pooled @ params["wp"] + params["bp"], 0.0)
    bias_final = (ypool @ params["wproj_pool"]
                  + params["bproj"]).reshape(B, 1, N).astype(jnp.float32)

    cdt = jnp.bfloat16
    out_flat = pl.pallas_call(
        _par_fused_kernel,
        out_shape=jax.ShapeDtypeStruct((B * HW, N), jnp.float32),
        grid_spec=pltpu.PrefetchScalarGridSpec(
            num_scalar_prefetch=0,
            grid=(B,),
            in_specs=[
                pl.BlockSpec((HW, Kpad), lambda b: (b, 0)),        # xcat
                pl.BlockSpec((Kpad, Bn * N), lambda b: (0, 0)),    # wcat
                pl.BlockSpec((1, Bn * N), lambda b: (0, 0)),       # bcat
                pl.BlockSpec((Bn * N, N), lambda b: (0, 0)),       # pbr
                pl.BlockSpec((1, 1, N), lambda b: (b, 0, 0)),      # bias
            ],
            out_specs=pl.BlockSpec((HW, N), lambda b: (b, 0)),
        ),
        compiler_params=pltpu.CompilerParams(
            dimension_semantics=("parallel",)),
    )(
        xcat.astype(cdt),
        wcat.astype(cdt),
        bcat.astype(jnp.float32),
        params["wproj_br"].astype(cdt),
        bias_final,
    )

    # TODO(synk): skipblock(out_channels, resolution, resolution) is undefined
    # in the reference source; applied as identity.
    out = out_flat.reshape(B, H, W, N)
    return jnp.transpose(out, (0, 3, 1, 2))                        # back to NCHW


# --------------------------------- main -------------------------------------

if __name__ == "__main__":
    key = jax.random.PRNGKey(0)
    kx, kp = jax.random.split(key)
    B, Cin, H, W = 2, 4, 16, 16       # resolution=16 matches the module default
    x = jax.random.normal(kx, (B, Cin, H, W), jnp.float32)
    params = init_params(kp, Cin)

    fwd = jax.jit(functools.partial(par_forward, params=params))
    out = fwd(x)
    jax.block_until_ready(out)
    assert out.shape == (B, 256, H, W), out.shape
    assert bool(jnp.all(jnp.isfinite(out)))
    print("KERNEL_OK")
</pallas_src>

<mosaic_0001>
module attributes {stable_mosaic.version = 11 : i64} {
  func.func @_par_fused_kernel(%arg0: i32, %arg1: memref<256x128xbf16, #tpu.memory_space<vmem>>, %arg2: memref<128x1024xbf16, #tpu.memory_space<vmem>>, %arg3: memref<1x1024xf32, #tpu.memory_space<vmem>>, %arg4: memref<1024x256xbf16, #tpu.memory_space<vmem>>, %arg5: memref<1x1x256xf32, #tpu.memory_space<vmem>>, %arg6: memref<256x256xf32, #tpu.memory_space<vmem>>) attributes {dimension_semantics = [#tpu.dimension_semantics<parallel>], iteration_bounds = array<i64: 2>, scalar_prefetch = 0 : i64, scratch_operands = 0 : i64, tpu.core_type = #tpu.core_type<tc>, window_params = [{transform_indices = @transform_0, window_bounds = array<i64: 256, 128>}, {pipeline_mode = #tpu.pipeline_mode<synchronous>, transform_indices = @transform_1, window_bounds = array<i64: 128, 1024>}, {pipeline_mode = #tpu.pipeline_mode<synchronous>, transform_indices = @transform_2, window_bounds = array<i64: 1, 1024>}, {pipeline_mode = #tpu.pipeline_mode<synchronous>, transform_indices = @transform_3, window_bounds = array<i64: 1024, 256>}, {transform_indices = @transform_4, window_bounds = array<i64: 1, 1, 256>}, {transform_indices = @transform_5, window_bounds = array<i64: 256, 256>}]} {
    %c0 = arith.constant 0 : index
    %c0_0 = arith.constant 0 : index
    %0 = vector.load %arg1[%c0, %c0_0] : memref<256x128xbf16, #tpu.memory_space<vmem>>, vector<256x128xbf16>
    %c0_1 = arith.constant 0 : index
    %c0_2 = arith.constant 0 : index
    %1 = vector.load %arg2[%c0_1, %c0_2] : memref<128x1024xbf16, #tpu.memory_space<vmem>>, vector<128x1024xbf16>
    %cst = arith.constant dense<0.000000e+00> : vector<256x1024xf32>
    %2 = tpu.matmul %0, %1, %cst {dimension_numbers = #tpu.dot_dimension_numbers<[1], [0], [0], [1], [0, 0, 1, 1], [], []>} : vector<256x128xbf16>, vector<128x1024xbf16>, vector<256x1024xf32> -> vector<256x1024xf32>
    %c0_3 = arith.constant 0 : index
    %c0_4 = arith.constant 0 : index
    %3 = vector.load %arg3[%c0_3, %c0_4] : memref<1x1024xf32, #tpu.memory_space<vmem>>, vector<1x1024xf32>
    %4 = vector.broadcast %3 : vector<1x1024xf32> to vector<256x1024xf32>
    %5 = arith.addf %2, %4 : vector<256x1024xf32>
    %cst_5 = arith.constant 0.000000e+00 : f32
    %6 = vector.broadcast %cst_5 : f32 to vector<256x1024xf32>
    %7 = arith.maximumf %5, %6 : vector<256x1024xf32>
    %8 = arith.truncf %7 : vector<256x1024xf32> to vector<256x1024xbf16>
    %c0_6 = arith.constant 0 : index
    %c0_7 = arith.constant 0 : index
    %9 = vector.load %arg4[%c0_6, %c0_7] : memref<1024x256xbf16, #tpu.memory_space<vmem>>, vector<1024x256xbf16>
    %cst_8 = arith.constant dense<0.000000e+00> : vector<256x256xf32>
    %10 = tpu.matmul %8, %9, %cst_8 {dimension_numbers = #tpu.dot_dimension_numbers<[1], [0], [0], [1], [0, 0, 1, 1], [], []>} : vector<256x1024xbf16>, vector<1024x256xbf16>, vector<256x256xf32> -> vector<256x256xf32>
    %c0_9 = arith.constant 0 : index
    %c0_10 = arith.constant 0 : index
    %c0_11 = arith.constant 0 : index
    %11 = vector.load %arg5[%c0_9, %c0_10, %c0_11] : memref<1x1x256xf32, #tpu.memory_space<vmem>>, vector<1x1x256xf32>
    %12 = vector.shape_cast %11 : vector<1x1x256xf32> to vector<1x256xf32>
    %13 = vector.broadcast %12 : vector<1x256xf32> to vector<256x256xf32>
    %14 = arith.addf %10, %13 : vector<256x256xf32>
    %cst_12 = arith.constant 0.000000e+00 : f32
    %15 = vector.broadcast %cst_12 : f32 to vector<256x256xf32>
    %16 = arith.maximumf %14, %15 : vector<256x256xf32>
    %c0_13 = arith.constant 0 : index
    %c0_14 = arith.constant 0 : index
    %17 = vector.load %arg6[%c0_13, %c0_14] : memref<256x256xf32, #tpu.memory_space<vmem>>, vector<256x256xf32>
    tpu.vector_store %arg6[%c0_13, %c0_14], %16 {strides = array<i32>} : memref<256x256xf32, #tpu.memory_space<vmem>>, vector<256x256xf32>,
    return
  }
  func.func @transform_0(%arg0: i32) -> (i32, i32) {
    %c0_i32 = arith.constant 0 : i32
    %c0_i32_0 = arith.constant 0 : i32
    return %arg0, %c0_i32 : i32, i32
  }
  func.func @transform_1(%arg0: i32) -> (i32, i32) {
    %c0_i32 = arith.constant 0 : i32
    %c0_i32_0 = arith.constant 0 : i32
    %c0_i32_1 = arith.constant 0 : i32
    return %c0_i32, %c0_i32_0 : i32, i32
  }
  func.func @transform_2(%arg0: i32) -> (i32, i32) {
    %c0_i32 = arith.constant 0 : i32
    %c0_i32_0 = arith.constant 0 : i32
    %c0_i32_1 = arith.constant 0 : i32
    return %c0_i32, %c0_i32_0 : i32, i32
  }
  func.func @transform_3(%arg0: i32) -> (i32, i32) {
    %c0_i32 = arith.constant 0 : i32
    %c0_i32_0 = arith.constant 0 : i32
    %c0_i32_1 = arith.constant 0 : i32
    return %c0_i32, %c0_i32_0 : i32, i32
  }
  func.func @transform_4(%arg0: i32) -> (i32, i32, i32) {
    %c0_i32 = arith.constant 0 : i32
    %c0_i32_0 = arith.constant 0 : i32
    %c0_i32_1 = arith.constant 0 : i32
    return %arg0, %c0_i32, %c0_i32_0 : i32, i32, i32
  }
  func.func @transform_5(%arg0: i32) -> (i32, i32) {
    %c0_i32 = arith.constant 0 : i32
    %c0_i32_0 = arith.constant 0 : i32
    return %arg0, %c0_i32 : i32, i32
  }
}

</mosaic_0001>

<llo_original>
// kernel: par_forward.1
$region0: #{par_forward.1}
  #allocation0 [shape = 'u32[]', space=smem, size = 0x4, offset = 0x4, fixed_abs, tag = 'smem constant byte address 0x4 - core index']
  #allocation1 [shape = 'u32[72,128]{1,0:T(1,128)}', space=vmem, size = 0x9000, scoped, tag = 'internal scratch']
  %s0 = inlined_call_operand.vmem [shape: bf16[512,128], index: 0, kind: input, shape index: {}]
  %s1 = inlined_call_operand.vmem [shape: bf16[128,1024], index: 1, kind: input, shape index: {}]
  %s2 = inlined_call_operand.vmem [shape: f32[1,1024], index: 2, kind: input, shape index: {}]
  %s3 = inlined_call_operand.vmem [shape: bf16[1024,256], index: 3, kind: input, shape index: {}]
  %s4 = inlined_call_operand.vmem [shape: f32[2,1,256], index: 4, kind: input, shape index: {}]
  %s5 = inlined_call_operand.hbm [shape: f32[512,256], index: 5, kind: output, shape index: {}]
  %s6 = sld [smem:[#allocation0]]
  $region53: #{par_forward.1} parent=0
    _
  %s8 = ssub.s32 1, %s6
  %s9 = scalar_select 0, %s8, %s6
  $region1: #{par_forward.1} parent=0
    #allocation2 [shape = 'u8[524288]{0}', space=vmem, size = 0x80000, scoped, tag = 'output window, operand 0']
    #allocation3 [shape = 's32[2]{0}', space=sflag, size = 0x8, scoped, tag = 'scoped memory for par_forward.1']
    %10 = vsyncpa [#allocation3], 0
    %s11 = scalar_lea.sflag [#allocation3], 1
    %12 = vsyncpa %s11, 0
    loop: start=0, step=1, limit=4
    $region2: #{par_forward.1} parent=1 // loop_pre_header
      _
    $region3: #{par_forward.1} parent=1 // loop_header
      %s14 = sphi 0, %s18
      %p15 = scmp.ge.s32.totalorder %s14, 4
      %s24 = sphi 0, %s26
      %s27 = sphi 0, %s24
      %s28 = sphi 0, %s27
      %s44 = sphi 0, %s28
      %s48 = sphi 0, %s48
      %s50 = sphi 0, %s48
      %s51 = sphi 0, %s50
      %s65 = sphi 0, %s51
      %s69 = sphi 0, %s69
      %s71 = sphi 0, %s69
      %s72 = sphi 0, %s71
      %s86 = sphi 0, %s72
      %s90 = sphi 0, %s90
      %s92 = sphi 0, %s90
      %s93 = sphi 0, %s92
      %s107 = sphi 0, %s93
      %s113 = sphi 0, %s115
      %s116 = sphi 0, %s113
      %s117 = sphi 0, %s116
      %s133 = sphi 0, %s117
      %s139 = sphi 0, %s141
      %s142 = sphi 0, %s139
      %s143 = sphi 0, %s142
      %s159 = sphi 0, %s143
    $region4: #{par_forward.1} parent=1 // loop_header_branch
      %17 = sbr.rel (%p15) target = $region8
    $region5: #{par_forward.1} parent=1 // loop_body
      %s19 = ssub.s32 %s14, 1
      %s20 = ssub.s32 %s14, 2
      %s21 = sadd.s32 %s14, 1
      %s22 = ssub.s32 %s14, %s21
      %p23 = scmp.eq.s32.totalorder %s22, 0
      %s25 = sadd.s32 %s24, 1
      %s26 = scalar_select %p23, %s24, %s25
      %p29 = pneg %p23
      %p30 = scmp.eq.s32.totalorder %s14, 1
      %p31 = por %p29, %p30
      %p32 = scmp.ne.s32.totalorder %s24, %s27
      %p33 = scmp.eq.s32.totalorder %s14, 0
      %p34 = por %p32, %p33
      %p35 = scmp.ne.s32.totalorder %s24, %s27
      %p36 = scmp.eq.s32.totalorder %s19, 1
      %p37 = por %p35, %p36
      %p38 = scmp.ne.s32.totalorder %s27, %s28
      %p39 = scmp.eq.s32.totalorder %s19, 0
      %p40 = por %p38, %p39
      %p41 = scmp.ne.s32.totalorder %s27, %s28
      %p42 = scmp.eq.s32.totalorder %s20, 1
      %p43 = por %p41, %p42
      %p45 = scmp.ne.s32.totalorder %s28, %s44
      %p46 = scmp.eq.s32.totalorder %s20, 0
      %p47 = por %p45, %p46
      %s49 = sadd.s32 %s48, 1
      %p52 = scmp.eq.s32.totalorder %s14, 1
      %p53 = scmp.ne.s32.totalorder %s48, %s50
      %p54 = scmp.eq.s32.totalorder %s14, 0
      %p55 = por %p53, %p54
      %p56 = scmp.ne.s32.totalorder %s48, %s50
      %p57 = scmp.eq.s32.totalorder %s19, 1
      %p58 = por %p56, %p57
      %p59 = scmp.ne.s32.totalorder %s50, %s51
      %p60 = scmp.eq.s32.totalorder %s19, 0
      %p61 = por %p59, %p60
      %p62 = scmp.ne.s32.totalorder %s50, %s51
      %p63 = scmp.eq.s32.totalorder %s20, 1
      %p64 = por %p62, %p63
      %p66 = scmp.ne.s32.totalorder %s51, %s65
      %p67 = scmp.eq.s32.totalorder %s20, 0
      %p68 = por %p66, %p67
      %s70 = sadd.s32 %s69, 1
      %p73 = scmp.eq.s32.totalorder %s14, 1
      %p74 = scmp.ne.s32.totalorder %s69, %s71
      %p75 = scmp.eq.s32.totalorder %s14, 0
      %p76 = por %p74, %p75
      %p77 = scmp.ne.s32.totalorder %s69, %s71
      %p78 = scmp.eq.s32.totalorder %s19, 1
      %p79 = por %p77, %p78
      %p80 = scmp.ne.s32.totalorder %s71, %s72
      %p81 = scmp.eq.s32.totalorder %s19, 0
      %p82 = por %p80, %p81
      %p83 = scmp.ne.s32.totalorder %s71, %s72
      %p84 = scmp.eq.s32.totalorder %s20, 1
      %p85 = por %p83, %p84
      %p87 = scmp.ne.s32.totalorder %s72, %s86
      %p88 = scmp.eq.s32.totalorder %s20, 0
      %p89 = por %p87, %p88
      %s91 = sadd.s32 %s90, 1
      %p94 = scmp.eq.s32.totalorder %s14, 1
      %p95 = scmp.ne.s32.totalorder %s90, %s92
      %p96 = scmp.eq.s32.totalorder %s14, 0
      %p97 = por %p95, %p96
      %p98 = scmp.ne.s32.totalorder %s90, %s92
      %p99 = scmp.eq.s32.totalorder %s19, 1
      %p100 = por %p98, %p99
      %p101 = scmp.ne.s32.totalorder %s92, %s93
      %p102 = scmp.eq.s32.totalorder %s19, 0
      %p103 = por %p101, %p102
      %p104 = scmp.ne.s32.totalorder %s92, %s93
      %p105 = scmp.eq.s32.totalorder %s20, 1
      %p106 = por %p104, %p105
      %p108 = scmp.ne.s32.totalorder %s93, %s107
      %p109 = scmp.eq.s32.totalorder %s20, 0
      %p110 = por %p108, %p109
      %s111 = ssub.s32 %s14, %s21
      %p112 = scmp.eq.s32.totalorder %s111, 0
      %s114 = sadd.s32 %s113, 1
      %s115 = scalar_select %p112, %s113, %s114
      %p118 = pneg %p112
      %p119 = scmp.eq.s32.totalorder %s14, 1
      %p120 = por %p118, %p119
      %p121 = scmp.ne.s32.totalorder %s113, %s116
      %p122 = scmp.eq.s32.totalorder %s14, 0
      %p123 = por %p121, %p122
      %p124 = scmp.ne.s32.totalorder %s113, %s116
      %p125 = scmp.eq.s32.totalorder %s19, 1
      %p126 = por %p124, %p125
      %p127 = scmp.ne.s32.totalorder %s116, %s117
      %p128 = scmp.eq.s32.totalorder %s19, 0
      %p129 = por %p127, %p128
      %p130 = scmp.ne.s32.totalorder %s116, %s117
      %p131 = scmp.eq.s32.totalorder %s20, 1
      %p132 = por %p130, %p131
      %p134 = scmp.ne.s32.totalorder %s117, %s133
      %p135 = scmp.eq.s32.totalorder %s20, 0
      %p136 = por %p134, %p135
      %s137 = ssub.s32 %s14, %s21
      %p138 = scmp.eq.s32.totalorder %s137, 0
      %s140 = sadd.s32 %s139, 1
      %s141 = scalar_select %p138, %s139, %s140
      %p144 = pneg %p138
      %p145 = scmp.eq.s32.totalorder %s14, 1
      %p146 = por %p144, %p145
      %p147 = scmp.ne.s32.totalorder %s139, %s142
      %p148 = scmp.eq.s32.totalorder %s14, 0
      %p149 = por %p147, %p148
      %p150 = scmp.ne.s32.totalorder %s139, %s142
      %p151 = scmp.eq.s32.totalorder %s19, 1
      %p152 = por %p150, %p151
      %p153 = scmp.ne.s32.totalorder %s142, %s143
      %p154 = scmp.eq.s32.totalorder %s19, 0
      %p155 = por %p153, %p154
      %p156 = scmp.ne.s32.totalorder %s142, %s143
      %p157 = scmp.eq.s32.totalorder %s20, 1
      %p158 = por %p156, %p157
      %p160 = scmp.ne.s32.totalorder %s143, %s159
      %p161 = scmp.eq.s32.totalorder %s20, 0
      %p162 = por %p160, %p161
      %p163 = scmp.le.s32.totalorder 1, %s14
      %p164 = scmp.lt.s32.totalorder %s14, 3
      %p165 = pnand %p163, %p164
      %p166 = pneg %p165
      // Predicated region
      $region9: #{par_forward.1} parent=5 // pred_check
        _
      $region10: #{par_forward.1} parent=5 // pred_check_branch
        %168 = sbr.rel (%p165) target = $region12
      $region11: #{par_forward.1} parent=5 // pred_region
        %s169 = ssub.s32 %s14, 1
        // Predicated region
        $region13: #{par_forward.1} parent=11 // pred_check
          %p170 = pneg %p61
        $region14: #{par_forward.1} parent=11 // pred_check_branch
          %172 = sbr.rel (%p170) target = $region16
        $region15: #{par_forward.1} parent=11 // pred_region
          _
        $region16: #{par_forward.1} parent=11 // pred_fallthru
          _
        // Predicated region
        $region17: #{par_forward.1} parent=11 // pred_check
          %p173 = pneg %p82
        $region18: #{par_forward.1} parent=11 // pred_check_branch
          %175 = sbr.rel (%p173) target = $region20
        $region19: #{par_forward.1} parent=11 // pred_region
          _
        $region20: #{par_forward.1} parent=11 // pred_fallthru
          _
        // Predicated region
        $region21: #{par_forward.1} parent=11 // pred_check
          %p176 = pneg %p103
        $region22: #{par_forward.1} parent=11 // pred_check_branch
          %178 = sbr.rel (%p176) target = $region24
        $region23: #{par_forward.1} parent=11 // pred_region
          _
        $region24: #{par_forward.1} parent=11 // pred_fallthru
          _
      $region12: #{par_forward.1} parent=5 // pred_fallthru
        _
      %p179 = scmp.lt.s32.totalorder %s14, 2
      // Predicated region
      $region25: #{par_forward.1} parent=5 // pred_check
        %p180 = pneg %p179
      $region26: #{par_forward.1} parent=5 // pred_check_branch
        %182 = sbr.rel (%p180) target = $region28
      $region27: #{par_forward.1} parent=5 // pred_region
        // Predicated region
        $region29: #{par_forward.1} parent=27 // pred_check
          %p183 = pneg %p34
        $region30: #{par_forward.1} parent=27 // pred_check_branch
          %185 = sbr.rel (%p183) target = $region32
        $region31: #{par_forward.1} parent=27 // pred_region
          %s186 = smul.u32 32, %s14
          %p187 = scmp.lt.s32.totalorder %s186, 63
          %s188 = scalar_select %p187, %s186, 63
          %s189 = smul.addr %s188, 4
          %s190 = scalar_lea.vmem %s0, %s189
          %s191 = smul.u32 32, %s14
        $region32: #{par_forward.1} parent=27 // pred_fallthru
          _
        // Predicated region
        $region33: #{par_forward.1} parent=27 // pred_check
          %p192 = pneg %p123
        $region34: #{par_forward.1} parent=27 // pred_check_branch
          %194 = sbr.rel (%p192) target = $region36
        $region35: #{par_forward.1} parent=27 // pred_region
          %p195 = scmp.lt.s32.totalorder %s14, 1
          %s196 = scalar_select %p195, %s14, 1
          %s197 = smul.addr %s196, 2
          %s198 = scalar_lea.vmem %s4, %s197
        $region36: #{par_forward.1} parent=27 // pred_fallthru
          _
      $region28: #{par_forward.1} parent=5 // pred_fallthru
        _
      %p199 = scmp.le.s32.totalorder 1, %s14
      %p200 = scmp.lt.s32.totalorder %s14, 3
      %p201 = pnand %p199, %p200
      %p202 = pneg %p201
      // Predicated region
      $region37: #{par_forward.1} parent=5 // pred_check
        _
      $region38: #{par_forward.1} parent=5 // pred_check_branch
        %204 = sbr.rel (%p201) target = $region40
      $region39: #{par_forward.1} parent=5 // pred_region
        %s205 = ssub.s32 %s14, 1
        %s206 = smul.u32 32, %s19
        %p207 = scmp.lt.s32.totalorder %s206, 63
        %s208 = scalar_select %p207, %s206, 63
        %s209 = smul.addr %s208, 4
        %s210 = scalar_lea.vmem %s0, %s209
        %p211 = pneg %p40
        %p212 = pneg %p37
        %p213 = pneg %p61
        %p214 = pneg %p58
        %p215 = pneg %p82
        %p216 = pneg %p79
        %p217 = pneg %p103
        %p218 = pneg %p100
        %p219 = scmp.lt.s32.totalorder %s19, 1
        %s220 = scalar_select %p219, %s19, 1
        %s221 = smul.addr %s220, 2
        %s222 = scalar_lea.vmem %s4, %s221
        %p223 = pneg %p129
        %p224 = pneg %p126
        %p225 = pneg %p155
        %p226 = pneg %p152
        %s227 = sand.u32 %s142, 1
        %s228 = scalar_lea.sflag [#allocation3], %s227
        %s229 = sand.u32 %s142, 1
        %s230 = smul.addr %s229, 512
        %s231 = scalar_lea.vmem [#allocation2], %s230
        %s232 = smul.u32 32, %s19
        %p233 = scmp.lt.s32.totalorder %s232, 63
        %s234 = scalar_select %p233, %s232, 63
        %s235 = smul.addr %s234, 4
        %s236 = scalar_lea.vmem %s0, %s235
        %s237 = smul.u32 32, %s19
        %p238 = scmp.lt.s32.totalorder %s19, 1
        %s239 = scalar_select %p238, %s19, 1
        %s240 = smul.addr %s239, 2
        %s241 = scalar_lea.vmem %s4, %s240
        %s242 = smul.u32 32, %s19
        %v243 = vld [vmem:[%s236] sm:$0xf]
        %v244 = vld [vmem:[%s236 + $0x4] sm:$0xf]
        %v245 = vld [vmem:[%s236 + $0x8] sm:$0xf]
        %v246 = vld [vmem:[%s236 + $0xc] sm:$0xf]
        %v247 = vld [vmem:[%s236 + $0x10] sm:$0xf]
        %v248 = vld [vmem:[%s236 + $0x14] sm:$0xf]
        %v249 = vld [vmem:[%s236 + $0x18] sm:$0xf]
        %v250 = vld [vmem:[%s236 + $0x1c] sm:$0xf]
        %v251 = vld [vmem:[%s236 + $0x20] sm:$0xf]
        %v252 = vld [vmem:[%s236 + $0x24] sm:$0xf]
        %v253 = vld [vmem:[%s236 + $0x28] sm:$0xf]
        %v254 = vld [vmem:[%s236 + $0x2c] sm:$0xf]
        %v255 = vld [vmem:[%s236 + $0x30] sm:$0xf]
        %v256 = vld [vmem:[%s236 + $0x34] sm:$0xf]
        %v257 = vld [vmem:[%s236 + $0x38] sm:$0xf]
        %v258 = vld [vmem:[%s236 + $0x3c] sm:$0xf]
        %v259 = vld [vmem:[%s236 + $0x40] sm:$0xf]
        %v260 = vld [vmem:[%s236 + $0x44] sm:$0xf]
        %v261 = vld [vmem:[%s236 + $0x48] sm:$0xf]
        %v262 = vld [vmem:[%s236 + $0x4c] sm:$0xf]
        %v263 = vld [vmem:[%s236 + $0x50] sm:$0xf]
        %v264 = vld [vmem:[%s236 + $0x54] sm:$0xf]
        %v265 = vld [vmem:[%s236 + $0x58] sm:$0xf]
        %v266 = vld [vmem:[%s236 + $0x5c] sm:$0xf]
        %v267 = vld [vmem:[%s236 + $0x60] sm:$0xf]
        %v268 = vld [vmem:[%s236 + $0x64] sm:$0xf]
        %v269 = vld [vmem:[%s236 + $0x68] sm:$0xf]
        %v270 = vld [vmem:[%s236 + $0x6c] sm:$0xf]
        %v271 = vld [vmem:[%s236 + $0x70] sm:$0xf]
        %v272 = vld [vmem:[%s236 + $0x74] sm:$0xf]
        %v273 = vld [vmem:[%s236 + $0x78] sm:$0xf]
        %v274 = vld [vmem:[%s236 + $0x7c] sm:$0xf]
        %v275 = vld [vmem:[%s1] sm:$0xff]
        %v276 = vld [vmem:[%s1 + $0x8] sm:$0xff]
        %v277 = vld [vmem:[%s1 + $0x10] sm:$0xff]
        %v278 = vld [vmem:[%s1 + $0x18] sm:$0xff]
        %v279 = vld [vmem:[%s1 + $0x20] sm:$0xff]
        %v280 = vld [vmem:[%s1 + $0x28] sm:$0xff]
        %v281 = vld [vmem:[%s1 + $0x30] sm:$0xff]
        %v282 = vld [vmem:[%s1 + $0x38] sm:$0xff]
        %v283 = vld [vmem:[%s1 + $0x40] sm:$0xff]
        %v284 = vld [vmem:[%s1 + $0x48] sm:$0xff]
        %v285 = vld [vmem:[%s1 + $0x50] sm:$0xff]
        %v286 = vld [vmem:[%s1 + $0x58] sm:$0xff]
        %v287 = vld [vmem:[%s1 + $0x60] sm:$0xff]
        %v288 = vld [vmem:[%s1 + $0x68] sm:$0xff]
        %v289 = vld [vmem:[%s1 + $0x70] sm:$0xff]
        %v290 = vld [vmem:[%s1 + $0x78] sm:$0xff]
        %v291 = vld [vmem:[%s1 + $0x80] sm:$0xff]
        %v292 = vld [vmem:[%s1 + $0x88] sm:$0xff]
        %v293 = vld [vmem:[%s1 + $0x90] sm:$0xff]
        %v294 = vld [vmem:[%s1 + $0x98] sm:$0xff]
        %v295 = vld [vmem:[%s1 + $0xa0] sm:$0xff]
        %v296 = vld [vmem:[%s1 + $0xa8] sm:$0xff]
        %v297 = vld [vmem:[%s1 + $0xb0] sm:$0xff]
        %v298 = vld [vmem:[%s1 + $0xb8] sm:$0xff]
        %v299 = vld [vmem:[%s1 + $0xc0] sm:$0xff]
        %v300 = vld [vmem:[%s1 + $0xc8] sm:$0xff]
        %v301 = vld [vmem:[%s1 + $0xd0] sm:$0xff]
        %v302 = vld [vmem:[%s1 + $0xd8] sm:$0xff]
        %v303 = vld [vmem:[%s1 + $0xe0] sm:$0xff]
        %v304 = vld [vmem:[%s1 + $0xe8] sm:$0xff]
        %v305 = vld [vmem:[%s1 + $0xf0] sm:$0xff]
        %v306 = vld [vmem:[%s1 + $0xf8] sm:$0xff]
        %v307 = vld [vmem:[%s1 + $0x100] sm:$0xff]
        %v308 = vld [vmem:[%s1 + $0x108] sm:$0xff]
        %v309 = vld [vmem:[%s1 + $0x110] sm:$0xff]
        %v310 = vld [vmem:[%s1 + $0x118] sm:$0xff]
        %v311 = vld [vmem:[%s1 + $0x120] sm:$0xff]
        %v312 = vld [vmem:[%s1 + $0x128] sm:$0xff]
        %v313 = vld [vmem:[%s1 + $0x130] sm:$0xff]
        %v314 = vld [vmem:[%s1 + $0x138] sm:$0xff]
        %v315 = vld [vmem:[%s1 + $0x140] sm:$0xff]
        %v316 = vld [vmem:[%s1 + $0x148] sm:$0xff]
        %v317 = vld [vmem:[%s1 + $0x150] sm:$0xff]
        %v318 = vld [vmem:[%s1 + $0x158] sm:$0xff]
        %v319 = vld [vmem:[%s1 + $0x160] sm:$0xff]
        %v320 = vld [vmem:[%s1 + $0x168] sm:$0xff]
        %v321 = vld [vmem:[%s1 + $0x170] sm:$0xff]
        %v322 = vld [vmem:[%s1 + $0x178] sm:$0xff]
        %v323 = vld [vmem:[%s1 + $0x180] sm:$0xff]
        %v324 = vld [vmem:[%s1 + $0x188] sm:$0xff]
        %v325 = vld [vmem:[%s1 + $0x190] sm:$0xff]
        %v326 = vld [vmem:[%s1 + $0x198] sm:$0xff]
        %v327 = vld [vmem:[%s1 + $0x1a0] sm:$0xff]
        %v328 = vld [vmem:[%s1 + $0x1a8] sm:$0xff]
        %v329 = vld [vmem:[%s1 + $0x1b0] sm:$0xff]
        %v330 = vld [vmem:[%s1 + $0x1b8] sm:$0xff]
        %v331 = vld [vmem:[%s1 + $0x1c0] sm:$0xff]
        %v332 = vld [vmem:[%s1 + $0x1c8] sm:$0xff]
        %v333 = vld [vmem:[%s1 + $0x1d0] sm:$0xff]
        %v334 = vld [vmem:[%s1 + $0x1d8] sm:$0xff]
        %v335 = vld [vmem:[%s1 + $0x1e0] sm:$0xff]
        %v336 = vld [vmem:[%s1 + $0x1e8] sm:$0xff]
        %v337 = vld [vmem:[%s1 + $0x1f0] sm:$0xff]
        %v338 = vld [vmem:[%s1 + $0x1f8] sm:$0xff]
        %v339 = vld [vmem:[%s2] sm:$0xff]
        %v341 = vperm.slane %v339, 0
        %v342 = vperm.slane %v339, 1
        %v343 = vperm.slane %v339, 2
        %v344 = vperm.slane %v339, 3
        %v345 = vperm.slane %v339, 4
        %v346 = vperm.slane %v339, 5
        %v347 = vperm.slane %v339, 6
        %v348 = vperm.slane %v339, 7
        %v389 = vunpack.c.l.b16 %v243
        %v390 = vunpack.c.l.b16 %v244
        %v391 = vunpack.c.l.b16 %v245
        %v392 = vunpack.c.l.b16 %v246
        %v393 = vunpack.c.l.b16 %v247
        %v394 = vunpack.c.l.b16 %v248
        %v395 = vunpack.c.l.b16 %v249
        %v396 = vunpack.c.l.b16 %v250
        %v397 = vunpack.c.l.b16 %v251
        %v398 = vunpack.c.l.b16 %v252
        %v399 = vunpack.c.l.b16 %v253
        %v400 = vunpack.c.l.b16 %v254
        %v401 = vunpack.c.l.b16 %v255
        %v402 = vunpack.c.l.b16 %v256
        %v403 = vunpack.c.l.b16 %v257
        %v404 = vunpack.c.l.b16 %v258
        %v405 = vunpack.c.l.b16 %v259
        %v406 = vunpack.c.l.b16 %v260
        %v407 = vunpack.c.l.b16 %v261
        %v408 = vunpack.c.l.b16 %v262
        %v409 = vunpack.c.l.b16 %v263
        %v410 = vunpack.c.l.b16 %v264
        %v411 = vunpack.c.l.b16 %v265
        %v412 = vunpack.c.l.b16 %v266
        %v413 = vunpack.c.l.b16 %v267
        %v414 = vunpack.c.l.b16 %v268
        %v415 = vunpack.c.l.b16 %v269
        %v416 = vunpack.c.l.b16 %v270
        %v417 = vunpack.c.l.b16 %v271
        %v418 = vunpack.c.l.b16 %v272
        %v419 = vunpack.c.l.b16 %v273
        %v420 = vunpack.c.l.b16 %v274
        %v421 = vpack.c.b16 %v390, %v389
        %v422 = vpack.c.b16 %v392, %v391
        %v423 = vpack.c.b16 %v394, %v393
        %v424 = vpack.c.b16 %v396, %v395
        %v425 = vpack.c.b16 %v398, %v397
        %v426 = vpack.c.b16 %v400, %v399
        %v427 = vpack.c.b16 %v402, %v401
        %v428 = vpack.c.b16 %v404, %v403
        %v429 = vpack.c.b16 %v406, %v405
        %v430 = vpack.c.b16 %v408, %v407
        %v431 = vpack.c.b16 %v410, %v409
        %v432 = vpack.c.b16 %v412, %v411
        %v433 = vpack.c.b16 %v414, %v413
        %v434 = vpack.c.b16 %v416, %v415
        %v435 = vpack.c.b16 %v418, %v417
        %v436 = vpack.c.b16 %v420, %v419
        %v517 = vunpack.c.l.b16 %v275
        %v518 = vunpack.c.h.b16 %v275
        %v519 = vunpack.c.l.b16 %v276
        %v520 = vunpack.c.h.b16 %v276
        %v521 = vunpack.c.l.b16 %v277
        %v522 = vunpack.c.h.b16 %v277
        %v523 = vunpack.c.l.b16 %v278
        %v524 = vunpack.c.h.b16 %v278
        %v525 = vunpack.c.l.b16 %v279
        %v526 = vunpack.c.h.b16 %v279
        %v527 = vunpack.c.l.b16 %v280
        %v528 = vunpack.c.h.b16 %v280
        %v529 = vunpack.c.l.b16 %v281
        %v530 = vunpack.c.h.b16 %v281
        %v531 = vunpack.c.l.b16 %v282
        %v532 = vunpack.c.h.b16 %v282
        %v533 = vunpack.c.l.b16 %v283
        %v534 = vunpack.c.h.b16 %v283
        %v535 = vunpack.c.l.b16 %v284
        %v536 = vunpack.c.h.b16 %v284
        %v537 = vunpack.c.l.b16 %v285
        %v538 = vunpack.c.h.b16 %v285
        %v539 = vunpack.c.l.b16 %v286
        %v540 = vunpack.c.h.b16 %v286
        %v541 = vunpack.c.l.b16 %v287
        %v542 = vunpack.c.h.b16 %v287
        %v543 = vunpack.c.l.b16 %v288
        %v544 = vunpack.c.h.b16 %v288
        %v545 = vunpack.c.l.b16 %v289
        %v546 = vunpack.c.h.b16 %v289
        %v547 = vunpack.c.l.b16 %v290
        %v548 = vunpack.c.h.b16 %v290
        %v549 = vunpack.c.l.b16 %v291
        %v550 = vunpack.c.h.b16 %v291
        %v551 = vunpack.c.l.b16 %v292
        %v552 = vunpack.c.h.b16 %v292
        %v553 = vunpack.c.l.b16 %v293
        %v554 = vunpack.c.h.b16 %v293
        %v555 = vunpack.c.l.b16 %v294
        %v556 = vunpack.c.h.b16 %v294
        %v557 = vunpack.c.l.b16 %v295
        %v558 = vunpack.c.h.b16 %v295
        %v559 = vunpack.c.l.b16 %v296
        %v560 = vunpack.c.h.b16 %v296
        %v561 = vunpack.c.l.b16 %v297
        %v562 = vunpack.c.h.b16 %v297
        %v563 = vunpack.c.l.b16 %v298
        %v564 = vunpack.c.h.b16 %v298
        %v565 = vunpack.c.l.b16 %v299
        %v566 = vunpack.c.h.b16 %v299
        %v567 = vunpack.c.l.b16 %v300
        %v568 = vunpack.c.h.b16 %v300
        %v569 = vunpack.c.l.b16 %v301
        %v570 = vunpack.c.h.b16 %v301
        %v571 = vunpack.c.l.b16 %v302
        %v572 = vunpack.c.h.b16 %v302
        %v573 = vunpack.c.l.b16 %v303
        %v574 = vunpack.c.h.b16 %v303
        %v575 = vunpack.c.l.b16 %v304
        %v576 = vunpack.c.h.b16 %v304
        %v577 = vunpack.c.l.b16 %v305
        %v578 = vunpack.c.h.b16 %v305
        %v579 = vunpack.c.l.b16 %v306
        %v580 = vunpack.c.h.b16 %v306
        %v581 = vunpack.c.l.b16 %v307
        %v582 = vunpack.c.h.b16 %v307
        %v583 = vunpack.c.l.b16 %v308
        %v584 = vunpack.c.h.b16 %v308
        %v585 = vunpack.c.l.b16 %v309
        %v586 = vunpack.c.h.b16 %v309
        %v587 = vunpack.c.l.b16 %v310
        %v588 = vunpack.c.h.b16 %v310
        %v589 = vunpack.c.l.b16 %v311
        %v590 = vunpack.c.h.b16 %v311
        %v591 = vunpack.c.l.b16 %v312
        %v592 = vunpack.c.h.b16 %v312
        %v593 = vunpack.c.l.b16 %v313
        %v594 = vunpack.c.h.b16 %v313
        %v595 = vunpack.c.l.b16 %v314
        %v596 = vunpack.c.h.b16 %v314
        %v597 = vunpack.c.l.b16 %v315
        %v598 = vunpack.c.h.b16 %v315
        %v599 = vunpack.c.l.b16 %v316
        %v600 = vunpack.c.h.b16 %v316
        %v601 = vunpack.c.l.b16 %v317
        %v602 = vunpack.c.h.b16 %v317
        %v603 = vunpack.c.l.b16 %v318
        %v604 = vunpack.c.h.b16 %v318
        %v605 = vunpack.c.l.b16 %v319
        %v606 = vunpack.c.h.b16 %v319
        %v607 = vunpack.c.l.b16 %v320
        %v608 = vunpack.c.h.b16 %v320
        %v609 = vunpack.c.l.b16 %v321
        %v610 = vunpack.c.h.b16 %v321
        %v611 = vunpack.c.l.b16 %v322
        %v612 = vunpack.c.h.b16 %v322
        %v613 = vunpack.c.l.b16 %v323
        %v614 = vunpack.c.h.b16 %v323
        %v615 = vunpack.c.l.b16 %v324
        %v616 = vunpack.c.h.b16 %v324
        %v617 = vunpack.c.l.b16 %v325
        %v618 = vunpack.c.h.b16 %v325
        %v619 = vunpack.c.l.b16 %v326
        %v620 = vunpack.c.h.b16 %v326
        %v621 = vunpack.c.l.b16 %v327
        %v622 = vunpack.c.h.b16 %v327
        %v623 = vunpack.c.l.b16 %v328
        %v624 = vunpack.c.h.b16 %v328
        %v625 = vunpack.c.l.b16 %v329
        %v626 = vunpack.c.h.b16 %v329
        %v627 = vunpack.c.l.b16 %v330
        %v628 = vunpack.c.h.b16 %v330
        %v629 = vunpack.c.l.b16 %v331
        %v630 = vunpack.c.h.b16 %v331
        %v631 = vunpack.c.l.b16 %v332
        %v632 = vunpack.c.h.b16 %v332
        %v633 = vunpack.c.l.b16 %v333
        %v634 = vunpack.c.h.b16 %v333
        %v635 = vunpack.c.l.b16 %v334
        %v636 = vunpack.c.h.b16 %v334
        %v637 = vunpack.c.l.b16 %v335
        %v638 = vunpack.c.h.b16 %v335
        %v639 = vunpack.c.l.b16 %v336
        %v640 = vunpack.c.h.b16 %v336
        %v641 = vunpack.c.l.b16 %v337
        %v642 = vunpack.c.h.b16 %v337
        %v643 = vunpack.c.l.b16 %v338
        %v644 = vunpack.c.h.b16 %v338
        %v645 = vpack.c.b16 %v525, %v517
        %v646 = vpack.c.b16 %v526, %v518
        %v647 = vpack.c.b16 %v527, %v519
        %v648 = vpack.c.b16 %v528, %v520
        %v649 = vpack.c.b16 %v529, %v521
        %v650 = vpack.c.b16 %v530, %v522
        %v651 = vpack.c.b16 %v531, %v523
        %v652 = vpack.c.b16 %v532, %v524
        %v653 = vpack.c.b16 %v541, %v533
        %v654 = vpack.c.b16 %v542, %v534
        %v655 = vpack.c.b16 %v543, %v535
        %v656 = vpack.c.b16 %v544, %v536
        %v657 = vpack.c.b16 %v545, %v537
        %v658 = vpack.c.b16 %v546, %v538
        %v659 = vpack.c.b16 %v547, %v539
        %v660 = vpack.c.b16 %v548, %v540
        %v661 = vpack.c.b16 %v557, %v549
        %v662 = vpack.c.b16 %v558, %v550
        %v663 = vpack.c.b16 %v559, %v551
        %v664 = vpack.c.b16 %v560, %v552
        %v665 = vpack.c.b16 %v561, %v553
        %v666 = vpack.c.b16 %v562, %v554
        %v667 = vpack.c.b16 %v563, %v555
        %v668 = vpack.c.b16 %v564, %v556
        %v669 = vpack.c.b16 %v573, %v565
        %v670 = vpack.c.b16 %v574, %v566
        %v671 = vpack.c.b16 %v575, %v567
        %v672 = vpack.c.b16 %v576, %v568
        %v673 = vpack.c.b16 %v577, %v569
        %v674 = vpack.c.b16 %v578, %v570
        %v675 = vpack.c.b16 %v579, %v571
        %v676 = vpack.c.b16 %v580, %v572
        %v677 = vpack.c.b16 %v589, %v581
        %v678 = vpack.c.b16 %v590, %v582
        %v679 = vpack.c.b16 %v591, %v583
        %v680 = vpack.c.b16 %v592, %v584
        %v681 = vpack.c.b16 %v593, %v585
        %v682 = vpack.c.b16 %v594, %v586
        %v683 = vpack.c.b16 %v595, %v587
        %v684 = vpack.c.b16 %v596, %v588
        %v685 = vpack.c.b16 %v605, %v597
        %v686 = vpack.c.b16 %v606, %v598
        %v687 = vpack.c.b16 %v607, %v599
        %v688 = vpack.c.b16 %v608, %v600
        %v689 = vpack.c.b16 %v609, %v601
        %v690 = vpack.c.b16 %v610, %v602
        %v691 = vpack.c.b16 %v611, %v603
        %v692 = vpack.c.b16 %v612, %v604
        %v693 = vpack.c.b16 %v621, %v613
        %v694 = vpack.c.b16 %v622, %v614
        %v695 = vpack.c.b16 %v623, %v615
        %v696 = vpack.c.b16 %v624, %v616
        %v697 = vpack.c.b16 %v625, %v617
        %v698 = vpack.c.b16 %v626, %v618
        %v699 = vpack.c.b16 %v627, %v619
        %v700 = vpack.c.b16 %v628, %v620
        %v701 = vpack.c.b16 %v637, %v629
        %v702 = vpack.c.b16 %v638, %v630
        %v703 = vpack.c.b16 %v639, %v631
        %v704 = vpack.c.b16 %v640, %v632
        %v705 = vpack.c.b16 %v641, %v633
        %v706 = vpack.c.b16 %v642, %v634
        %v707 = vpack.c.b16 %v643, %v635
        %v708 = vpack.c.b16 %v644, %v636
        %773 = vmatpush.bf16.msra.mxu0 %v701
        %774 = vmatpush.bf16.msra.mxu0 %v693
        %775 = vmatpush.bf16.msra.mxu0 %v685
        %776 = vmatpush.bf16.msra.mxu0 %v677
        %777 = vmatpush.bf16.msra.mxu0 %v669
        %778 = vmatpush.bf16.msra.mxu0 %v661
        %779 = vmatpush.bf16.msra.mxu0 %v653
        %780 = vmatpush.bf16.msra.mxu0 %v645
        %781 = vmatmul.bf16.gmra.mxu0 %v421
        %v782 = vpop.f32.mrf.mxu0
        %v783 = vadd.f32 %v341, %v782
        %v784 = vpop.f32.mrf.mxu0
        %v785 = vadd.f32 %v341, %v784
        %786 = vmatmul.bf16.gmra.mxu0 %v422
        %v787 = vpop.f32.mrf.mxu0
        %v788 = vadd.f32 %v341, %v787
        %v789 = vpop.f32.mrf.mxu0
        %v790 = vadd.f32 %v341, %v789
        %791 = vmatmul.bf16.gmra.mxu0 %v423
        %v792 = vpop.f32.mrf.mxu0
        %v793 = vadd.f32 %v341, %v792
        %v794 = vpop.f32.mrf.mxu0
        %v795 = vadd.f32 %v341, %v794
        %796 = vmatmul.bf16.gmra.mxu0 %v424
        %v797 = vpop.f32.mrf.mxu0
        %v798 = vadd.f32 %v341, %v797
        %v799 = vpop.f32.mrf.mxu0
        %v800 = vadd.f32 %v341, %v799
        %801 = vmatmul.bf16.gmra.mxu0 %v425
        %v802 = vpop.f32.mrf.mxu0
        %v803 = vadd.f32 %v341, %v802
        %v804 = vpop.f32.mrf.mxu0
        %v805 = vadd.f32 %v341, %v804
        %806 = vmatmul.bf16.gmra.mxu0 %v426
        %v807 = vpop.f32.mrf.mxu0
        %v808 = vadd.f32 %v341, %v807
        %v809 = vpop.f32.mrf.mxu0
        %v810 = vadd.f32 %v341, %v809
        %811 = vmatmul.bf16.gmra.mxu0 %v427
        %v812 = vpop.f32.mrf.mxu0
        %v813 = vadd.f32 %v341, %v812
        %v814 = vpop.f32.mrf.mxu0
        %v815 = vadd.f32 %v341, %v814
        %816 = vmatmul.bf16.gmra.mxu0 %v428
        %v817 = vpop.f32.mrf.mxu0
        %v818 = vadd.f32 %v341, %v817
        %v819 = vpop.f32.mrf.mxu0
        %v820 = vadd.f32 %v341, %v819
        %821 = vmatmul.bf16.gmra.mxu0 %v429
        %v822 = vpop.f32.mrf.mxu0
        %v823 = vadd.f32 %v341, %v822
        %v824 = vpop.f32.mrf.mxu0
        %v825 = vadd.f32 %v341, %v824
        %826 = vmatmul.bf16.gmra.mxu0 %v430
        %v827 = vpop.f32.mrf.mxu0
        %v828 = vadd.f32 %v341, %v827
        %v829 = vpop.f32.mrf.mxu0
        %v830 = vadd.f32 %v341, %v829
        %831 = vmatmul.bf16.gmra.mxu0 %v431
        %v832 = vpop.f32.mrf.mxu0
        %v833 = vadd.f32 %v341, %v832
        %v834 = vpop.f32.mrf.mxu0
        %v835 = vadd.f32 %v341, %v834
        %836 = vmatmul.bf16.gmra.mxu0 %v432
        %v837 = vpop.f32.mrf.mxu0
        %v838 = vadd.f32 %v341, %v837
        %v839 = vpop.f32.mrf.mxu0
        %v840 = vadd.f32 %v341, %v839
        %841 = vmatmul.bf16.gmra.mxu0 %v433
        %v842 = vpop.f32.mrf.mxu0
        %v843 = vadd.f32 %v341, %v842
        %v844 = vpop.f32.mrf.mxu0
        %v845 = vadd.f32 %v341, %v844
        %846 = vmatmul.bf16.gmra.mxu0 %v434
        %v847 = vpop.f32.mrf.mxu0
        %v848 = vadd.f32 %v341, %v847
        %v849 = vpop.f32.mrf.mxu0
        %v850 = vadd.f32 %v341, %v849
        %851 = vmatmul.bf16.gmra.mxu0 %v435
        %v852 = vpop.f32.mrf.mxu0
        %v853 = vadd.f32 %v341, %v852
        %v854 = vpop.f32.mrf.mxu0
        %v855 = vadd.f32 %v341, %v854
        %856 = vmatmul.bf16.gmra.mxu0 %v436
        %v857 = vpop.f32.mrf.mxu0
        %v858 = vadd.f32 %v341, %v857
        %v859 = vpop.f32.mrf.mxu0
        %v860 = vadd.f32 %v341, %v859
        %861 = vdwg.mxu0
        %862 = vmatpush.bf16.msra.mxu0 %v702
        %863 = vmatpush.bf16.msra.mxu0 %v694
        %864 = vmatpush.bf16.msra.mxu0 %v686
        %865 = vmatpush.bf16.msra.mxu0 %v678
        %866 = vmatpush.bf16.msra.mxu0 %v670
        %867 = vmatpush.bf16.msra.mxu0 %v662
        %868 = vmatpush.bf16.msra.mxu0 %v654
        %869 = vmatpush.bf16.msra.mxu0 %v646
        %870 = vmatmul.bf16.gmra.mxu0 %v421
        %v871 = vpop.f32.mrf.mxu0
        %v872 = vadd.f32 %v342, %v871
        %v873 = vpop.f32.mrf.mxu0
        %v874 = vadd.f32 %v342, %v873
        %875 = vmatmul.bf16.gmra.mxu0 %v422
        %v876 = vpop.f32.mrf.mxu0
        %v877 = vadd.f32 %v342, %v876
        %v878 = vpop.f32.mrf.mxu0
        %v879 = vadd.f32 %v342, %v878
        %880 = vmatmul.bf16.gmra.mxu0 %v423
        %v881 = vpop.f32.mrf.mxu0
        %v882 = vadd.f32 %v342, %v881
        %v883 = vpop.f32.mrf.mxu0
        %v884 = vadd.f32 %v342, %v883
        %885 = vmatmul.bf16.gmra.mxu0 %v424
        %v886 = vpop.f32.mrf.mxu0
        %v887 = vadd.f32 %v342, %v886
        %v888 = vpop.f32.mrf.mxu0
        %v889 = vadd.f32 %v342, %v888
        %890 = vmatmul.bf16.gmra.mxu0 %v425
        %v891 = vpop.f32.mrf.mxu0
        %v892 = vadd.f32 %v342, %v891
        %v893 = vpop.f32.mrf.mxu0
        %v894 = vadd.f32 %v342, %v893
        %895 = vmatmul.bf16.gmra.mxu0 %v426
        %v896 = vpop.f32.mrf.mxu0
        %v897 = vadd.f32 %v342, %v896
        %v898 = vpop.f32.mrf.mxu0
        %v899 = vadd.f32 %v342, %v898
        %900 = vmatmul.bf16.gmra.mxu0 %v427
        %v901 = vpop.f32.mrf.mxu0
        %v902 = vadd.f32 %v342, %v901
        %v903 = vpop.f32.mrf.mxu0
        %v904 = vadd.f32 %v342, %v903
        %905 = vmatmul.bf16.gmra.mxu0 %v428
        %v906 = vpop.f32.mrf.mxu0
        %v907 = vadd.f32 %v342, %v906
        %v908 = vpop.f32.mrf.mxu0
        %v909 = vadd.f32 %v342, %v908
        %910 = vmatmul.bf16.gmra.mxu0 %v429
        %v911 = vpop.f32.mrf.mxu0
        %v912 = vadd.f32 %v342, %v911
        %v913 = vpop.f32.mrf.mxu0
        %v914 = vadd.f32 %v342, %v913
        %915 = vmatmul.bf16.gmra.mxu0 %v430
        %v916 = vpop.f32.mrf.mxu0
        %v917 = vadd.f32 %v342, %v916
        %v918 = vpop.f32.mrf.mxu0
        %v919 = vadd.f32 %v342, %v918
        %920 = vmatmul.bf16.gmra.mxu0 %v431
        %v921 = vpop.f32.mrf.mxu0
        %v922 = vadd.f32 %v342, %v921
        %v923 = vpop.f32.mrf.mxu0
        %v924 = vadd.f32 %v342, %v923
        %925 = vmatmul.bf16.gmra.mxu0 %v432
        %v926 = vpop.f32.mrf.mxu0
        %v927 = vadd.f32 %v342, %v926
        %v928 = vpop.f32.mrf.mxu0
        %v929 = vadd.f32 %v342, %v928
        %930 = vmatmul.bf16.gmra.mxu0 %v433
        %v931 = vpop.f32.mrf.mxu0
        %v932 = vadd.f32 %v342, %v931
        %v933 = vpop.f32.mrf.mxu0
        %v934 = vadd.f32 %v342, %v933
        %935 = vmatmul.bf16.gmra.mxu0 %v434
        %v936 = vpop.f32.mrf.mxu0
        %v937 = vadd.f32 %v342, %v936
        %v938 = vpop.f32.mrf.mxu0
        %v939 = vadd.f32 %v342, %v938
        %940 = vmatmul.bf16.gmra.mxu0 %v435
        %v941 = vpop.f32.mrf.mxu0
        %v942 = vadd.f32 %v342, %v941
        %v943 = vpop.f32.mrf.mxu0
        %v944 = vadd.f32 %v342, %v943
        %945 = vmatmul.bf16.gmra.mxu0 %v436
        %v946 = vpop.f32.mrf.mxu0
        %v947 = vadd.f32 %v342, %v946
        %v948 = vpop.f32.mrf.mxu0
        %v949 = vadd.f32 %v342, %v948
        %950 = vdwg.mxu0
        %951 = vmatpush.bf16.msra.mxu0 %v703
        %952 = vmatpush.bf16.msra.mxu0 %v695
        %953 = vmatpush.bf16.msra.mxu0 %v687
        %954 = vmatpush.bf16.msra.mxu0 %v679
        %955 = vmatpush.bf16.msra.mxu0 %v671
        %956 = vmatpush.bf16.msra.mxu0 %v663
        %957 = vmatpush.bf16.msra.mxu0 %v655
        %958 = vmatpush.bf16.msra.mxu0 %v647
        %959 = vmatmul.bf16.gmra.mxu0 %v421
        %v960 = vpop.f32.mrf.mxu0
        %v961 = vadd.f32 %v343, %v960
        %v962 = vpop.f32.mrf.mxu0
        %v963 = vadd.f32 %v343, %v962
        %964 = vmatmul.bf16.gmra.mxu0 %v422
        %v965 = vpop.f32.mrf.mxu0
        %v966 = vadd.f32 %v343, %v965
        %v967 = vpop.f32.mrf.mxu0
        %v968 = vadd.f32 %v343, %v967
        %969 = vmatmul.bf16.gmra.mxu0 %v423
        %v970 = vpop.f32.mrf.mxu0
        %v971 = vadd.f32 %v343, %v970
        %v972 = vpop.f32.mrf.mxu0
        %v973 = vadd.f32 %v343, %v972
        %974 = vmatmul.bf16.gmra.mxu0 %v424
        %v975 = vpop.f32.mrf.mxu0
        %v976 = vadd.f32 %v343, %v975
        %v977 = vpop.f32.mrf.mxu0
        %v978 = vadd.f32 %v343, %v977
        %979 = vmatmul.bf16.gmra.mxu0 %v425
        %v980 = vpop.f32.mrf.mxu0
        %v981 = vadd.f32 %v343, %v980
        %v982 = vpop.f32.mrf.mxu0
        %v983 = vadd.f32 %v343, %v982
        %984 = vmatmul.bf16.gmra.mxu0 %v426
        %v985 = vpop.f32.mrf.mxu0
        %v986 = vadd.f32 %v343, %v985
        %v987 = vpop.f32.mrf.mxu0
        %v988 = vadd.f32 %v343, %v987
        %989 = vmatmul.bf16.gmra.mxu0 %v427
        %v990 = vpop.f32.mrf.mxu0
        %v991 = vadd.f32 %v343, %v990
        %v992 = vpop.f32.mrf.mxu0
        %v993 = vadd.f32 %v343, %v992
        %994 = vmatmul.bf16.gmra.mxu0 %v428
        %v995 = vpop.f32.mrf.mxu0
        %v996 = vadd.f32 %v343, %v995
        %v997 = vpop.f32.mrf.mxu0
        %v998 = vadd.f32 %v343, %v997
        %999 = vmatmul.bf16.gmra.mxu0 %v429
        %v1000 = vpop.f32.mrf.mxu0
        %v1001 = vadd.f32 %v343, %v1000
        %v1002 = vpop.f32.mrf.mxu0
        %v1003 = vadd.f32 %v343, %v1002
        %1004 = vmatmul.bf16.gmra.mxu0 %v430
        %v1005 = vpop.f32.mrf.mxu0
        %v1006 = vadd.f32 %v343, %v1005
        %v1007 = vpop.f32.mrf.mxu0
        %v1008 = vadd.f32 %v343, %v1007
        %1009 = vmatmul.bf16.gmra.mxu0 %v431
        %v1010 = vpop.f32.mrf.mxu0
        %v1011 = vadd.f32 %v343, %v1010
        %v1012 = vpop.f32.mrf.mxu0
        %v1013 = vadd.f32 %v343, %v1012
        %1014 = vmatmul.bf16.gmra.mxu0 %v432
        %v1015 = vpop.f32.mrf.mxu0
        %v1016 = vadd.f32 %v343, %v1015
        %v1017 = vpop.f32.mrf.mxu0
        %v1018 = vadd.f32 %v343, %v1017
        %1019 = vmatmul.bf16.gmra.mxu0 %v433
        %v1020 = vpop.f32.mrf.mxu0
        %v1021 = vadd.f32 %v343, %v1020
        %v1022 = vpop.f32.mrf.mxu0
        %v1023 = vadd.f32 %v343, %v1022
        %1024 = vmatmul.bf16.gmra.mxu0 %v434
        %v1025 = vpop.f32.mrf.mxu0
        %v1026 = vadd.f32 %v343, %v1025
        %v1027 = vpop.f32.mrf.mxu0
        %v1028 = vadd.f32 %v343, %v1027
        %1029 = vmatmul.bf16.gmra.mxu0 %v435
        %v1030 = vpop.f32.mrf.mxu0
        %v1031 = vadd.f32 %v343, %v1030
        %v1032 = vpop.f32.mrf.mxu0
        %v1033 = vadd.f32 %v343, %v1032
        %1034 = vmatmul.bf16.gmra.mxu0 %v436
        %v1035 = vpop.f32.mrf.mxu0
        %v1036 = vadd.f32 %v343, %v1035
        %v1037 = vpop.f32.mrf.mxu0
        %v1038 = vadd.f32 %v343, %v1037
        %1039 = vdwg.mxu0
        %1040 = vmatpush.bf16.msra.mxu0 %v704
        %1041 = vmatpush.bf16.msra.mxu0 %v696
        %1042 = vmatpush.bf16.msra.mxu0 %v688
        %1043 = vmatpush.bf16.msra.mxu0 %v680
        %1044 = vmatpush.bf16.msra.mxu0 %v672
        %1045 = vmatpush.bf16.msra.mxu0 %v664
        %1046 = vmatpush.bf16.msra.mxu0 %v656
        %1047 = vmatpush.bf16.msra.mxu0 %v648
        %1048 = vmatmul.bf16.gmra.mxu0 %v421
        %v1049 = vpop.f32.mrf.mxu0
        %v1050 = vadd.f32 %v344, %v1049
        %v1051 = vpop.f32.mrf.mxu0
        %v1052 = vadd.f32 %v344, %v1051
        %1053 = vmatmul.bf16.gmra.mxu0 %v422
        %v1054 = vpop.f32.mrf.mxu0
        %v1055 = vadd.f32 %v344, %v1054
        %v1056 = vpop.f32.mrf.mxu0
        %v1057 = vadd.f32 %v344, %v1056
        %1058 = vmatmul.bf16.gmra.mxu0 %v423
        %v1059 = vpop.f32.mrf.mxu0
        %v1060 = vadd.f32 %v344, %v1059
        %v1061 = vpop.f32.mrf.mxu0
        %v1062 = vadd.f32 %v344, %v1061
        %1063 = vmatmul.bf16.gmra.mxu0 %v424
        %v1064 = vpop.f32.mrf.mxu0
        %v1065 = vadd.f32 %v344, %v1064
        %v1066 = vpop.f32.mrf.mxu0
        %v1067 = vadd.f32 %v344, %v1066
        %1068 = vmatmul.bf16.gmra.mxu0 %v425
        %v1069 = vpop.f32.mrf.mxu0
        %v1070 = vadd.f32 %v344, %v1069
        %v1071 = vpop.f32.mrf.mxu0
        %v1072 = vadd.f32 %v344, %v1071
        %1073 = vmatmul.bf16.gmra.mxu0 %v426
        %v1074 = vpop.f32.mrf.mxu0
        %v1075 = vadd.f32 %v344, %v1074
        %v1076 = vpop.f32.mrf.mxu0
        %v1077 = vadd.f32 %v344, %v1076
        %1078 = vmatmul.bf16.gmra.mxu0 %v427
        %v1079 = vpop.f32.mrf.mxu0
        %v1080 = vadd.f32 %v344, %v1079
        %v1081 = vpop.f32.mrf.mxu0
        %v1082 = vadd.f32 %v344, %v1081
        %1083 = vmatmul.bf16.gmra.mxu0 %v428
        %v1084 = vpop.f32.mrf.mxu0
        %v1085 = vadd.f32 %v344, %v1084
        %v1086 = vpop.f32.mrf.mxu0
        %v1087 = vadd.f32 %v344, %v1086
        %1088 = vmatmul.bf16.gmra.mxu0 %v429
        %v1089 = vpop.f32.mrf.mxu0
        %v1090 = vadd.f32 %v344, %v1089
        %v1091 = vpop.f32.mrf.mxu0
        %v1092 = vadd.f32 %v344, %v1091
        %1093 = vmatmul.bf16.gmra.mxu0 %v430
        %v1094 = vpop.f32.mrf.mxu0
        %v1095 = vadd.f32 %v344, %v1094
        %v1096 = vpop.f32.mrf.mxu0
        %v1097 = vadd.f32 %v344, %v1096
        %1098 = vmatmul.bf16.gmra.mxu0 %v431
        %v1099 = vpop.f32.mrf.mxu0
        %v1100 = vadd.f32 %v344, %v1099
        %v1101 = vpop.f32.mrf.mxu0
        %v1102 = vadd.f32 %v344, %v1101
        %1103 = vmatmul.bf16.gmra.mxu0 %v432
        %v1104 = vpop.f32.mrf.mxu0
        %v1105 = vadd.f32 %v344, %v1104
        %v1106 = vpop.f32.mrf.mxu0
        %v1107 = vadd.f32 %v344, %v1106
        %1108 = vmatmul.bf16.gmra.mxu0 %v433
        %v1109 = vpop.f32.mrf.mxu0
        %v1110 = vadd.f32 %v344, %v1109
        %v1111 = vpop.f32.mrf.mxu0
        %v1112 = vadd.f32 %v344, %v1111
        %1113 = vmatmul.bf16.gmra.mxu0 %v434
        %v1114 = vpop.f32.mrf.mxu0
        %v1115 = vadd.f32 %v344, %v1114
        %v1116 = vpop.f32.mrf.mxu0
        %v1117 = vadd.f32 %v344, %v1116
        %1118 = vmatmul.bf16.gmra.mxu0 %v435
        %v1119 = vpop.f32.mrf.mxu0
        %v1120 = vadd.f32 %v344, %v1119
        %v1121 = vpop.f32.mrf.mxu0
        %v1122 = vadd.f32 %v344, %v1121
        %1123 = vmatmul.bf16.gmra.mxu0 %v436
        %v1124 = vpop.f32.mrf.mxu0
        %v1125 = vadd.f32 %v344, %v1124
        %v1126 = vpop.f32.mrf.mxu0
        %v1127 = vadd.f32 %v344, %v1126
        %1128 = vdwg.mxu0
        %1129 = vmatpush.bf16.msra.mxu0 %v705
        %1130 = vmatpush.bf16.msra.mxu0 %v697
        %1131 = vmatpush.bf16.msra.mxu0 %v689
        %1132 = vmatpush.bf16.msra.mxu0 %v681
        %1133 = vmatpush.bf16.msra.mxu0 %v673
        %1134 = vmatpush.bf16.msra.mxu0 %v665
        %1135 = vmatpush.bf16.msra.mxu0 %v657
        %1136 = vmatpush.bf16.msra.mxu0 %v649
        %1137 = vmatmul.bf16.gmra.mxu0 %v421
        %v1138 = vpop.f32.mrf.mxu0
        %v1139 = vadd.f32 %v345, %v1138
        %v1140 = vpop.f32.mrf.mxu0
        %v1141 = vadd.f32 %v345, %v1140
        %1142 = vmatmul.bf16.gmra.mxu0 %v422
        %v1143 = vpop.f32.mrf.mxu0
        %v1144 = vadd.f32 %v345, %v1143
        %v1145 = vpop.f32.mrf.mxu0
        %v1146 = vadd.f32 %v345, %v1145
        %1147 = vmatmul.bf16.gmra.mxu0 %v423
        %v1148 = vpop.f32.mrf.mxu0
        %v1149 = vadd.f32 %v345, %v1148
        %v1150 = vpop.f32.mrf.mxu0
        %v1151 = vadd.f32 %v345, %v1150
        %1152 = vmatmul.bf16.gmra.mxu0 %v424
        %v1153 = vpop.f32.mrf.mxu0
        %v1154 = vadd.f32 %v345, %v1153
        %v1155 = vpop.f32.mrf.mxu0
        %v1156 = vadd.f32 %v345, %v1155
        %1157 = vmatmul.bf16.gmra.mxu0 %v425
        %v1158 = vpop.f32.mrf.mxu0
        %v1159 = vadd.f32 %v345, %v1158
        %v1160 = vpop.f32.mrf.mxu0
        %v1161 = vadd.f32 %v345, %v1160
        %1162 = vmatmul.bf16.gmra.mxu0 %v426
        %v1163 = vpop.f32.mrf.mxu0
        %v1164 = vadd.f32 %v345, %v1163
        %v1165 = vpop.f32.mrf.mxu0
        %v1166 = vadd.f32 %v345, %v1165
        %1167 = vmatmul.bf16.gmra.mxu0 %v427
        %v1168 = vpop.f32.mrf.mxu0
        %v1169 = vadd.f32 %v345, %v1168
        %v1170 = vpop.f32.mrf.mxu0
        %v1171 = vadd.f32 %v345, %v1170
        %1172 = vmatmul.bf16.gmra.mxu0 %v428
        %v1173 = vpop.f32.mrf.mxu0
        %v1174 = vadd.f32 %v345, %v1173
        %v1175 = vpop.f32.mrf.mxu0
        %v1176 = vadd.f32 %v345, %v1175
        %1177 = vmatmul.bf16.gmra.mxu0 %v429
        %v1178 = vpop.f32.mrf.mxu0
        %v1179 = vadd.f32 %v345, %v1178
        %v1180 = vpop.f32.mrf.mxu0
        %v1181 = vadd.f32 %v345, %v1180
        %1182 = vmatmul.bf16.gmra.mxu0 %v430
        %v1183 = vpop.f32.mrf.mxu0
        %v1184 = vadd.f32 %v345, %v1183
        %v1185 = vpop.f32.mrf.mxu0
        %v1186 = vadd.f32 %v345, %v1185
        %1187 = vmatmul.bf16.gmra.mxu0 %v431
        %v1188 = vpop.f32.mrf.mxu0
        %v1189 = vadd.f32 %v345, %v1188
        %v1190 = vpop.f32.mrf.mxu0
        %v1191 = vadd.f32 %v345, %v1190
        %1192 = vmatmul.bf16.gmra.mxu0 %v432
        %v1193 = vpop.f32.mrf.mxu0
        %v1194 = vadd.f32 %v345, %v1193
        %v1195 = vpop.f32.mrf.mxu0
        %v1196 = vadd.f32 %v345, %v1195
        %1197 = vmatmul.bf16.gmra.mxu0 %v433
        %v1198 = vpop.f32.mrf.mxu0
        %v1199 = vadd.f32 %v345, %v1198
        %v1200 = vpop.f32.mrf.mxu0
        %v1201 = vadd.f32 %v345, %v1200
        %1202 = vmatmul.bf16.gmra.mxu0 %v434
        %v1203 = vpop.f32.mrf.mxu0
        %v1204 = vadd.f32 %v345, %v1203
        %v1205 = vpop.f32.mrf.mxu0
        %v1206 = vadd.f32 %v345, %v1205
        %1207 = vmatmul.bf16.gmra.mxu0 %v435
        %v1208 = vpop.f32.mrf.mxu0
        %v1209 = vadd.f32 %v345, %v1208
        %v1210 = vpop.f32.mrf.mxu0
        %v1211 = vadd.f32 %v345, %v1210
        %1212 = vmatmul.bf16.gmra.mxu0 %v436
        %v1213 = vpop.f32.mrf.mxu0
        %v1214 = vadd.f32 %v345, %v1213
        %v1215 = vpop.f32.mrf.mxu0
        %v1216 = vadd.f32 %v345, %v1215
        %1217 = vdwg.mxu0
        %1218 = vmatpush.bf16.msra.mxu0 %v706
        %1219 = vmatpush.bf16.msra.mxu0 %v698
        %1220 = vmatpush.bf16.msra.mxu0 %v690
        %1221 = vmatpush.bf16.msra.mxu0 %v682
        %1222 = vmatpush.bf16.msra.mxu0 %v674
        %1223 = vmatpush.bf16.msra.mxu0 %v666
        %1224 = vmatpush.bf16.msra.mxu0 %v658
        %1225 = vmatpush.bf16.msra.mxu0 %v650
        %1226 = vmatmul.bf16.gmra.mxu0 %v421
        %v1227 = vpop.f32.mrf.mxu0
        %v1228 = vadd.f32 %v346, %v1227
        %v1229 = vpop.f32.mrf.mxu0
        %v1230 = vadd.f32 %v346, %v1229
        %1231 = vmatmul.bf16.gmra.mxu0 %v422
        %v1232 = vpop.f32.mrf.mxu0
        %v1233 = vadd.f32 %v346, %v1232
        %v1234 = vpop.f32.mrf.mxu0
        %v1235 = vadd.f32 %v346, %v1234
        %1236 = vmatmul.bf16.gmra.mxu0 %v423
        %v1237 = vpop.f32.mrf.mxu0
        %v1238 = vadd.f32 %v346, %v1237
        %v1239 = vpop.f32.mrf.mxu0
        %v1240 = vadd.f32 %v346, %v1239
        %1241 = vmatmul.bf16.gmra.mxu0 %v424
        %v1242 = vpop.f32.mrf.mxu0
        %v1243 = vadd.f32 %v346, %v1242
        %v1244 = vpop.f32.mrf.mxu0
        %v1245 = vadd.f32 %v346, %v1244
        %1246 = vmatmul.bf16.gmra.mxu0 %v425
        %v1247 = vpop.f32.mrf.mxu0
        %v1248 = vadd.f32 %v346, %v1247
        %v1249 = vpop.f32.mrf.mxu0
        %v1250 = vadd.f32 %v346, %v1249
        %1251 = vmatmul.bf16.gmra.mxu0 %v426
        %v1252 = vpop.f32.mrf.mxu0
        %v1253 = vadd.f32 %v346, %v1252
        %v1254 = vpop.f32.mrf.mxu0
        %v1255 = vadd.f32 %v346, %v1254
        %1256 = vmatmul.bf16.gmra.mxu0 %v427
        %v1257 = vpop.f32.mrf.mxu0
        %v1258 = vadd.f32 %v346, %v1257
        %v1259 = vpop.f32.mrf.mxu0
        %v1260 = vadd.f32 %v346, %v1259
        %1261 = vmatmul.bf16.gmra.mxu0 %v428
        %v1262 = vpop.f32.mrf.mxu0
        %v1263 = vadd.f32 %v346, %v1262
        %v1264 = vpop.f32.mrf.mxu0
        %v1265 = vadd.f32 %v346, %v1264
        %1266 = vmatmul.bf16.gmra.mxu0 %v429
        %v1267 = vpop.f32.mrf.mxu0
        %v1268 = vadd.f32 %v346, %v1267
        %v1269 = vpop.f32.mrf.mxu0
        %v1270 = vadd.f32 %v346, %v1269
        %1271 = vmatmul.bf16.gmra.mxu0 %v430
        %v1272 = vpop.f32.mrf.mxu0
        %v1273 = vadd.f32 %v346, %v1272
        %v1274 = vpop.f32.mrf.mxu0
        %v1275 = vadd.f32 %v346, %v1274
        %1276 = vmatmul.bf16.gmra.mxu0 %v431
        %v1277 = vpop.f32.mrf.mxu0
        %v1278 = vadd.f32 %v346, %v1277
        %v1279 = vpop.f32.mrf.mxu0
        %v1280 = vadd.f32 %v346, %v1279
        %1281 = vmatmul.bf16.gmra.mxu0 %v432
        %v1282 = vpop.f32.mrf.mxu0
        %v1283 = vadd.f32 %v346, %v1282
        %v1284 = vpop.f32.mrf.mxu0
        %v1285 = vadd.f32 %v346, %v1284
        %1286 = vmatmul.bf16.gmra.mxu0 %v433
        %v1287 = vpop.f32.mrf.mxu0
        %v1288 = vadd.f32 %v346, %v1287
        %v1289 = vpop.f32.mrf.mxu0
        %v1290 = vadd.f32 %v346, %v1289
        %1291 = vmatmul.bf16.gmra.mxu0 %v434
        %v1292 = vpop.f32.mrf.mxu0
        %v1293 = vadd.f32 %v346, %v1292
        %v1294 = vpop.f32.mrf.mxu0
        %v1295 = vadd.f32 %v346, %v1294
        %1296 = vmatmul.bf16.gmra.mxu0 %v435
        %v1297 = vpop.f32.mrf.mxu0
        %v1298 = vadd.f32 %v346, %v1297
        %v1299 = vpop.f32.mrf.mxu0
        %v1300 = vadd.f32 %v346, %v1299
        %1301 = vmatmul.bf16.gmra.mxu0 %v436
        %v1302 = vpop.f32.mrf.mxu0
        %v1303 = vadd.f32 %v346, %v1302
        %v1304 = vpop.f32.mrf.mxu0
        %v1305 = vadd.f32 %v346, %v1304
        %1306 = vdwg.mxu0
        %1307 = vmatpush.bf16.msra.mxu0 %v707
        %1308 = vmatpush.bf16.msra.mxu0 %v699
        %1309 = vmatpush.bf16.msra.mxu0 %v691
        %1310 = vmatpush.bf16.msra.mxu0 %v683
        %1311 = vmatpush.bf16.msra.mxu0 %v675
        %1312 = vmatpush.bf16.msra.mxu0 %v667
        %1313 = vmatpush.bf16.msra.mxu0 %v659
        %1314 = vmatpush.bf16.msra.mxu0 %v651
        %1315 = vmatmul.bf16.gmra.mxu0 %v421
        %v1316 = vpop.f32.mrf.mxu0
        %v1317 = vadd.f32 %v347, %v1316
        %v1318 = vpop.f32.mrf.mxu0
        %v1319 = vadd.f32 %v347, %v1318
        %1320 = vmatmul.bf16.gmra.mxu0 %v422
        %v1321 = vpop.f32.mrf.mxu0
        %v1322 = vadd.f32 %v347, %v1321
        %v1323 = vpop.f32.mrf.mxu0
        %v1324 = vadd.f32 %v347, %v1323
        %1325 = vmatmul.bf16.gmra.mxu0 %v423
        %v1326 = vpop.f32.mrf.mxu0
        %v1327 = vadd.f32 %v347, %v1326
        %v1328 = vpop.f32.mrf.mxu0
        %v1329 = vadd.f32 %v347, %v1328
        %1330 = vmatmul.bf16.gmra.mxu0 %v424
        %v1331 = vpop.f32.mrf.mxu0
        %v1332 = vadd.f32 %v347, %v1331
        %v1333 = vpop.f32.mrf.mxu0
        %v1334 = vadd.f32 %v347, %v1333
        %1335 = vmatmul.bf16.gmra.mxu0 %v425
        %v1336 = vpop.f32.mrf.mxu0
        %v1337 = vadd.f32 %v347, %v1336
        %v1338 = vpop.f32.mrf.mxu0
        %v1339 = vadd.f32 %v347, %v1338
        %1340 = vmatmul.bf16.gmra.mxu0 %v426
        %v1341 = vpop.f32.mrf.mxu0
        %v1342 = vadd.f32 %v347, %v1341
        %v1343 = vpop.f32.mrf.mxu0
        %v1344 = vadd.f32 %v347, %v1343
        %1345 = vmatmul.bf16.gmra.mxu0 %v427
        %v1346 = vpop.f32.mrf.mxu0
        %v1347 = vadd.f32 %v347, %v1346
        %v1348 = vpop.f32.mrf.mxu0
        %v1349 = vadd.f32 %v347, %v1348
        %1350 = vmatmul.bf16.gmra.mxu0 %v428
        %v1351 = vpop.f32.mrf.mxu0
        %v1352 = vadd.f32 %v347, %v1351
        %v1353 = vpop.f32.mrf.mxu0
        %v1354 = vadd.f32 %v347, %v1353
        %1355 = vmatmul.bf16.gmra.mxu0 %v429
        %v1356 = vpop.f32.mrf.mxu0
        %v1357 = vadd.f32 %v347, %v1356
        %v1358 = vpop.f32.mrf.mxu0
        %v1359 = vadd.f32 %v347, %v1358
        %1360 = vmatmul.bf16.gmra.mxu0 %v430
        %v1361 = vpop.f32.mrf.mxu0
        %v1362 = vadd.f32 %v347, %v1361
        %v1363 = vpop.f32.mrf.mxu0
        %v1364 = vadd.f32 %v347, %v1363
        %1365 = vmatmul.bf16.gmra.mxu0 %v431
        %v1366 = vpop.f32.mrf.mxu0
        %v1367 = vadd.f32 %v347, %v1366
        %v1368 = vpop.f32.mrf.mxu0
        %v1369 = vadd.f32 %v347, %v1368
        %1370 = vmatmul.bf16.gmra.mxu0 %v432
        %v1371 = vpop.f32.mrf.mxu0
        %v1372 = vadd.f32 %v347, %v1371
        %v1373 = vpop.f32.mrf.mxu0
        %v1374 = vadd.f32 %v347, %v1373
        %1375 = vmatmul.bf16.gmra.mxu0 %v433
        %v1376 = vpop.f32.mrf.mxu0
        %v1377 = vadd.f32 %v347, %v1376
        %v1378 = vpop.f32.mrf.mxu0
        %v1379 = vadd.f32 %v347, %v1378
        %1380 = vmatmul.bf16.gmra.mxu0 %v434
        %v1381 = vpop.f32.mrf.mxu0
        %v1382 = vadd.f32 %v347, %v1381
        %v1383 = vpop.f32.mrf.mxu0
        %v1384 = vadd.f32 %v347, %v1383
        %1385 = vmatmul.bf16.gmra.mxu0 %v435
        %v1386 = vpop.f32.mrf.mxu0
        %v1387 = vadd.f32 %v347, %v1386
        %v1388 = vpop.f32.mrf.mxu0
        %v1389 = vadd.f32 %v347, %v1388
        %1390 = vmatmul.bf16.gmra.mxu0 %v436
        %v1391 = vpop.f32.mrf.mxu0
        %v1392 = vadd.f32 %v347, %v1391
        %v1393 = vpop.f32.mrf.mxu0
        %v1394 = vadd.f32 %v347, %v1393
        %1395 = vdwg.mxu0
        %1396 = vmatpush.bf16.msra.mxu0 %v708
        %1397 = vmatpush.bf16.msra.mxu0 %v700
        %1398 = vmatpush.bf16.msra.mxu0 %v692
        %1399 = vmatpush.bf16.msra.mxu0 %v684
        %1400 = vmatpush.bf16.msra.mxu0 %v676
        %1401 = vmatpush.bf16.msra.mxu0 %v668
        %1402 = vmatpush.bf16.msra.mxu0 %v660
        %1403 = vmatpush.bf16.msra.mxu0 %v652
        %1404 = vmatmul.bf16.gmra.mxu0 %v421
        %v1405 = vpop.f32.mrf.mxu0
        %v1406 = vadd.f32 %v348, %v1405
        %v1407 = vpop.f32.mrf.mxu0
        %v1408 = vadd.f32 %v348, %v1407
        %1409 = vmatmul.bf16.gmra.mxu0 %v422
        %v1410 = vpop.f32.mrf.mxu0
        %v1411 = vadd.f32 %v348, %v1410
        %v1412 = vpop.f32.mrf.mxu0
        %v1413 = vadd.f32 %v348, %v1412
        %1414 = vmatmul.bf16.gmra.mxu0 %v423
        %v1415 = vpop.f32.mrf.mxu0
        %v1416 = vadd.f32 %v348, %v1415
        %v1417 = vpop.f32.mrf.mxu0
        %v1418 = vadd.f32 %v348, %v1417
        %1419 = vmatmul.bf16.gmra.mxu0 %v424
        %v1420 = vpop.f32.mrf.mxu0
        %v1421 = vadd.f32 %v348, %v1420
        %v1422 = vpop.f32.mrf.mxu0
        %v1423 = vadd.f32 %v348, %v1422
        %1424 = vmatmul.bf16.gmra.mxu0 %v425
        %v1425 = vpop.f32.mrf.mxu0
        %v1426 = vadd.f32 %v348, %v1425
        %v1427 = vpop.f32.mrf.mxu0
        %v1428 = vadd.f32 %v348, %v1427
        %1429 = vmatmul.bf16.gmra.mxu0 %v426
        %v1430 = vpop.f32.mrf.mxu0
        %v1431 = vadd.f32 %v348, %v1430
        %v1432 = vpop.f32.mrf.mxu0
        %v1433 = vadd.f32 %v348, %v1432
        %1434 = vmatmul.bf16.gmra.mxu0 %v427
        %v1435 = vpop.f32.mrf.mxu0
        %v1436 = vadd.f32 %v348, %v1435
        %v1437 = vpop.f32.mrf.mxu0
        %v1438 = vadd.f32 %v348, %v1437
        %1439 = vmatmul.bf16.gmra.mxu0 %v428
        %v1440 = vpop.f32.mrf.mxu0
        %v1441 = vadd.f32 %v348, %v1440
        %v1442 = vpop.f32.mrf.mxu0
        %v1443 = vadd.f32 %v348, %v1442
        %1444 = vmatmul.bf16.gmra.mxu0 %v429
        %v1445 = vpop.f32.mrf.mxu0
        %v1446 = vadd.f32 %v348, %v1445
        %v1447 = vpop.f32.mrf.mxu0
        %v1448 = vadd.f32 %v348, %v1447
        %1449 = vmatmul.bf16.gmra.mxu0 %v430
        %v1450 = vpop.f32.mrf.mxu0
        %v1451 = vadd.f32 %v348, %v1450
        %v1452 = vpop.f32.mrf.mxu0
        %v1453 = vadd.f32 %v348, %v1452
        %1454 = vmatmul.bf16.gmra.mxu0 %v431
        %v1455 = vpop.f32.mrf.mxu0
        %v1456 = vadd.f32 %v348, %v1455
        %v1457 = vpop.f32.mrf.mxu0
        %v1458 = vadd.f32 %v348, %v1457
        %1459 = vmatmul.bf16.gmra.mxu0 %v432
        %v1460 = vpop.f32.mrf.mxu0
        %v1461 = vadd.f32 %v348, %v1460
        %v1462 = vpop.f32.mrf.mxu0
        %v1463 = vadd.f32 %v348, %v1462
        %1464 = vmatmul.bf16.gmra.mxu0 %v433
        %v1465 = vpop.f32.mrf.mxu0
        %v1466 = vadd.f32 %v348, %v1465
        %v1467 = vpop.f32.mrf.mxu0
        %v1468 = vadd.f32 %v348, %v1467
        %1469 = vmatmul.bf16.gmra.mxu0 %v434
        %v1470 = vpop.f32.mrf.mxu0
        %v1471 = vadd.f32 %v348, %v1470
        %v1472 = vpop.f32.mrf.mxu0
        %v1473 = vadd.f32 %v348, %v1472
        %1474 = vmatmul.bf16.gmra.mxu0 %v435
        %v1475 = vpop.f32.mrf.mxu0
        %v1476 = vadd.f32 %v348, %v1475
        %v1477 = vpop.f32.mrf.mxu0
        %v1478 = vadd.f32 %v348, %v1477
        %1479 = vmatmul.bf16.gmra.mxu0 %v436
        %v1480 = vpop.f32.mrf.mxu0
        %v1481 = vadd.f32 %v348, %v1480
        %v1482 = vpop.f32.mrf.mxu0
        %v1483 = vadd.f32 %v348, %v1482
        %1484 = vdwg.mxu0
        %v1485 = vmax.f32 %v783, 0.0
        %v1486 = vmax.f32 %v872, 0.0
        %v1487 = vmax.f32 %v961, 0.0
        %v1488 = vmax.f32 %v1050, 0.0
        %v1489 = vmax.f32 %v1139, 0.0
        %v1490 = vmax.f32 %v1228, 0.0
        %v1491 = vmax.f32 %v1317, 0.0
        %v1492 = vmax.f32 %v1406, 0.0
        %v1493 = vmax.f32 %v785, 0.0
        %v1494 = vmax.f32 %v874, 0.0
        %v1495 = vmax.f32 %v963, 0.0
        %v1496 = vmax.f32 %v1052, 0.0
        %v1497 = vmax.f32 %v1141, 0.0
        %v1498 = vmax.f32 %v1230, 0.0
        %v1499 = vmax.f32 %v1319, 0.0
        %v1500 = vmax.f32 %v1408, 0.0
        %v1501 = vmax.f32 %v788, 0.0
        %v1502 = vmax.f32 %v877, 0.0
        %v1503 = vmax.f32 %v966, 0.0
        %v1504 = vmax.f32 %v1055, 0.0
        %v1505 = vmax.f32 %v1144, 0.0
        %v1506 = vmax.f32 %v1233, 0.0
        %v1507 = vmax.f32 %v1322, 0.0
        %v1508 = vmax.f32 %v1411, 0.0
        %v1509 = vmax.f32 %v790, 0.0
        %v1510 = vmax.f32 %v879, 0.0
        %v1511 = vmax.f32 %v968, 0.0
        %v1512 = vmax.f32 %v1057, 0.0
        %v1513 = vmax.f32 %v1146, 0.0
        %v1514 = vmax.f32 %v1235, 0.0
        %v1515 = vmax.f32 %v1324, 0.0
        %v1516 = vmax.f32 %v1413, 0.0
        %v1517 = vmax.f32 %v793, 0.0
        %v1518 = vmax.f32 %v882, 0.0
        %v1519 = vmax.f32 %v971, 0.0
        %v1520 = vmax.f32 %v1060, 0.0
        %v1521 = vmax.f32 %v1149, 0.0
        %v1522 = vmax.f32 %v1238, 0.0
        %v1523 = vmax.f32 %v1327, 0.0
        %v1524 = vmax.f32 %v1416, 0.0
        %v1525 = vmax.f32 %v795, 0.0
        %v1526 = vmax.f32 %v884, 0.0
        %v1527 = vmax.f32 %v973, 0.0
        %v1528 = vmax.f32 %v1062, 0.0
        %v1529 = vmax.f32 %v1151, 0.0
        %v1530 = vmax.f32 %v1240, 0.0
        %v1531 = vmax.f32 %v1329, 0.0
        %v1532 = vmax.f32 %v1418, 0.0
        %v1533 = vmax.f32 %v798, 0.0
        %v1534 = vmax.f32 %v887, 0.0
        %v1535 = vmax.f32 %v976, 0.0
        %v1536 = vmax.f32 %v1065, 0.0
        %v1537 = vmax.f32 %v1154, 0.0
        %v1538 = vmax.f32 %v1243, 0.0
        %v1539 = vmax.f32 %v1332, 0.0
        %v1540 = vmax.f32 %v1421, 0.0
        %v1541 = vmax.f32 %v800, 0.0
        %v1542 = vmax.f32 %v889, 0.0
        %v1543 = vmax.f32 %v978, 0.0
        %v1544 = vmax.f32 %v1067, 0.0
        %v1545 = vmax.f32 %v1156, 0.0
        %v1546 = vmax.f32 %v1245, 0.0
        %v1547 = vmax.f32 %v1334, 0.0
        %v1548 = vmax.f32 %v1423, 0.0
        %v1549 = vmax.f32 %v803, 0.0
        %v1550 = vmax.f32 %v892, 0.0
        %v1551 = vmax.f32 %v981, 0.0
        %v1552 = vmax.f32 %v1070, 0.0
        %v1553 = vmax.f32 %v1159, 0.0
        %v1554 = vmax.f32 %v1248, 0.0
        %v1555 = vmax.f32 %v1337, 0.0
        %v1556 = vmax.f32 %v1426, 0.0
        %v1557 = vmax.f32 %v805, 0.0
        %v1558 = vmax.f32 %v894, 0.0
        %v1559 = vmax.f32 %v983, 0.0
        %v1560 = vmax.f32 %v1072, 0.0
        %v1561 = vmax.f32 %v1161, 0.0
        %v1562 = vmax.f32 %v1250, 0.0
        %v1563 = vmax.f32 %v1339, 0.0
        %v1564 = vmax.f32 %v1428, 0.0
        %v1565 = vmax.f32 %v808, 0.0
        %v1566 = vmax.f32 %v897, 0.0
        %v1567 = vmax.f32 %v986, 0.0
        %v1568 = vmax.f32 %v1075, 0.0
        %v1569 = vmax.f32 %v1164, 0.0
        %v1570 = vmax.f32 %v1253, 0.0
        %v1571 = vmax.f32 %v1342, 0.0
        %v1572 = vmax.f32 %v1431, 0.0
        %v1573 = vmax.f32 %v810, 0.0
        %v1574 = vmax.f32 %v899, 0.0
        %v1575 = vmax.f32 %v988, 0.0
        %v1576 = vmax.f32 %v1077, 0.0
        %v1577 = vmax.f32 %v1166, 0.0
        %v1578 = vmax.f32 %v1255, 0.0
        %v1579 = vmax.f32 %v1344, 0.0
        %v1580 = vmax.f32 %v1433, 0.0
        %v1581 = vmax.f32 %v813, 0.0
        %v1582 = vmax.f32 %v902, 0.0
        %v1583 = vmax.f32 %v991, 0.0
        %v1584 = vmax.f32 %v1080, 0.0
        %v1585 = vmax.f32 %v1169, 0.0
        %v1586 = vmax.f32 %v1258, 0.0
        %v1587 = vmax.f32 %v1347, 0.0
        %v1588 = vmax.f32 %v1436, 0.0
        %v1589 = vmax.f32 %v815, 0.0
        %v1590 = vmax.f32 %v904, 0.0
        %v1591 = vmax.f32 %v993, 0.0
        %v1592 = vmax.f32 %v1082, 0.0
        %v1593 = vmax.f32 %v1171, 0.0
        %v1594 = vmax.f32 %v1260, 0.0
        %v1595 = vmax.f32 %v1349, 0.0
        %v1596 = vmax.f32 %v1438, 0.0
        %v1597 = vmax.f32 %v818, 0.0
        %v1598 = vmax.f32 %v907, 0.0
        %v1599 = vmax.f32 %v996, 0.0
        %v1600 = vmax.f32 %v1085, 0.0
        %v1601 = vmax.f32 %v1174, 0.0
        %v1602 = vmax.f32 %v1263, 0.0
        %v1603 = vmax.f32 %v1352, 0.0
        %v1604 = vmax.f32 %v1441, 0.0
        %v1605 = vmax.f32 %v820, 0.0
        %v1606 = vmax.f32 %v909, 0.0
        %v1607 = vmax.f32 %v998, 0.0
        %v1608 = vmax.f32 %v1087, 0.0
        %v1609 = vmax.f32 %v1176, 0.0
        %v1610 = vmax.f32 %v1265, 0.0
        %v1611 = vmax.f32 %v1354, 0.0
        %v1612 = vmax.f32 %v1443, 0.0
        %v1613 = vmax.f32 %v823, 0.0
        %v1614 = vmax.f32 %v912, 0.0
        %v1615 = vmax.f32 %v1001, 0.0
        %v1616 = vmax.f32 %v1090, 0.0
        %v1617 = vmax.f32 %v1179, 0.0
        %v1618 = vmax.f32 %v1268, 0.0
        %v1619 = vmax.f32 %v1357, 0.0
        %v1620 = vmax.f32 %v1446, 0.0
        %v1621 = vmax.f32 %v825, 0.0
        %v1622 = vmax.f32 %v914, 0.0
        %v1623 = vmax.f32 %v1003, 0.0
        %v1624 = vmax.f32 %v1092, 0.0
        %v1625 = vmax.f32 %v1181, 0.0
        %v1626 = vmax.f32 %v1270, 0.0
        %v1627 = vmax.f32 %v1359, 0.0
        %v1628 = vmax.f32 %v1448, 0.0
        %v1629 = vmax.f32 %v828, 0.0
        %v1630 = vmax.f32 %v917, 0.0
        %v1631 = vmax.f32 %v1006, 0.0
        %v1632 = vmax.f32 %v1095, 0.0
        %v1633 = vmax.f32 %v1184, 0.0
        %v1634 = vmax.f32 %v1273, 0.0
        %v1635 = vmax.f32 %v1362, 0.0
        %v1636 = vmax.f32 %v1451, 0.0
        %v1637 = vmax.f32 %v830, 0.0
        %v1638 = vmax.f32 %v919, 0.0
        %v1639 = vmax.f32 %v1008, 0.0
        %v1640 = vmax.f32 %v1097, 0.0
        %v1641 = vmax.f32 %v1186, 0.0
        %v1642 = vmax.f32 %v1275, 0.0
        %v1643 = vmax.f32 %v1364, 0.0
        %v1644 = vmax.f32 %v1453, 0.0
        %v1645 = vmax.f32 %v833, 0.0
        %v1646 = vmax.f32 %v922, 0.0
        %v1647 = vmax.f32 %v1011, 0.0
        %v1648 = vmax.f32 %v1100, 0.0
        %v1649 = vmax.f32 %v1189, 0.0
        %v1650 = vmax.f32 %v1278, 0.0
        %v1651 = vmax.f32 %v1367, 0.0
        %v1652 = vmax.f32 %v1456, 0.0
        %v1653 = vmax.f32 %v835, 0.0
        %v1654 = vmax.f32 %v924, 0.0
        %v1655 = vmax.f32 %v1013, 0.0
        %v1656 = vmax.f32 %v1102, 0.0
        %v1657 = vmax.f32 %v1191, 0.0
        %v1658 = vmax.f32 %v1280, 0.0
        %v1659 = vmax.f32 %v1369, 0.0
        %v1660 = vmax.f32 %v1458, 0.0
        %v1661 = vmax.f32 %v838, 0.0
        %v1662 = vmax.f32 %v927, 0.0
        %v1663 = vmax.f32 %v1016, 0.0
        %v1664 = vmax.f32 %v1105, 0.0
        %v1665 = vmax.f32 %v1194, 0.0
        %v1666 = vmax.f32 %v1283, 0.0
        %v1667 = vmax.f32 %v1372, 0.0
        %v1668 = vmax.f32 %v1461, 0.0
        %v1669 = vmax.f32 %v840, 0.0
        %v1670 = vmax.f32 %v929, 0.0
        %v1671 = vmax.f32 %v1018, 0.0
        %v1672 = vmax.f32 %v1107, 0.0
        %v1673 = vmax.f32 %v1196, 0.0
        %v1674 = vmax.f32 %v1285, 0.0
        %v1675 = vmax.f32 %v1374, 0.0
        %v1676 = vmax.f32 %v1463, 0.0
        %v1677 = vmax.f32 %v843, 0.0
        %v1678 = vmax.f32 %v932, 0.0
        %v1679 = vmax.f32 %v1021, 0.0
        %v1680 = vmax.f32 %v1110, 0.0
        %v1681 = vmax.f32 %v1199, 0.0
        %v1682 = vmax.f32 %v1288, 0.0
        %v1683 = vmax.f32 %v1377, 0.0
        %v1684 = vmax.f32 %v1466, 0.0
        %v1685 = vmax.f32 %v845, 0.0
        %v1686 = vmax.f32 %v934, 0.0
        %v1687 = vmax.f32 %v1023, 0.0
        %v1688 = vmax.f32 %v1112, 0.0
        %v1689 = vmax.f32 %v1201, 0.0
        %v1690 = vmax.f32 %v1290, 0.0
        %v1691 = vmax.f32 %v1379, 0.0
        %v1692 = vmax.f32 %v1468, 0.0
        %v1693 = vmax.f32 %v848, 0.0
        %v1694 = vmax.f32 %v937, 0.0
        %v1695 = vmax.f32 %v1026, 0.0
        %v1696 = vmax.f32 %v1115, 0.0
        %v1697 = vmax.f32 %v1204, 0.0
        %v1698 = vmax.f32 %v1293, 0.0
        %v1699 = vmax.f32 %v1382, 0.0
        %v1700 = vmax.f32 %v1471, 0.0
        %v1701 = vmax.f32 %v850, 0.0
        %v1702 = vmax.f32 %v939, 0.0
        %v1703 = vmax.f32 %v1028, 0.0
        %v1704 = vmax.f32 %v1117, 0.0
        %v1705 = vmax.f32 %v1206, 0.0
        %v1706 = vmax.f32 %v1295, 0.0
        %v1707 = vmax.f32 %v1384, 0.0
        %v1708 = vmax.f32 %v1473, 0.0
        %v1709 = vmax.f32 %v853, 0.0
        %v1710 = vmax.f32 %v942, 0.0
        %v1711 = vmax.f32 %v1031, 0.0
        %v1712 = vmax.f32 %v1120, 0.0
        %v1713 = vmax.f32 %v1209, 0.0
        %v1714 = vmax.f32 %v1298, 0.0
        %v1715 = vmax.f32 %v1387, 0.0
        %v1716 = vmax.f32 %v1476, 0.0
        %v1717 = vmax.f32 %v855, 0.0
        %v1718 = vmax.f32 %v944, 0.0
        %v1719 = vmax.f32 %v1033, 0.0
        %v1720 = vmax.f32 %v1122, 0.0
        %v1721 = vmax.f32 %v1211, 0.0
        %v1722 = vmax.f32 %v1300, 0.0
        %v1723 = vmax.f32 %v1389, 0.0
        %v1724 = vmax.f32 %v1478, 0.0
        %v1725 = vmax.f32 %v858, 0.0
        %v1726 = vmax.f32 %v947, 0.0
        %v1727 = vmax.f32 %v1036, 0.0
        %v1728 = vmax.f32 %v1125, 0.0
        %v1729 = vmax.f32 %v1214, 0.0
        %v1730 = vmax.f32 %v1303, 0.0
        %v1731 = vmax.f32 %v1392, 0.0
        %v1732 = vmax.f32 %v1481, 0.0
        %v1733 = vmax.f32 %v860, 0.0
        %v1734 = vmax.f32 %v949, 0.0
        %v1735 = vmax.f32 %v1038, 0.0
        %v1736 = vmax.f32 %v1127, 0.0
        %v1737 = vmax.f32 %v1216, 0.0
        %v1738 = vmax.f32 %v1305, 0.0
        %v1739 = vmax.f32 %v1394, 0.0
        %v1740 = vmax.f32 %v1483, 0.0
        %v1741 = vpack.c.bf16 %v1493, %v1485
        %v1742 = vpack.c.bf16 %v1494, %v1486
        %v1743 = vpack.c.bf16 %v1495, %v1487
        %v1744 = vpack.c.bf16 %v1496, %v1488
        %v1745 = vpack.c.bf16 %v1497, %v1489
        %v1746 = vpack.c.bf16 %v1498, %v1490
        %v1747 = vpack.c.bf16 %v1499, %v1491
        %v1748 = vpack.c.bf16 %v1500, %v1492
        %v1749 = vpack.c.bf16 %v1509, %v1501
        %v1750 = vpack.c.bf16 %v1510, %v1502
        %v1751 = vpack.c.bf16 %v1511, %v1503
        %v1752 = vpack.c.bf16 %v1512, %v1504
        %v1753 = vpack.c.bf16 %v1513, %v1505
        %v1754 = vpack.c.bf16 %v1514, %v1506
        %v1755 = vpack.c.bf16 %v1515, %v1507
        %v1756 = vpack.c.bf16 %v1516, %v1508
        %v1757 = vpack.c.bf16 %v1525, %v1517
        %v1758 = vpack.c.bf16 %v1526, %v1518
        %v1759 = vpack.c.bf16 %v1527, %v1519
        %v1760 = vpack.c.bf16 %v1528, %v1520
        %v1761 = vpack.c.bf16 %v1529, %v1521
        %v1762 = vpack.c.bf16 %v1530, %v1522
        %v1763 = vpack.c.bf16 %v1531, %v1523
        %v1764 = vpack.c.bf16 %v1532, %v1524
        %v1765 = vpack.c.bf16 %v1541, %v1533
        %v1766 = vpack.c.bf16 %v1542, %v1534
        %v1767 = vpack.c.bf16 %v1543, %v1535
        %v1768 = vpack.c.bf16 %v1544, %v1536
        %v1769 = vpack.c.bf16 %v1545, %v1537
        %v1770 = vpack.c.bf16 %v1546, %v1538
        %v1771 = vpack.c.bf16 %v1547, %v1539
        %v1772 = vpack.c.bf16 %v1548, %v1540
        %v1773 = vpack.c.bf16 %v1557, %v1549
        %v1774 = vpack.c.bf16 %v1558, %v1550
        %v1775 = vpack.c.bf16 %v1559, %v1551
        %v1776 = vpack.c.bf16 %v1560, %v1552
        %v1777 = vpack.c.bf16 %v1561, %v1553
        %v1778 = vpack.c.bf16 %v1562, %v1554
        %v1779 = vpack.c.bf16 %v1563, %v1555
        %v1780 = vpack.c.bf16 %v1564, %v1556
        %v1781 = vpack.c.bf16 %v1573, %v1565
        %v1782 = vpack.c.bf16 %v1574, %v1566
        %v1783 = vpack.c.bf16 %v1575, %v1567
        %v1784 = vpack.c.bf16 %v1576, %v1568
        %v1785 = vpack.c.bf16 %v1577, %v1569
        %v1786 = vpack.c.bf16 %v1578, %v1570
        %v1787 = vpack.c.bf16 %v1579, %v1571
        %v1788 = vpack.c.bf16 %v1580, %v1572
        %v1789 = vpack.c.bf16 %v1589, %v1581
        %v1790 = vpack.c.bf16 %v1590, %v1582
        %v1791 = vpack.c.bf16 %v1591, %v1583
        %v1792 = vpack.c.bf16 %v1592, %v1584
        %v1793 = vpack.c.bf16 %v1593, %v1585
        %v1794 = vpack.c.bf16 %v1594, %v1586
        %v1795 = vpack.c.bf16 %v1595, %v1587
        %v1796 = vpack.c.bf16 %v1596, %v1588
        %v1797 = vpack.c.bf16 %v1605, %v1597
        %v1798 = vpack.c.bf16 %v1606, %v1598
        %v1799 = vpack.c.bf16 %v1607, %v1599
        %v1800 = vpack.c.bf16 %v1608, %v1600
        %v1801 = vpack.c.bf16 %v1609, %v1601
        %v1802 = vpack.c.bf16 %v1610, %v1602
        %v1803 = vpack.c.bf16 %v1611, %v1603
        %v1804 = vpack.c.bf16 %v1612, %v1604
        %v1805 = vpack.c.bf16 %v1621, %v1613
        %v1806 = vpack.c.bf16 %v1622, %v1614
        %v1807 = vpack.c.bf16 %v1623, %v1615
        %v1808 = vpack.c.bf16 %v1624, %v1616
        %v1809 = vpack.c.bf16 %v1625, %v1617
        %v1810 = vpack.c.bf16 %v1626, %v1618
        %v1811 = vpack.c.bf16 %v1627, %v1619
        %v1812 = vpack.c.bf16 %v1628, %v1620
        %v1813 = vpack.c.bf16 %v1637, %v1629
        %v1814 = vpack.c.bf16 %v1638, %v1630
        %v1815 = vpack.c.bf16 %v1639, %v1631
        %v1816 = vpack.c.bf16 %v1640, %v1632
        %v1817 = vpack.c.bf16 %v1641, %v1633
        %v1818 = vpack.c.bf16 %v1642, %v1634
        %v1819 = vpack.c.bf16 %v1643, %v1635
        %v1820 = vpack.c.bf16 %v1644, %v1636
        %v1821 = vpack.c.bf16 %v1653, %v1645
        %v1822 = vpack.c.bf16 %v1654, %v1646
        %v1823 = vpack.c.bf16 %v1655, %v1647
        %v1824 = vpack.c.bf16 %v1656, %v1648
        %v1825 = vpack.c.bf16 %v1657, %v1649
        %v1826 = vpack.c.bf16 %v1658, %v1650
        %v1827 = vpack.c.bf16 %v1659, %v1651
        %v1828 = vpack.c.bf16 %v1660, %v1652
        %v1829 = vpack.c.bf16 %v1669, %v1661
        %v1830 = vpack.c.bf16 %v1670, %v1662
        %v1831 = vpack.c.bf16 %v1671, %v1663
        %v1832 = vpack.c.bf16 %v1672, %v1664
        %v1833 = vpack.c.bf16 %v1673, %v1665
        %v1834 = vpack.c.bf16 %v1674, %v1666
        %v1835 = vpack.c.bf16 %v1675, %v1667
        %v1836 = vpack.c.bf16 %v1676, %v1668
        %v1837 = vpack.c.bf16 %v1685, %v1677
        %v1838 = vpack.c.bf16 %v1686, %v1678
        %v1839 = vpack.c.bf16 %v1687, %v1679
        %v1840 = vpack.c.bf16 %v1688, %v1680
        %v1841 = vpack.c.bf16 %v1689, %v1681
        %v1842 = vpack.c.bf16 %v1690, %v1682
        %v1843 = vpack.c.bf16 %v1691, %v1683
        %v1844 = vpack.c.bf16 %v1692, %v1684
        %v1845 = vpack.c.bf16 %v1701, %v1693
        %v1846 = vpack.c.bf16 %v1702, %v1694
        %v1847 = vpack.c.bf16 %v1703, %v1695
        %v1848 = vpack.c.bf16 %v1704, %v1696
        %v1849 = vpack.c.bf16 %v1705, %v1697
        %v1850 = vpack.c.bf16 %v1706, %v1698
        %v1851 = vpack.c.bf16 %v1707, %v1699
        %v1852 = vpack.c.bf16 %v1708, %v1700
        %v1853 = vpack.c.bf16 %v1717, %v1709
        %v1854 = vpack.c.bf16 %v1718, %v1710
        %v1855 = vpack.c.bf16 %v1719, %v1711
        %v1856 = vpack.c.bf16 %v1720, %v1712
        %v1857 = vpack.c.bf16 %v1721, %v1713
        %v1858 = vpack.c.bf16 %v1722, %v1714
        %v1859 = vpack.c.bf16 %v1723, %v1715
        %v1860 = vpack.c.bf16 %v1724, %v1716
        %v1861 = vpack.c.bf16 %v1733, %v1725
        %v1862 = vpack.c.bf16 %v1734, %v1726
        %v1863 = vpack.c.bf16 %v1735, %v1727
        %v1864 = vpack.c.bf16 %v1736, %v1728
        %v1865 = vpack.c.bf16 %v1737, %v1729
        %v1866 = vpack.c.bf16 %v1738, %v1730
        %v1867 = vpack.c.bf16 %v1739, %v1731
        %v1868 = vpack.c.bf16 %v1740, %v1732
        %v1869 = vld [vmem:[%s3] sm:$0xff]
        %v1870 = vld [vmem:[%s3 + $0x8] sm:$0xff]
        %v1871 = vld [vmem:[%s3 + $0x10] sm:$0xff]
        %v1872 = vld [vmem:[%s3 + $0x18] sm:$0xff]
        %v1873 = vld [vmem:[%s3 + $0x20] sm:$0xff]
        %v1874 = vld [vmem:[%s3 + $0x28] sm:$0xff]
        %v1875 = vld [vmem:[%s3 + $0x30] sm:$0xff]
        %v1876 = vld [vmem:[%s3 + $0x38] sm:$0xff]
        %v1877 = vld [vmem:[%s3 + $0x40] sm:$0xff]
        %v1878 = vld [vmem:[%s3 + $0x48] sm:$0xff]
        %v1879 = vld [vmem:[%s3 + $0x50] sm:$0xff]
        %v1880 = vld [vmem:[%s3 + $0x58] sm:$0xff]
        %v1881 = vld [vmem:[%s3 + $0x60] sm:$0xff]
        %v1882 = vld [vmem:[%s3 + $0x68] sm:$0xff]
        %v1883 = vld [vmem:[%s3 + $0x70] sm:$0xff]
        %v1884 = vld [vmem:[%s3 + $0x78] sm:$0xff]
        %v1885 = vld [vmem:[%s3 + $0x80] sm:$0xff]
        %v1886 = vld [vmem:[%s3 + $0x88] sm:$0xff]
        %v1887 = vld [vmem:[%s3 + $0x90] sm:$0xff]
        %v1888 = vld [vmem:[%s3 + $0x98] sm:$0xff]
        %v1889 = vld [vmem:[%s3 + $0xa0] sm:$0xff]
        %v1890 = vld [vmem:[%s3 + $0xa8] sm:$0xff]
        %v1891 = vld [vmem:[%s3 + $0xb0] sm:$0xff]
        %v1892 = vld [vmem:[%s3 + $0xb8] sm:$0xff]
        %v1893 = vld [vmem:[%s3 + $0xc0] sm:$0xff]
        %v1894 = vld [vmem:[%s3 + $0xc8] sm:$0xff]
        %v1895 = vld [vmem:[%s3 + $0xd0] sm:$0xff]
        %v1896 = vld [vmem:[%s3 + $0xd8] sm:$0xff]
        %v1897 = vld [vmem:[%s3 + $0xe0] sm:$0xff]
        %v1898 = vld [vmem:[%s3 + $0xe8] sm:$0xff]
        %v1899 = vld [vmem:[%s3 + $0xf0] sm:$0xff]
        %v1900 = vld [vmem:[%s3 + $0xf8] sm:$0xff]
        %v1901 = vld [vmem:[%s3 + $0x100] sm:$0xff]
        %v1902 = vld [vmem:[%s3 + $0x108] sm:$0xff]
        %v1903 = vld [vmem:[%s3 + $0x110] sm:$0xff]
        %v1904 = vld [vmem:[%s3 + $0x118] sm:$0xff]
        %v1905 = vld [vmem:[%s3 + $0x120] sm:$0xff]
        %v1906 = vld [vmem:[%s3 + $0x128] sm:$0xff]
        %v1907 = vld [vmem:[%s3 + $0x130] sm:$0xff]
        %v1908 = vld [vmem:[%s3 + $0x138] sm:$0xff]
        %v1909 = vld [vmem:[%s3 + $0x140] sm:$0xff]
        %v1910 = vld [vmem:[%s3 + $0x148] sm:$0xff]
        %v1911 = vld [vmem:[%s3 + $0x150] sm:$0xff]
        %v1912 = vld [vmem:[%s3 + $0x158] sm:$0xff]
        %v1913 = vld [vmem:[%s3 + $0x160] sm:$0xff]
        %v1914 = vld [vmem:[%s3 + $0x168] sm:$0xff]
        %v1915 = vld [vmem:[%s3 + $0x170] sm:$0xff]
        %v1916 = vld [vmem:[%s3 + $0x178] sm:$0xff]
        %v1917 = vld [vmem:[%s3 + $0x180] sm:$0xff]
        %v1918 = vld [vmem:[%s3 + $0x188] sm:$0xff]
        %v1919 = vld [vmem:[%s3 + $0x190] sm:$0xff]
        %v1920 = vld [vmem:[%s3 + $0x198] sm:$0xff]
        %v1921 = vld [vmem:[%s3 + $0x1a0] sm:$0xff]
        %v1922 = vld [vmem:[%s3 + $0x1a8] sm:$0xff]
        %v1923 = vld [vmem:[%s3 + $0x1b0] sm:$0xff]
        %v1924 = vld [vmem:[%s3 + $0x1b8] sm:$0xff]
        %v1925 = vld [vmem:[%s3 + $0x1c0] sm:$0xff]
        %v1926 = vld [vmem:[%s3 + $0x1c8] sm:$0xff]
        %v1927 = vld [vmem:[%s3 + $0x1d0] sm:$0xff]
        %v1928 = vld [vmem:[%s3 + $0x1d8] sm:$0xff]
        %v1929 = vld [vmem:[%s3 + $0x1e0] sm:$0xff]
        %v1930 = vld [vmem:[%s3 + $0x1e8] sm:$0xff]
        %v1931 = vld [vmem:[%s3 + $0x1f0] sm:$0xff]
        %v1932 = vld [vmem:[%s3 + $0x1f8] sm:$0xff]
        %v1933 = vld [vmem:[%s3 + $0x200] sm:$0xff]
        %v1934 = vld [vmem:[%s3 + $0x208] sm:$0xff]
        %v1935 = vld [vmem:[%s3 + $0x210] sm:$0xff]
        %v1936 = vld [vmem:[%s3 + $0x218] sm:$0xff]
        %v1937 = vld [vmem:[%s3 + $0x220] sm:$0xff]
        %v1938 = vld [vmem:[%s3 + $0x228] sm:$0xff]
        %v1939 = vld [vmem:[%s3 + $0x230] sm:$0xff]
        %v1940 = vld [vmem:[%s3 + $0x238] sm:$0xff]
        %v1941 = vld [vmem:[%s3 + $0x240] sm:$0xff]
        %v1942 = vld [vmem:[%s3 + $0x248] sm:$0xff]
        %v1943 = vld [vmem:[%s3 + $0x250] sm:$0xff]
        %v1944 = vld [vmem:[%s3 + $0x258] sm:$0xff]
        %v1945 = vld [vmem:[%s3 + $0x260] sm:$0xff]
        %v1946 = vld [vmem:[%s3 + $0x268] sm:$0xff]
        %v1947 = vld [vmem:[%s3 + $0x270] sm:$0xff]
        %v1948 = vld [vmem:[%s3 + $0x278] sm:$0xff]
        %v1949 = vld [vmem:[%s3 + $0x280] sm:$0xff]
        %v1950 = vld [vmem:[%s3 + $0x288] sm:$0xff]
        %v1951 = vld [vmem:[%s3 + $0x290] sm:$0xff]
        %v1952 = vld [vmem:[%s3 + $0x298] sm:$0xff]
        %v1953 = vld [vmem:[%s3 + $0x2a0] sm:$0xff]
        %v1954 = vld [vmem:[%s3 + $0x2a8] sm:$0xff]
        %v1955 = vld [vmem:[%s3 + $0x2b0] sm:$0xff]
        %v1956 = vld [vmem:[%s3 + $0x2b8] sm:$0xff]
        %v1957 = vld [vmem:[%s3 + $0x2c0] sm:$0xff]
        %v1958 = vld [vmem:[%s3 + $0x2c8] sm:$0xff]
        %v1959 = vld [vmem:[%s3 + $0x2d0] sm:$0xff]
        %v1960 = vld [vmem:[%s3 + $0x2d8] sm:$0xff]
        %v1961 = vld [vmem:[%s3 + $0x2e0] sm:$0xff]
        %v1962 = vld [vmem:[%s3 + $0x2e8] sm:$0xff]
        %v1963 = vld [vmem:[%s3 + $0x2f0] sm:$0xff]
        %v1964 = vld [vmem:[%s3 + $0x2f8] sm:$0xff]
        %v1965 = vld [vmem:[%s3 + $0x300] sm:$0xff]
        %v1966 = vld [vmem:[%s3 + $0x308] sm:$0xff]
        %v1967 = vld [vmem:[%s3 + $0x310] sm:$0xff]
        %v1968 = vld [vmem:[%s3 + $0x318] sm:$0xff]
        %v1969 = vld [vmem:[%s3 + $0x320] sm:$0xff]
        %v1970 = vld [vmem:[%s3 + $0x328] sm:$0xff]
        %v1971 = vld [vmem:[%s3 + $0x330] sm:$0xff]
        %v1972 = vld [vmem:[%s3 + $0x338] sm:$0xff]
        %v1973 = vld [vmem:[%s3 + $0x340] sm:$0xff]
        %v1974 = vld [vmem:[%s3 + $0x348] sm:$0xff]
        %v1975 = vld [vmem:[%s3 + $0x350] sm:$0xff]
        %v1976 = vld [vmem:[%s3 + $0x358] sm:$0xff]
        %v1977 = vld [vmem:[%s3 + $0x360] sm:$0xff]
        %v1978 = vld [vmem:[%s3 + $0x368] sm:$0xff]
        %v1979 = vld [vmem:[%s3 + $0x370] sm:$0xff]
        %v1980 = vld [vmem:[%s3 + $0x378] sm:$0xff]
        %v1981 = vld [vmem:[%s3 + $0x380] sm:$0xff]
        %v1982 = vld [vmem:[%s3 + $0x388] sm:$0xff]
        %v1983 = vld [vmem:[%s3 + $0x390] sm:$0xff]
        %v1984 = vld [vmem:[%s3 + $0x398] sm:$0xff]
        %v1985 = vld [vmem:[%s3 + $0x3a0] sm:$0xff]
        %v1986 = vld [vmem:[%s3 + $0x3a8] sm:$0xff]
        %v1987 = vld [vmem:[%s3 + $0x3b0] sm:$0xff]
        %v1988 = vld [vmem:[%s3 + $0x3b8] sm:$0xff]
        %v1989 = vld [vmem:[%s3 + $0x3c0] sm:$0xff]
        %v1990 = vld [vmem:[%s3 + $0x3c8] sm:$0xff]
        %v1991 = vld [vmem:[%s3 + $0x3d0] sm:$0xff]
        %v1992 = vld [vmem:[%s3 + $0x3d8] sm:$0xff]
        %v1993 = vld [vmem:[%s3 + $0x3e0] sm:$0xff]
        %v1994 = vld [vmem:[%s3 + $0x3e8] sm:$0xff]
        %v1995 = vld [vmem:[%s3 + $0x3f0] sm:$0xff]
        %v1996 = vld [vmem:[%s3 + $0x3f8] sm:$0xff]
        %v1997 = vld [vmem:[%s241] sm:$0x3]
        %v1999 = vperm.slane %v1997, 0
        %v2000 = vperm.slane %v1997, 1
        %v2131 = vunpack.c.l.b16 %v1869
        %v2132 = vunpack.c.h.b16 %v1869
        %v2133 = vunpack.c.l.b16 %v1870
        %v2134 = vunpack.c.h.b16 %v1870
        %v2135 = vunpack.c.l.b16 %v1871
        %v2136 = vunpack.c.h.b16 %v1871
        %v2137 = vunpack.c.l.b16 %v1872
        %v2138 = vunpack.c.h.b16 %v1872
        %v2139 = vunpack.c.l.b16 %v1873
        %v2140 = vunpack.c.h.b16 %v1873
        %v2141 = vunpack.c.l.b16 %v1874
        %v2142 = vunpack.c.h.b16 %v1874
        %v2143 = vunpack.c.l.b16 %v1875
        %v2144 = vunpack.c.h.b16 %v1875
        %v2145 = vunpack.c.l.b16 %v1876
        %v2146 = vunpack.c.h.b16 %v1876
        %v2147 = vunpack.c.l.b16 %v1877
        %v2148 = vunpack.c.h.b16 %v1877
        %v2149 = vunpack.c.l.b16 %v1878
        %v2150 = vunpack.c.h.b16 %v1878
        %v2151 = vunpack.c.l.b16 %v1879
        %v2152 = vunpack.c.h.b16 %v1879
        %v2153 = vunpack.c.l.b16 %v1880
        %v2154 = vunpack.c.h.b16 %v1880
        %v2155 = vunpack.c.l.b16 %v1881
        %v2156 = vunpack.c.h.b16 %v1881
        %v2157 = vunpack.c.l.b16 %v1882
        %v2158 = vunpack.c.h.b16 %v1882
        %v2159 = vunpack.c.l.b16 %v1883
        %v2160 = vunpack.c.h.b16 %v1883
        %v2161 = vunpack.c.l.b16 %v1884
        %v2162 = vunpack.c.h.b16 %v1884
        %v2163 = vunpack.c.l.b16 %v1885
        %v2164 = vunpack.c.h.b16 %v1885
        %v2165 = vunpack.c.l.b16 %v1886
        %v2166 = vunpack.c.h.b16 %v1886
        %v2167 = vunpack.c.l.b16 %v1887
        %v2168 = vunpack.c.h.b16 %v1887
        %v2169 = vunpack.c.l.b16 %v1888
        %v2170 = vunpack.c.h.b16 %v1888
        %v2171 = vunpack.c.l.b16 %v1889
        %v2172 = vunpack.c.h.b16 %v1889
        %v2173 = vunpack.c.l.b16 %v1890
        %v2174 = vunpack.c.h.b16 %v1890
        %v2175 = vunpack.c.l.b16 %v1891
        %v2176 = vunpack.c.h.b16 %v1891
        %v2177 = vunpack.c.l.b16 %v1892
        %v2178 = vunpack.c.h.b16 %v1892
        %v2179 = vunpack.c.l.b16 %v1893
        %v2180 = vunpack.c.h.b16 %v1893
        %v2181 = vunpack.c.l.b16 %v1894
        %v2182 = vunpack.c.h.b16 %v1894
        %v2183 = vunpack.c.l.b16 %v1895
        %v2184 = vunpack.c.h.b16 %v1895
        %v2185 = vunpack.c.l.b16 %v1896
        %v2186 = vunpack.c.h.b16 %v1896
        %v2187 = vunpack.c.l.b16 %v1897
        %v2188 = vunpack.c.h.b16 %v1897
        %v2189 = vunpack.c.l.b16 %v1898
        %v2190 = vunpack.c.h.b16 %v1898
        %v2191 = vunpack.c.l.b16 %v1899
        %v2192 = vunpack.c.h.b16 %v1899
        %v2193 = vunpack.c.l.b16 %v1900
        %v2194 = vunpack.c.h.b16 %v1900
        %v2195 = vunpack.c.l.b16 %v1901
        %v2196 = vunpack.c.h.b16 %v1901
        %v2197 = vunpack.c.l.b16 %v1902
        %v2198 = vunpack.c.h.b16 %v1902
        %v2199 = vunpack.c.l.b16 %v1903
        %v2200 = vunpack.c.h.b16 %v1903
        %v2201 = vunpack.c.l.b16 %v1904
        %v2202 = vunpack.c.h.b16 %v1904
        %v2203 = vunpack.c.l.b16 %v1905
        %v2204 = vunpack.c.h.b16 %v1905
        %v2205 = vunpack.c.l.b16 %v1906
        %v2206 = vunpack.c.h.b16 %v1906
        %v2207 = vunpack.c.l.b16 %v1907
        %v2208 = vunpack.c.h.b16 %v1907
        %v2209 = vunpack.c.l.b16 %v1908
        %v2210 = vunpack.c.h.b16 %v1908
        %v2211 = vunpack.c.l.b16 %v1909
        %v2212 = vunpack.c.h.b16 %v1909
        %v2213 = vunpack.c.l.b16 %v1910
        %v2214 = vunpack.c.h.b16 %v1910
        %v2215 = vunpack.c.l.b16 %v1911
        %v2216 = vunpack.c.h.b16 %v1911
        %v2217 = vunpack.c.l.b16 %v1912
        %v2218 = vunpack.c.h.b16 %v1912
        %v2219 = vunpack.c.l.b16 %v1913
        %v2220 = vunpack.c.h.b16 %v1913
        %v2221 = vunpack.c.l.b16 %v1914
        %v2222 = vunpack.c.h.b16 %v1914
        %v2223 = vunpack.c.l.b16 %v1915
        %v2224 = vunpack.c.h.b16 %v1915
        %v2225 = vunpack.c.l.b16 %v1916
        %v2226 = vunpack.c.h.b16 %v1916
        %v2227 = vunpack.c.l.b16 %v1917
        %v2228 = vunpack.c.h.b16 %v1917
        %v2229 = vunpack.c.l.b16 %v1918
        %v2230 = vunpack.c.h.b16 %v1918
        %v2231 = vunpack.c.l.b16 %v1919
        %v2232 = vunpack.c.h.b16 %v1919
        %v2233 = vunpack.c.l.b16 %v1920
        %v2234 = vunpack.c.h.b16 %v1920
        %v2235 = vunpack.c.l.b16 %v1921
        %v2236 = vunpack.c.h.b16 %v1921
        %v2237 = vunpack.c.l.b16 %v1922
        %v2238 = vunpack.c.h.b16 %v1922
        %v2239 = vunpack.c.l.b16 %v1923
        %v2240 = vunpack.c.h.b16 %v1923
        %v2241 = vunpack.c.l.b16 %v1924
        %v2242 = vunpack.c.h.b16 %v1924
        %v2243 = vunpack.c.l.b16 %v1925
        %v2244 = vunpack.c.h.b16 %v1925
        %v2245 = vunpack.c.l.b16 %v1926
        %v2246 = vunpack.c.h.b16 %v1926
        %v2247 = vunpack.c.l.b16 %v1927
        %v2248 = vunpack.c.h.b16 %v1927
        %v2249 = vunpack.c.l.b16 %v1928
        %v2250 = vunpack.c.h.b16 %v1928
        %v2251 = vunpack.c.l.b16 %v1929
        %v2252 = vunpack.c.h.b16 %v1929
        %v2253 = vunpack.c.l.b16 %v1930
        %v2254 = vunpack.c.h.b16 %v1930
        %v2255 = vunpack.c.l.b16 %v1931
        %v2256 = vunpack.c.h.b16 %v1931
        %v2257 = vunpack.c.l.b16 %v1932
        %v2258 = vunpack.c.h.b16 %v1932
        %v2259 = vunpack.c.l.b16 %v1933
        %v2260 = vunpack.c.h.b16 %v1933
        %v2261 = vunpack.c.l.b16 %v1934
        %v2262 = vunpack.c.h.b16 %v1934
        %v2263 = vunpack.c.l.b16 %v1935
        %v2264 = vunpack.c.h.b16 %v1935
        %v2265 = vunpack.c.l.b16 %v1936
        %v2266 = vunpack.c.h.b16 %v1936
        %v2267 = vunpack.c.l.b16 %v1937
        %v2268 = vunpack.c.h.b16 %v1937
        %v2269 = vunpack.c.l.b16 %v1938
        %v2270 = vunpack.c.h.b16 %v1938
        %v2271 = vunpack.c.l.b16 %v1939
        %v2272 = vunpack.c.h.b16 %v1939
        %v2273 = vunpack.c.l.b16 %v1940
        %v2274 = vunpack.c.h.b16 %v1940
        %v2275 = vunpack.c.l.b16 %v1941
        %v2276 = vunpack.c.h.b16 %v1941
        %v2277 = vunpack.c.l.b16 %v1942
        %v2278 = vunpack.c.h.b16 %v1942
        %v2279 = vunpack.c.l.b16 %v1943
        %v2280 = vunpack.c.h.b16 %v1943
        %v2281 = vunpack.c.l.b16 %v1944
        %v2282 = vunpack.c.h.b16 %v1944
        %v2283 = vunpack.c.l.b16 %v1945
        %v2284 = vunpack.c.h.b16 %v1945
        %v2285 = vunpack.c.l.b16 %v1946
        %v2286 = vunpack.c.h.b16 %v1946
        %v2287 = vunpack.c.l.b16 %v1947
        %v2288 = vunpack.c.h.b16 %v1947
        %v2289 = vunpack.c.l.b16 %v1948
        %v2290 = vunpack.c.h.b16 %v1948
        %v2291 = vunpack.c.l.b16 %v1949
        %v2292 = vunpack.c.h.b16 %v1949
        %v2293 = vunpack.c.l.b16 %v1950
        %v2294 = vunpack.c.h.b16 %v1950
        %v2295 = vunpack.c.l.b16 %v1951
        %v2296 = vunpack.c.h.b16 %v1951
        %v2297 = vunpack.c.l.b16 %v1952
        %v2298 = vunpack.c.h.b16 %v1952
        %v2299 = vunpack.c.l.b16 %v1953
        %v2300 = vunpack.c.h.b16 %v1953
        %v2301 = vunpack.c.l.b16 %v1954
        %v2302 = vunpack.c.h.b16 %v1954
        %v2303 = vunpack.c.l.b16 %v1955
        %v2304 = vunpack.c.h.b16 %v1955
        %v2305 = vunpack.c.l.b16 %v1956
        %v2306 = vunpack.c.h.b16 %v1956
        %v2307 = vunpack.c.l.b16 %v1957
        %v2308 = vunpack.c.h.b16 %v1957
        %v2309 = vunpack.c.l.b16 %v1958
        %v2310 = vunpack.c.h.b16 %v1958
        %v2311 = vunpack.c.l.b16 %v1959
        %v2312 = vunpack.c.h.b16 %v1959
        %v2313 = vunpack.c.l.b16 %v1960
        %v2314 = vunpack.c.h.b16 %v1960
        %v2315 = vunpack.c.l.b16 %v1961
        %v2316 = vunpack.c.h.b16 %v1961
        %v2317 = vunpack.c.l.b16 %v1962
        %v2318 = vunpack.c.h.b16 %v1962
        %v2319 = vunpack.c.l.b16 %v1963
        %v2320 = vunpack.c.h.b16 %v1963
        %v2321 = vunpack.c.l.b16 %v1964
        %v2322 = vunpack.c.h.b16 %v1964
        %v2323 = vunpack.c.l.b16 %v1965
        %v2324 = vunpack.c.h.b16 %v1965
        %v2325 = vunpack.c.l.b16 %v1966
        %v2326 = vunpack.c.h.b16 %v1966
        %v2327 = vunpack.c.l.b16 %v1967
        %v2328 = vunpack.c.h.b16 %v1967
        %v2329 = vunpack.c.l.b16 %v1968
        %v2330 = vunpack.c.h.b16 %v1968
        %v2331 = vunpack.c.l.b16 %v1969
        %v2332 = vunpack.c.h.b16 %v1969
        %v2333 = vunpack.c.l.b16 %v1970
        %v2334 = vunpack.c.h.b16 %v1970
        %v2335 = vunpack.c.l.b16 %v1971
        %v2336 = vunpack.c.h.b16 %v1971
        %v2337 = vunpack.c.l.b16 %v1972
        %v2338 = vunpack.c.h.b16 %v1972
        %v2339 = vunpack.c.l.b16 %v1973
        %v2340 = vunpack.c.h.b16 %v1973
        %v2341 = vunpack.c.l.b16 %v1974
        %v2342 = vunpack.c.h.b16 %v1974
        %v2343 = vunpack.c.l.b16 %v1975
        %v2344 = vunpack.c.h.b16 %v1975
        %v2345 = vunpack.c.l.b16 %v1976
        %v2346 = vunpack.c.h.b16 %v1976
        %v2347 = vunpack.c.l.b16 %v1977
        %v2348 = vunpack.c.h.b16 %v1977
        %v2349 = vunpack.c.l.b16 %v1978
        %v2350 = vunpack.c.h.b16 %v1978
        %v2351 = vunpack.c.l.b16 %v1979
        %v2352 = vunpack.c.h.b16 %v1979
        %v2353 = vunpack.c.l.b16 %v1980
        %v2354 = vunpack.c.h.b16 %v1980
        %v2355 = vunpack.c.l.b16 %v1981
        %v2356 = vunpack.c.h.b16 %v1981
        %v2357 = vunpack.c.l.b16 %v1982
        %v2358 = vunpack.c.h.b16 %v1982
        %v2359 = vunpack.c.l.b16 %v1983
        %v2360 = vunpack.c.h.b16 %v1983
        %v2361 = vunpack.c.l.b16 %v1984
        %v2362 = vunpack.c.h.b16 %v1984
        %v2363 = vunpack.c.l.b16 %v1985
        %v2364 = vunpack.c.h.b16 %v1985
        %v2365 = vunpack.c.l.b16 %v1986
        %v2366 = vunpack.c.h.b16 %v1986
        %v2367 = vunpack.c.l.b16 %v1987
        %v2368 = vunpack.c.h.b16 %v1987
        %v2369 = vunpack.c.l.b16 %v1988
        %v2370 = vunpack.c.h.b16 %v1988
        %v2371 = vunpack.c.l.b16 %v1989
        %v2372 = vunpack.c.h.b16 %v1989
        %v2373 = vunpack.c.l.b16 %v1990
        %v2374 = vunpack.c.h.b16 %v1990
        %v2375 = vunpack.c.l.b16 %v1991
        %v2376 = vunpack.c.h.b16 %v1991
        %v2377 = vunpack.c.l.b16 %v1992
        %v2378 = vunpack.c.h.b16 %v1992
        %v2379 = vunpack.c.l.b16 %v1993
        %v2380 = vunpack.c.h.b16 %v1993
        %v2381 = vunpack.c.l.b16 %v1994
        %v2382 = vunpack.c.h.b16 %v1994
        %v2383 = vunpack.c.l.b16 %v1995
        %v2384 = vunpack.c.h.b16 %v1995
        %v2385 = vunpack.c.l.b16 %v1996
        %v2386 = vunpack.c.h.b16 %v1996
        %v2387 = vpack.c.b16 %v2133, %v2131
        %v2388 = vpack.c.b16 %v2134, %v2132
        %v2389 = vpack.c.b16 %v2137, %v2135
        %v2390 = vpack.c.b16 %v2138, %v2136
        %v2391 = vpack.c.b16 %v2141, %v2139
        %v2392 = vpack.c.b16 %v2142, %v2140
        %v2393 = vpack.c.b16 %v2145, %v2143
        %v2394 = vpack.c.b16 %v2146, %v2144
        %v2395 = vpack.c.b16 %v2149, %v2147
        %v2396 = vpack.c.b16 %v2150, %v2148
        %v2397 = vpack.c.b16 %v2153, %v2151
        %v2398 = vpack.c.b16 %v2154, %v2152
        %v2399 = vpack.c.b16 %v2157, %v2155
        %v2400 = vpack.c.b16 %v2158, %v2156
        %v2401 = vpack.c.b16 %v2161, %v2159
        %v2402 = vpack.c.b16 %v2162, %v2160
        %v2403 = vpack.c.b16 %v2165, %v2163
        %v2404 = vpack.c.b16 %v2166, %v2164
        %v2405 = vpack.c.b16 %v2169, %v2167
        %v2406 = vpack.c.b16 %v2170, %v2168
        %v2407 = vpack.c.b16 %v2173, %v2171
        %v2408 = vpack.c.b16 %v2174, %v2172
        %v2409 = vpack.c.b16 %v2177, %v2175
        %v2410 = vpack.c.b16 %v2178, %v2176
        %v2411 = vpack.c.b16 %v2181, %v2179
        %v2412 = vpack.c.b16 %v2182, %v2180
        %v2413 = vpack.c.b16 %v2185, %v2183
        %v2414 = vpack.c.b16 %v2186, %v2184
        %v2415 = vpack.c.b16 %v2189, %v2187
        %v2416 = vpack.c.b16 %v2190, %v2188
        %v2417 = vpack.c.b16 %v2193, %v2191
        %v2418 = vpack.c.b16 %v2194, %v2192
        %v2419 = vpack.c.b16 %v2197, %v2195
        %v2420 = vpack.c.b16 %v2198, %v2196
        %v2421 = vpack.c.b16 %v2201, %v2199
        %v2422 = vpack.c.b16 %v2202, %v2200
        %v2423 = vpack.c.b16 %v2205, %v2203
        %v2424 = vpack.c.b16 %v2206, %v2204
        %v2425 = vpack.c.b16 %v2209, %v2207
        %v2426 = vpack.c.b16 %v2210, %v2208
        %v2427 = vpack.c.b16 %v2213, %v2211
        %v2428 = vpack.c.b16 %v2214, %v2212
        %v2429 = vpack.c.b16 %v2217, %v2215
        %v2430 = vpack.c.b16 %v2218, %v2216
        %v2431 = vpack.c.b16 %v2221, %v2219
        %v2432 = vpack.c.b16 %v2222, %v2220
        %v2433 = vpack.c.b16 %v2225, %v2223
        %v2434 = vpack.c.b16 %v2226, %v2224
        %v2435 = vpack.c.b16 %v2229, %v2227
        %v2436 = vpack.c.b16 %v2230, %v2228
        %v2437 = vpack.c.b16 %v2233, %v2231
        %v2438 = vpack.c.b16 %v2234, %v2232
        %v2439 = vpack.c.b16 %v2237, %v2235
        %v2440 = vpack.c.b16 %v2238, %v2236
        %v2441 = vpack.c.b16 %v2241, %v2239
        %v2442 = vpack.c.b16 %v2242, %v2240
        %v2443 = vpack.c.b16 %v2245, %v2243
        %v2444 = vpack.c.b16 %v2246, %v2244
        %v2445 = vpack.c.b16 %v2249, %v2247
        %v2446 = vpack.c.b16 %v2250, %v2248
        %v2447 = vpack.c.b16 %v2253, %v2251
        %v2448 = vpack.c.b16 %v2254, %v2252
        %v2449 = vpack.c.b16 %v2257, %v2255
        %v2450 = vpack.c.b16 %v2258, %v2256
        %v2451 = vpack.c.b16 %v2261, %v2259
        %v2452 = vpack.c.b16 %v2262, %v2260
        %v2453 = vpack.c.b16 %v2265, %v2263
        %v2454 = vpack.c.b16 %v2266, %v2264
        %v2455 = vpack.c.b16 %v2269, %v2267
        %v2456 = vpack.c.b16 %v2270, %v2268
        %v2457 = vpack.c.b16 %v2273, %v2271
        %v2458 = vpack.c.b16 %v2274, %v2272
        %v2459 = vpack.c.b16 %v2277, %v2275
        %v2460 = vpack.c.b16 %v2278, %v2276
        %v2461 = vpack.c.b16 %v2281, %v2279
        %v2462 = vpack.c.b16 %v2282, %v2280
        %v2463 = vpack.c.b16 %v2285, %v2283
        %v2464 = vpack.c.b16 %v2286, %v2284
        %v2465 = vpack.c.b16 %v2289, %v2287
        %v2466 = vpack.c.b16 %v2290, %v2288
        %v2467 = vpack.c.b16 %v2293, %v2291
        %v2468 = vpack.c.b16 %v2294, %v2292
        %v2469 = vpack.c.b16 %v2297, %v2295
        %v2470 = vpack.c.b16 %v2298, %v2296
        %v2471 = vpack.c.b16 %v2301, %v2299
        %v2472 = vpack.c.b16 %v2302, %v2300
        %v2473 = vpack.c.b16 %v2305, %v2303
        %v2474 = vpack.c.b16 %v2306, %v2304
        %v2475 = vpack.c.b16 %v2309, %v2307
        %v2476 = vpack.c.b16 %v2310, %v2308
        %v2477 = vpack.c.b16 %v2313, %v2311
        %v2478 = vpack.c.b16 %v2314, %v2312
        %v2479 = vpack.c.b16 %v2317, %v2315
        %v2480 = vpack.c.b16 %v2318, %v2316
        %v2481 = vpack.c.b16 %v2321, %v2319
        %v2482 = vpack.c.b16 %v2322, %v2320
        %v2483 = vpack.c.b16 %v2325, %v2323
        %v2484 = vpack.c.b16 %v2326, %v2324
        %v2485 = vpack.c.b16 %v2329, %v2327
        %v2486 = vpack.c.b16 %v2330, %v2328
        %v2487 = vpack.c.b16 %v2333, %v2331
        %v2488 = vpack.c.b16 %v2334, %v2332
        %v2489 = vpack.c.b16 %v2337, %v2335
        %v2490 = vpack.c.b16 %v2338, %v2336
        %v2491 = vpack.c.b16 %v2341, %v2339
        %v2492 = vpack.c.b16 %v2342, %v2340
        %v2493 = vpack.c.b16 %v2345, %v2343
        %v2494 = vpack.c.b16 %v2346, %v2344
        %v2495 = vpack.c.b16 %v2349, %v2347
        %v2496 = vpack.c.b16 %v2350, %v2348
        %v2497 = vpack.c.b16 %v2353, %v2351
        %v2498 = vpack.c.b16 %v2354, %v2352
        %v2499 = vpack.c.b16 %v2357, %v2355
        %v2500 = vpack.c.b16 %v2358, %v2356
        %v2501 = vpack.c.b16 %v2361, %v2359
        %v2502 = vpack.c.b16 %v2362, %v2360
        %v2503 = vpack.c.b16 %v2365, %v2363
        %v2504 = vpack.c.b16 %v2366, %v2364
        %v2505 = vpack.c.b16 %v2369, %v2367
        %v2506 = vpack.c.b16 %v2370, %v2368
        %v2507 = vpack.c.b16 %v2373, %v2371
        %v2508 = vpack.c.b16 %v2374, %v2372
        %v2509 = vpack.c.b16 %v2377, %v2375
        %v2510 = vpack.c.b16 %v2378, %v2376
        %v2511 = vpack.c.b16 %v2381, %v2379
        %v2512 = vpack.c.b16 %v2382, %v2380
        %v2513 = vpack.c.b16 %v2385, %v2383
        %v2514 = vpack.c.b16 %v2386, %v2384
        %2643 = vmatpush.bf16.msra.mxu0 %v2401
        %2644 = vmatpush.bf16.msra.mxu0 %v2399
        %2645 = vmatpush.bf16.msra.mxu0 %v2397
        %2646 = vmatpush.bf16.msra.mxu0 %v2395
        %2647 = vmatpush.bf16.msra.mxu0 %v2393
        %2648 = vmatpush.bf16.msra.mxu0 %v2391
        %2649 = vmatpush.bf16.msra.mxu0 %v2389
        %2650 = vmatpush.bf16.msra.mxu0 %v2387
        %2651 = vmatmul.bf16.gmra.mxu0 %v1741
        %v2652 = vpop.f32.mrf.mxu0
        %v2653 = vadd.f32 %v1999, %v2652
        %v2654 = vpop.f32.mrf.mxu0
        %v2655 = vadd.f32 %v1999, %v2654
        %2656 = vmatmul.bf16.gmra.mxu0 %v1749
        %v2657 = vpop.f32.mrf.mxu0
        %v2658 = vadd.f32 %v1999, %v2657
        %v2659 = vpop.f32.mrf.mxu0
        %v2660 = vadd.f32 %v1999, %v2659
        %2661 = vmatmul.bf16.gmra.mxu0 %v1757
        %v2662 = vpop.f32.mrf.mxu0
        %v2663 = vadd.f32 %v1999, %v2662
        %v2664 = vpop.f32.mrf.mxu0
        %v2665 = vadd.f32 %v1999, %v2664
        %2666 = vmatmul.bf16.gmra.mxu0 %v1765
        %v2667 = vpop.f32.mrf.mxu0
        %v2668 = vadd.f32 %v1999, %v2667
        %v2669 = vpop.f32.mrf.mxu0
        %v2670 = vadd.f32 %v1999, %v2669
        %2671 = vmatmul.bf16.gmra.mxu0 %v1773
        %v2672 = vpop.f32.mrf.mxu0
        %v2673 = vadd.f32 %v1999, %v2672
        %v2674 = vpop.f32.mrf.mxu0
        %v2675 = vadd.f32 %v1999, %v2674
        %2676 = vmatmul.bf16.gmra.mxu0 %v1781
        %v2677 = vpop.f32.mrf.mxu0
        %v2678 = vadd.f32 %v1999, %v2677
        %v2679 = vpop.f32.mrf.mxu0
        %v2680 = vadd.f32 %v1999, %v2679
        %2681 = vmatmul.bf16.gmra.mxu0 %v1789
        %v2682 = vpop.f32.mrf.mxu0
        %v2683 = vadd.f32 %v1999, %v2682
        %v2684 = vpop.f32.mrf.mxu0
        %v2685 = vadd.f32 %v1999, %v2684
        %2686 = vmatmul.bf16.gmra.mxu0 %v1797
        %v2687 = vpop.f32.mrf.mxu0
        %v2688 = vadd.f32 %v1999, %v2687
        %v2689 = vpop.f32.mrf.mxu0
        %v2690 = vadd.f32 %v1999, %v2689
        %2691 = vmatmul.bf16.gmra.mxu0 %v1805
        %v2692 = vpop.f32.mrf.mxu0
        %v2693 = vadd.f32 %v1999, %v2692
        %v2694 = vpop.f32.mrf.mxu0
        %v2695 = vadd.f32 %v1999, %v2694
        %2696 = vmatmul.bf16.gmra.mxu0 %v1813
        %v2697 = vpop.f32.mrf.mxu0
        %v2698 = vadd.f32 %v1999, %v2697
        %v2699 = vpop.f32.mrf.mxu0
        %v2700 = vadd.f32 %v1999, %v2699
        %2701 = vmatmul.bf16.gmra.mxu0 %v1821
        %v2702 = vpop.f32.mrf.mxu0
        %v2703 = vadd.f32 %v1999, %v2702
        %v2704 = vpop.f32.mrf.mxu0
        %v2705 = vadd.f32 %v1999, %v2704
        %2706 = vmatmul.bf16.gmra.mxu0 %v1829
        %v2707 = vpop.f32.mrf.mxu0
        %v2708 = vadd.f32 %v1999, %v2707
        %v2709 = vpop.f32.mrf.mxu0
        %v2710 = vadd.f32 %v1999, %v2709
        %2711 = vmatmul.bf16.gmra.mxu0 %v1837
        %v2712 = vpop.f32.mrf.mxu0
        %v2713 = vadd.f32 %v1999, %v2712
        %v2714 = vpop.f32.mrf.mxu0
        %v2715 = vadd.f32 %v1999, %v2714
        %2716 = vmatmul.bf16.gmra.mxu0 %v1845
        %v2717 = vpop.f32.mrf.mxu0
        %v2718 = vadd.f32 %v1999, %v2717
        %v2719 = vpop.f32.mrf.mxu0
        %v2720 = vadd.f32 %v1999, %v2719
        %2721 = vmatmul.bf16.gmra.mxu0 %v1853
        %v2722 = vpop.f32.mrf.mxu0
        %v2723 = vadd.f32 %v1999, %v2722
        %v2724 = vpop.f32.mrf.mxu0
        %v2725 = vadd.f32 %v1999, %v2724
        %2726 = vmatmul.bf16.gmra.mxu0 %v1861
        %v2727 = vpop.f32.mrf.mxu0
        %v2728 = vadd.f32 %v1999, %v2727
        %v2729 = vpop.f32.mrf.mxu0
        %v2730 = vadd.f32 %v1999, %v2729
        %2731 = vdwg.mxu0
        %2732 = vmatpush.bf16.msra.mxu0 %v2417
        %2733 = vmatpush.bf16.msra.mxu0 %v2415
        %2734 = vmatpush.bf16.msra.mxu0 %v2413
        %2735 = vmatpush.bf16.msra.mxu0 %v2411
        %2736 = vmatpush.bf16.msra.mxu0 %v2409
        %2737 = vmatpush.bf16.msra.mxu0 %v2407
        %2738 = vmatpush.bf16.msra.mxu0 %v2405
        %2739 = vmatpush.bf16.msra.mxu0 %v2403
        %2740 = vmatmul.bf16.gmra.mxu0 %v1742
        %v2741 = vpop.f32.mrf.mxu0
        %v2742 = vadd.f32 %v2653, %v2741
        %v2743 = vpop.f32.mrf.mxu0
        %v2744 = vadd.f32 %v2655, %v2743
        %2745 = vmatmul.bf16.gmra.mxu0 %v1750
        %v2746 = vpop.f32.mrf.mxu0
        %v2747 = vadd.f32 %v2658, %v2746
        %v2748 = vpop.f32.mrf.mxu0
        %v2749 = vadd.f32 %v2660, %v2748
        %2750 = vmatmul.bf16.gmra.mxu0 %v1758
        %v2751 = vpop.f32.mrf.mxu0
        %v2752 = vadd.f32 %v2663, %v2751
        %v2753 = vpop.f32.mrf.mxu0
        %v2754 = vadd.f32 %v2665, %v2753
        %2755 = vmatmul.bf16.gmra.mxu0 %v1766
        %v2756 = vpop.f32.mrf.mxu0
        %v2757 = vadd.f32 %v2668, %v2756
        %v2758 = vpop.f32.mrf.mxu0
        %v2759 = vadd.f32 %v2670, %v2758
        %2760 = vmatmul.bf16.gmra.mxu0 %v1774
        %v2761 = vpop.f32.mrf.mxu0
        %v2762 = vadd.f32 %v2673, %v2761
        %v2763 = vpop.f32.mrf.mxu0
        %v2764 = vadd.f32 %v2675, %v2763
        %2765 = vmatmul.bf16.gmra.mxu0 %v1782
        %v2766 = vpop.f32.mrf.mxu0
        %v2767 = vadd.f32 %v2678, %v2766
        %v2768 = vpop.f32.mrf.mxu0
        %v2769 = vadd.f32 %v2680, %v2768
        %2770 = vmatmul.bf16.gmra.mxu0 %v1790
        %v2771 = vpop.f32.mrf.mxu0
        %v2772 = vadd.f32 %v2683, %v2771
        %v2773 = vpop.f32.mrf.mxu0
        %v2774 = vadd.f32 %v2685, %v2773
        %2775 = vmatmul.bf16.gmra.mxu0 %v1798
        %v2776 = vpop.f32.mrf.mxu0
        %v2777 = vadd.f32 %v2688, %v2776
        %v2778 = vpop.f32.mrf.mxu0
        %v2779 = vadd.f32 %v2690, %v2778
        %2780 = vmatmul.bf16.gmra.mxu0 %v1806
        %v2781 = vpop.f32.mrf.mxu0
        %v2782 = vadd.f32 %v2693, %v2781
        %v2783 = vpop.f32.mrf.mxu0
        %v2784 = vadd.f32 %v2695, %v2783
        %2785 = vmatmul.bf16.gmra.mxu0 %v1814
        %v2786 = vpop.f32.mrf.mxu0
        %v2787 = vadd.f32 %v2698, %v2786
        %v2788 = vpop.f32.mrf.mxu0
        %v2789 = vadd.f32 %v2700, %v2788
        %2790 = vmatmul.bf16.gmra.mxu0 %v1822
        %v2791 = vpop.f32.mrf.mxu0
        %v2792 = vadd.f32 %v2703, %v2791
        %v2793 = vpop.f32.mrf.mxu0
        %v2794 = vadd.f32 %v2705, %v2793
        %2795 = vmatmul.bf16.gmra.mxu0 %v1830
        %v2796 = vpop.f32.mrf.mxu0
        %v2797 = vadd.f32 %v2708, %v2796
        %v2798 = vpop.f32.mrf.mxu0
        %v2799 = vadd.f32 %v2710, %v2798
        %2800 = vmatmul.bf16.gmra.mxu0 %v1838
        %v2801 = vpop.f32.mrf.mxu0
        %v2802 = vadd.f32 %v2713, %v2801
        %v2803 = vpop.f32.mrf.mxu0
        %v2804 = vadd.f32 %v2715, %v2803
        %2805 = vmatmul.bf16.gmra.mxu0 %v1846
        %v2806 = vpop.f32.mrf.mxu0
        %v2807 = vadd.f32 %v2718, %v2806
        %v2808 = vpop.f32.mrf.mxu0
        %v2809 = vadd.f32 %v2720, %v2808
        %2810 = vmatmul.bf16.gmra.mxu0 %v1854
        %v2811 = vpop.f32.mrf.mxu0
        %v2812 = vadd.f32 %v2723, %v2811
        %v2813 = vpop.f32.mrf.mxu0
        %v2814 = vadd.f32 %v2725, %v2813
        %2815 = vmatmul.bf16.gmra.mxu0 %v1862
        %v2816 = vpop.f32.mrf.mxu0
        %v2817 = vadd.f32 %v2728, %v2816
        %v2818 = vpop.f32.mrf.mxu0
        %v2819 = vadd.f32 %v2730, %v2818
        %2820 = vdwg.mxu0
        %2821 = vmatpush.bf16.msra.mxu0 %v2433
        %2822 = vmatpush.bf16.msra.mxu0 %v2431
        %2823 = vmatpush.bf16.msra.mxu0 %v2429
        %2824 = vmatpush.bf16.msra.mxu0 %v2427
        %2825 = vmatpush.bf16.msra.mxu0 %v2425
        %2826 = vmatpush.bf16.msra.mxu0 %v2423
        %2827 = vmatpush.bf16.msra.mxu0 %v2421
        %2828 = vmatpush.bf16.msra.mxu0 %v2419
        %2829 = vmatmul.bf16.gmra.mxu0 %v1743
        %v2830 = vpop.f32.mrf.mxu0
        %v2831 = vadd.f32 %v2742, %v2830
        %v2832 = vpop.f32.mrf.mxu0
        %v2833 = vadd.f32 %v2744, %v2832
        %2834 = vmatmul.bf16.gmra.mxu0 %v1751
        %v2835 = vpop.f32.mrf.mxu0
        %v2836 = vadd.f32 %v2747, %v2835
        %v2837 = vpop.f32.mrf.mxu0
        %v2838 = vadd.f32 %v2749, %v2837
        %2839 = vmatmul.bf16.gmra.mxu0 %v1759
        %v2840 = vpop.f32.mrf.mxu0
        %v2841 = vadd.f32 %v2752, %v2840
        %v2842 = vpop.f32.mrf.mxu0
        %v2843 = vadd.f32 %v2754, %v2842
        %2844 = vmatmul.bf16.gmra.mxu0 %v1767
        %v2845 = vpop.f32.mrf.mxu0
        %v2846 = vadd.f32 %v2757, %v2845
        %v2847 = vpop.f32.mrf.mxu0
        %v2848 = vadd.f32 %v2759, %v2847
        %2849 = vmatmul.bf16.gmra.mxu0 %v1775
        %v2850 = vpop.f32.mrf.mxu0
        %v2851 = vadd.f32 %v2762, %v2850
        %v2852 = vpop.f32.mrf.mxu0
        %v2853 = vadd.f32 %v2764, %v2852
        %2854 = vmatmul.bf16.gmra.mxu0 %v1783
        %v2855 = vpop.f32.mrf.mxu0
        %v2856 = vadd.f32 %v2767, %v2855
        %v2857 = vpop.f32.mrf.mxu0
        %v2858 = vadd.f32 %v2769, %v2857
        %2859 = vmatmul.bf16.gmra.mxu0 %v1791
        %v2860 = vpop.f32.mrf.mxu0
        %v2861 = vadd.f32 %v2772, %v2860
        %v2862 = vpop.f32.mrf.mxu0
        %v2863 = vadd.f32 %v2774, %v2862
        %2864 = vmatmul.bf16.gmra.mxu0 %v1799
        %v2865 = vpop.f32.mrf.mxu0
        %v2866 = vadd.f32 %v2777, %v2865
        %v2867 = vpop.f32.mrf.mxu0
        %v2868 = vadd.f32 %v2779, %v2867
        %2869 = vmatmul.bf16.gmra.mxu0 %v1807
        %v2870 = vpop.f32.mrf.mxu0
        %v2871 = vadd.f32 %v2782, %v2870
        %v2872 = vpop.f32.mrf.mxu0
        %v2873 = vadd.f32 %v2784, %v2872
        %2874 = vmatmul.bf16.gmra.mxu0 %v1815
        %v2875 = vpop.f32.mrf.mxu0
        %v2876 = vadd.f32 %v2787, %v2875
        %v2877 = vpop.f32.mrf.mxu0
        %v2878 = vadd.f32 %v2789, %v2877
        %2879 = vmatmul.bf16.gmra.mxu0 %v1823
        %v2880 = vpop.f32.mrf.mxu0
        %v2881 = vadd.f32 %v2792, %v2880
        %v2882 = vpop.f32.mrf.mxu0
        %v2883 = vadd.f32 %v2794, %v2882
        %2884 = vmatmul.bf16.gmra.mxu0 %v1831
        %v2885 = vpop.f32.mrf.mxu0
        %v2886 = vadd.f32 %v2797, %v2885
        %v2887 = vpop.f32.mrf.mxu0
        %v2888 = vadd.f32 %v2799, %v2887
        %2889 = vmatmul.bf16.gmra.mxu0 %v1839
        %v2890 = vpop.f32.mrf.mxu0
        %v2891 = vadd.f32 %v2802, %v2890
        %v2892 = vpop.f32.mrf.mxu0
        %v2893 = vadd.f32 %v2804, %v2892
        %2894 = vmatmul.bf16.gmra.mxu0 %v1847
        %v2895 = vpop.f32.mrf.mxu0
        %v2896 = vadd.f32 %v2807, %v2895
        %v2897 = vpop.f32.mrf.mxu0
        %v2898 = vadd.f32 %v2809, %v2897
        %2899 = vmatmul.bf16.gmra.mxu0 %v1855
        %v2900 = vpop.f32.mrf.mxu0
        %v2901 = vadd.f32 %v2812, %v2900
        %v2902 = vpop.f32.mrf.mxu0
        %v2903 = vadd.f32 %v2814, %v2902
        %2904 = vmatmul.bf16.gmra.mxu0 %v1863
        %v2905 = vpop.f32.mrf.mxu0
        %v2906 = vadd.f32 %v2817, %v2905
        %v2907 = vpop.f32.mrf.mxu0
        %v2908 = vadd.f32 %v2819, %v2907
        %2909 = vdwg.mxu0
        %2910 = vmatpush.bf16.msra.mxu0 %v2449
        %2911 = vmatpush.bf16.msra.mxu0 %v2447
        %2912 = vmatpush.bf16.msra.mxu0 %v2445
        %2913 = vmatpush.bf16.msra.mxu0 %v2443
        %2914 = vmatpush.bf16.msra.mxu0 %v2441
        %2915 = vmatpush.bf16.msra.mxu0 %v2439
        %2916 = vmatpush.bf16.msra.mxu0 %v2437
        %2917 = vmatpush.bf16.msra.mxu0 %v2435
        %2918 = vmatmul.bf16.gmra.mxu0 %v1744
        %v2919 = vpop.f32.mrf.mxu0
        %v2920 = vadd.f32 %v2831, %v2919
        %v2921 = vpop.f32.mrf.mxu0
        %v2922 = vadd.f32 %v2833, %v2921
        %2923 = vmatmul.bf16.gmra.mxu0 %v1752
        %v2924 = vpop.f32.mrf.mxu0
        %v2925 = vadd.f32 %v2836, %v2924
        %v2926 = vpop.f32.mrf.mxu0
        %v2927 = vadd.f32 %v2838, %v2926
        %2928 = vmatmul.bf16.gmra.mxu0 %v1760
        %v2929 = vpop.f32.mrf.mxu0
        %v2930 = vadd.f32 %v2841, %v2929
        %v2931 = vpop.f32.mrf.mxu0
        %v2932 = vadd.f32 %v2843, %v2931
        %2933 = vmatmul.bf16.gmra.mxu0 %v1768
        %v2934 = vpop.f32.mrf.mxu0
        %v2935 = vadd.f32 %v2846, %v2934
        %v2936 = vpop.f32.mrf.mxu0
        %v2937 = vadd.f32 %v2848, %v2936
        %2938 = vmatmul.bf16.gmra.mxu0 %v1776
        %v2939 = vpop.f32.mrf.mxu0
        %v2940 = vadd.f32 %v2851, %v2939
        %v2941 = vpop.f32.mrf.mxu0
        %v2942 = vadd.f32 %v2853, %v2941
        %2943 = vmatmul.bf16.gmra.mxu0 %v1784
        %v2944 = vpop.f32.mrf.mxu0
        %v2945 = vadd.f32 %v2856, %v2944
        %v2946 = vpop.f32.mrf.mxu0
        %v2947 = vadd.f32 %v2858, %v2946
        %2948 = vmatmul.bf16.gmra.mxu0 %v1792
        %v2949 = vpop.f32.mrf.mxu0
        %v2950 = vadd.f32 %v2861, %v2949
        %v2951 = vpop.f32.mrf.mxu0
        %v2952 = vadd.f32 %v2863, %v2951
        %2953 = vmatmul.bf16.gmra.mxu0 %v1800
        %v2954 = vpop.f32.mrf.mxu0
        %v2955 = vadd.f32 %v2866, %v2954
        %v2956 = vpop.f32.mrf.mxu0
        %v2957 = vadd.f32 %v2868, %v2956
        %2958 = vmatmul.bf16.gmra.mxu0 %v1808
        %v2959 = vpop.f32.mrf.mxu0
        %v2960 = vadd.f32 %v2871, %v2959
        %v2961 = vpop.f32.mrf.mxu0
        %v2962 = vadd.f32 %v2873, %v2961
        %2963 = vmatmul.bf16.gmra.mxu0 %v1816
        %v2964 = vpop.f32.mrf.mxu0
        %v2965 = vadd.f32 %v2876, %v2964
        %v2966 = vpop.f32.mrf.mxu0
        %v2967 = vadd.f32 %v2878, %v2966
        %2968 = vmatmul.bf16.gmra.mxu0 %v1824
        %v2969 = vpop.f32.mrf.mxu0
        %v2970 = vadd.f32 %v2881, %v2969
        %v2971 = vpop.f32.mrf.mxu0
        %v2972 = vadd.f32 %v2883, %v2971
        %2973 = vmatmul.bf16.gmra.mxu0 %v1832
        %v2974 = vpop.f32.mrf.mxu0
        %v2975 = vadd.f32 %v2886, %v2974
        %v2976 = vpop.f32.mrf.mxu0
        %v2977 = vadd.f32 %v2888, %v2976
        %2978 = vmatmul.bf16.gmra.mxu0 %v1840
        %v2979 = vpop.f32.mrf.mxu0
        %v2980 = vadd.f32 %v2891, %v2979
        %v2981 = vpop.f32.mrf.mxu0
        %v2982 = vadd.f32 %v2893, %v2981
        %2983 = vmatmul.bf16.gmra.mxu0 %v1848
        %v2984 = vpop.f32.mrf.mxu0
        %v2985 = vadd.f32 %v2896, %v2984
        %v2986 = vpop.f32.mrf.mxu0
        %v2987 = vadd.f32 %v2898, %v2986
        %2988 = vmatmul.bf16.gmra.mxu0 %v1856
        %v2989 = vpop.f32.mrf.mxu0
        %v2990 = vadd.f32 %v2901, %v2989
        %v2991 = vpop.f32.mrf.mxu0
        %v2992 = vadd.f32 %v2903, %v2991
        %2993 = vmatmul.bf16.gmra.mxu0 %v1864
        %v2994 = vpop.f32.mrf.mxu0
        %v2995 = vadd.f32 %v2906, %v2994
        %v2996 = vpop.f32.mrf.mxu0
        %v2997 = vadd.f32 %v2908, %v2996
        %2998 = vdwg.mxu0
        %2999 = vmatpush.bf16.msra.mxu0 %v2465
        %3000 = vmatpush.bf16.msra.mxu0 %v2463
        %3001 = vmatpush.bf16.msra.mxu0 %v2461
        %3002 = vmatpush.bf16.msra.mxu0 %v2459
        %3003 = vmatpush.bf16.msra.mxu0 %v2457
        %3004 = vmatpush.bf16.msra.mxu0 %v2455
        %3005 = vmatpush.bf16.msra.mxu0 %v2453
        %3006 = vmatpush.bf16.msra.mxu0 %v2451
        %3007 = vmatmul.bf16.gmra.mxu0 %v1745
        %v3008 = vpop.f32.mrf.mxu0
        %v3009 = vadd.f32 %v2920, %v3008
        %v3010 = vpop.f32.mrf.mxu0
        %v3011 = vadd.f32 %v2922, %v3010
        %3012 = vmatmul.bf16.gmra.mxu0 %v1753
        %v3013 = vpop.f32.mrf.mxu0
        %v3014 = vadd.f32 %v2925, %v3013
        %v3015 = vpop.f32.mrf.mxu0
        %v3016 = vadd.f32 %v2927, %v3015
        %3017 = vmatmul.bf16.gmra.mxu0 %v1761
        %v3018 = vpop.f32.mrf.mxu0
        %v3019 = vadd.f32 %v2930, %v3018
        %v3020 = vpop.f32.mrf.mxu0
        %v3021 = vadd.f32 %v2932, %v3020
        %3022 = vmatmul.bf16.gmra.mxu0 %v1769
        %v3023 = vpop.f32.mrf.mxu0
        %v3024 = vadd.f32 %v2935, %v3023
        %v3025 = vpop.f32.mrf.mxu0
        %v3026 = vadd.f32 %v2937, %v3025
        %3027 = vmatmul.bf16.gmra.mxu0 %v1777
        %v3028 = vpop.f32.mrf.mxu0
        %v3029 = vadd.f32 %v2940, %v3028
        %v3030 = vpop.f32.mrf.mxu0
        %v3031 = vadd.f32 %v2942, %v3030
        %3032 = vmatmul.bf16.gmra.mxu0 %v1785
        %v3033 = vpop.f32.mrf.mxu0
        %v3034 = vadd.f32 %v2945, %v3033
        %v3035 = vpop.f32.mrf.mxu0
        %v3036 = vadd.f32 %v2947, %v3035
        %3037 = vmatmul.bf16.gmra.mxu0 %v1793
        %v3038 = vpop.f32.mrf.mxu0
        %v3039 = vadd.f32 %v2950, %v3038
        %v3040 = vpop.f32.mrf.mxu0
        %v3041 = vadd.f32 %v2952, %v3040
        %3042 = vmatmul.bf16.gmra.mxu0 %v1801
        %v3043 = vpop.f32.mrf.mxu0
        %v3044 = vadd.f32 %v2955, %v3043
        %v3045 = vpop.f32.mrf.mxu0
        %v3046 = vadd.f32 %v2957, %v3045
        %3047 = vmatmul.bf16.gmra.mxu0 %v1809
        %v3048 = vpop.f32.mrf.mxu0
        %v3049 = vadd.f32 %v2960, %v3048
        %v3050 = vpop.f32.mrf.mxu0
        %v3051 = vadd.f32 %v2962, %v3050
        %3052 = vmatmul.bf16.gmra.mxu0 %v1817
        %v3053 = vpop.f32.mrf.mxu0
        %v3054 = vadd.f32 %v2965, %v3053
        %v3055 = vpop.f32.mrf.mxu0
        %v3056 = vadd.f32 %v2967, %v3055
        %3057 = vmatmul.bf16.gmra.mxu0 %v1825
        %v3058 = vpop.f32.mrf.mxu0
        %v3059 = vadd.f32 %v2970, %v3058
        %v3060 = vpop.f32.mrf.mxu0
        %v3061 = vadd.f32 %v2972, %v3060
        %3062 = vmatmul.bf16.gmra.mxu0 %v1833
        %v3063 = vpop.f32.mrf.mxu0
        %v3064 = vadd.f32 %v2975, %v3063
        %v3065 = vpop.f32.mrf.mxu0
        %v3066 = vadd.f32 %v2977, %v3065
        %3067 = vmatmul.bf16.gmra.mxu0 %v1841
        %v3068 = vpop.f32.mrf.mxu0
        %v3069 = vadd.f32 %v2980, %v3068
        %v3070 = vpop.f32.mrf.mxu0
        %v3071 = vadd.f32 %v2982, %v3070
        %3072 = vmatmul.bf16.gmra.mxu0 %v1849
        %v3073 = vpop.f32.mrf.mxu0
        %v3074 = vadd.f32 %v2985, %v3073
        %v3075 = vpop.f32.mrf.mxu0
        %v3076 = vadd.f32 %v2987, %v3075
        %3077 = vmatmul.bf16.gmra.mxu0 %v1857
        %v3078 = vpop.f32.mrf.mxu0
        %v3079 = vadd.f32 %v2990, %v3078
        %v3080 = vpop.f32.mrf.mxu0
        %v3081 = vadd.f32 %v2992, %v3080
        %3082 = vmatmul.bf16.gmra.mxu0 %v1865
        %v3083 = vpop.f32.mrf.mxu0
        %v3084 = vadd.f32 %v2995, %v3083
        %v3085 = vpop.f32.mrf.mxu0
        %v3086 = vadd.f32 %v2997, %v3085
        %3087 = vdwg.mxu0
        %3088 = vmatpush.bf16.msra.mxu0 %v2481
        %3089 = vmatpush.bf16.msra.mxu0 %v2479
        %3090 = vmatpush.bf16.msra.mxu0 %v2477
        %3091 = vmatpush.bf16.msra.mxu0 %v2475
        %3092 = vmatpush.bf16.msra.mxu0 %v2473
        %3093 = vmatpush.bf16.msra.mxu0 %v2471
        %3094 = vmatpush.bf16.msra.mxu0 %v2469
        %3095 = vmatpush.bf16.msra.mxu0 %v2467
        %3096 = vmatmul.bf16.gmra.mxu0 %v1746
        %v3097 = vpop.f32.mrf.mxu0
        %v3098 = vadd.f32 %v3009, %v3097
        %v3099 = vpop.f32.mrf.mxu0
        %v3100 = vadd.f32 %v3011, %v3099
        %3101 = vmatmul.bf16.gmra.mxu0 %v1754
        %v3102 = vpop.f32.mrf.mxu0
        %v3103 = vadd.f32 %v3014, %v3102
        %v3104 = vpop.f32.mrf.mxu0
        %v3105 = vadd.f32 %v3016, %v3104
        %3106 = vmatmul.bf16.gmra.mxu0 %v1762
        %v3107 = vpop.f32.mrf.mxu0
        %v3108 = vadd.f32 %v3019, %v3107
        %v3109 = vpop.f32.mrf.mxu0
        %v3110 = vadd.f32 %v3021, %v3109
        %3111 = vmatmul.bf16.gmra.mxu0 %v1770
        %v3112 = vpop.f32.mrf.mxu0
        %v3113 = vadd.f32 %v3024, %v3112
        %v3114 = vpop.f32.mrf.mxu0
        %v3115 = vadd.f32 %v3026, %v3114
        %3116 = vmatmul.bf16.gmra.mxu0 %v1778
        %v3117 = vpop.f32.mrf.mxu0
        %v3118 = vadd.f32 %v3029, %v3117
        %v3119 = vpop.f32.mrf.mxu0
        %v3120 = vadd.f32 %v3031, %v3119
        %3121 = vmatmul.bf16.gmra.mxu0 %v1786
        %v3122 = vpop.f32.mrf.mxu0
        %v3123 = vadd.f32 %v3034, %v3122
        %v3124 = vpop.f32.mrf.mxu0
        %v3125 = vadd.f32 %v3036, %v3124
        %3126 = vmatmul.bf16.gmra.mxu0 %v1794
        %v3127 = vpop.f32.mrf.mxu0
        %v3128 = vadd.f32 %v3039, %v3127
        %v3129 = vpop.f32.mrf.mxu0
        %v3130 = vadd.f32 %v3041, %v3129
        %3131 = vmatmul.bf16.gmra.mxu0 %v1802
        %v3132 = vpop.f32.mrf.mxu0
        %v3133 = vadd.f32 %v3044, %v3132
        %v3134 = vpop.f32.mrf.mxu0
        %v3135 = vadd.f32 %v3046, %v3134
        %3136 = vmatmul.bf16.gmra.mxu0 %v1810
        %v3137 = vpop.f32.mrf.mxu0
        %v3138 = vadd.f32 %v3049, %v3137
        %v3139 = vpop.f32.mrf.mxu0
        %v3140 = vadd.f32 %v3051, %v3139
        %3141 = vmatmul.bf16.gmra.mxu0 %v1818
        %v3142 = vpop.f32.mrf.mxu0
        %v3143 = vadd.f32 %v3054, %v3142
        %v3144 = vpop.f32.mrf.mxu0
        %v3145 = vadd.f32 %v3056, %v3144
        %3146 = vmatmul.bf16.gmra.mxu0 %v1826
        %v3147 = vpop.f32.mrf.mxu0
        %v3148 = vadd.f32 %v3059, %v3147
        %v3149 = vpop.f32.mrf.mxu0
        %v3150 = vadd.f32 %v3061, %v3149
        %3151 = vmatmul.bf16.gmra.mxu0 %v1834
        %v3152 = vpop.f32.mrf.mxu0
        %v3153 = vadd.f32 %v3064, %v3152
        %v3154 = vpop.f32.mrf.mxu0
        %v3155 = vadd.f32 %v3066, %v3154
        %3156 = vmatmul.bf16.gmra.mxu0 %v1842
        %v3157 = vpop.f32.mrf.mxu0
        %v3158 = vadd.f32 %v3069, %v3157
        %v3159 = vpop.f32.mrf.mxu0
        %v3160 = vadd.f32 %v3071, %v3159
        %3161 = vmatmul.bf16.gmra.mxu0 %v1850
        %v3162 = vpop.f32.mrf.mxu0
        %v3163 = vadd.f32 %v3074, %v3162
        %v3164 = vpop.f32.mrf.mxu0
        %v3165 = vadd.f32 %v3076, %v3164
        %3166 = vmatmul.bf16.gmra.mxu0 %v1858
        %v3167 = vpop.f32.mrf.mxu0
        %v3168 = vadd.f32 %v3079, %v3167
        %v3169 = vpop.f32.mrf.mxu0
        %v3170 = vadd.f32 %v3081, %v3169
        %3171 = vmatmul.bf16.gmra.mxu0 %v1866
        %v3172 = vpop.f32.mrf.mxu0
        %v3173 = vadd.f32 %v3084, %v3172
        %v3174 = vpop.f32.mrf.mxu0
        %v3175 = vadd.f32 %v3086, %v3174
        %3176 = vdwg.mxu0
        %3177 = vmatpush.bf16.msra.mxu0 %v2497
        %3178 = vmatpush.bf16.msra.mxu0 %v2495
        %3179 = vmatpush.bf16.msra.mxu0 %v2493
        %3180 = vmatpush.bf16.msra.mxu0 %v2491
        %3181 = vmatpush.bf16.msra.mxu0 %v2489
        %3182 = vmatpush.bf16.msra.mxu0 %v2487
        %3183 = vmatpush.bf16.msra.mxu0 %v2485
        %3184 = vmatpush.bf16.msra.mxu0 %v2483
        %3185 = vmatmul.bf16.gmra.mxu0 %v1747
        %v3186 = vpop.f32.mrf.mxu0
        %v3187 = vadd.f32 %v3098, %v3186
        %v3188 = vpop.f32.mrf.mxu0
        %v3189 = vadd.f32 %v3100, %v3188
        %3190 = vmatmul.bf16.gmra.mxu0 %v1755
        %v3191 = vpop.f32.mrf.mxu0
        %v3192 = vadd.f32 %v3103, %v3191
        %v3193 = vpop.f32.mrf.mxu0
        %v3194 = vadd.f32 %v3105, %v3193
        %3195 = vmatmul.bf16.gmra.mxu0 %v1763
        %v3196 = vpop.f32.mrf.mxu0
        %v3197 = vadd.f32 %v3108, %v3196
        %v3198 = vpop.f32.mrf.mxu0
        %v3199 = vadd.f32 %v3110, %v3198
        %3200 = vmatmul.bf16.gmra.mxu0 %v1771
        %v3201 = vpop.f32.mrf.mxu0
        %v3202 = vadd.f32 %v3113, %v3201
        %v3203 = vpop.f32.mrf.mxu0
        %v3204 = vadd.f32 %v3115, %v3203
        %3205 = vmatmul.bf16.gmra.mxu0 %v1779
        %v3206 = vpop.f32.mrf.mxu0
        %v3207 = vadd.f32 %v3118, %v3206
        %v3208 = vpop.f32.mrf.mxu0
        %v3209 = vadd.f32 %v3120, %v3208
        %3210 = vmatmul.bf16.gmra.mxu0 %v1787
        %v3211 = vpop.f32.mrf.mxu0
        %v3212 = vadd.f32 %v3123, %v3211
        %v3213 = vpop.f32.mrf.mxu0
        %v3214 = vadd.f32 %v3125, %v3213
        %3215 = vmatmul.bf16.gmra.mxu0 %v1795
        %v3216 = vpop.f32.mrf.mxu0
        %v3217 = vadd.f32 %v3128, %v3216
        %v3218 = vpop.f32.mrf.mxu0
        %v3219 = vadd.f32 %v3130, %v3218
        %3220 = vmatmul.bf16.gmra.mxu0 %v1803
        %v3221 = vpop.f32.mrf.mxu0
        %v3222 = vadd.f32 %v3133, %v3221
        %v3223 = vpop.f32.mrf.mxu0
        %v3224 = vadd.f32 %v3135, %v3223
        %3225 = vmatmul.bf16.gmra.mxu0 %v1811
        %v3226 = vpop.f32.mrf.mxu0
        %v3227 = vadd.f32 %v3138, %v3226
        %v3228 = vpop.f32.mrf.mxu0
        %v3229 = vadd.f32 %v3140, %v3228
        %3230 = vmatmul.bf16.gmra.mxu0 %v1819
        %v3231 = vpop.f32.mrf.mxu0
        %v3232 = vadd.f32 %v3143, %v3231
        %v3233 = vpop.f32.mrf.mxu0
        %v3234 = vadd.f32 %v3145, %v3233
        %3235 = vmatmul.bf16.gmra.mxu0 %v1827
        %v3236 = vpop.f32.mrf.mxu0
        %v3237 = vadd.f32 %v3148, %v3236
        %v3238 = vpop.f32.mrf.mxu0
        %v3239 = vadd.f32 %v3150, %v3238
        %3240 = vmatmul.bf16.gmra.mxu0 %v1835
        %v3241 = vpop.f32.mrf.mxu0
        %v3242 = vadd.f32 %v3153, %v3241
        %v3243 = vpop.f32.mrf.mxu0
        %v3244 = vadd.f32 %v3155, %v3243
        %3245 = vmatmul.bf16.gmra.mxu0 %v1843
        %v3246 = vpop.f32.mrf.mxu0
        %v3247 = vadd.f32 %v3158, %v3246
        %v3248 = vpop.f32.mrf.mxu0
        %v3249 = vadd.f32 %v3160, %v3248
        %3250 = vmatmul.bf16.gmra.mxu0 %v1851
        %v3251 = vpop.f32.mrf.mxu0
        %v3252 = vadd.f32 %v3163, %v3251
        %v3253 = vpop.f32.mrf.mxu0
        %v3254 = vadd.f32 %v3165, %v3253
        %3255 = vmatmul.bf16.gmra.mxu0 %v1859
        %v3256 = vpop.f32.mrf.mxu0
        %v3257 = vadd.f32 %v3168, %v3256
        %v3258 = vpop.f32.mrf.mxu0
        %v3259 = vadd.f32 %v3170, %v3258
        %3260 = vmatmul.bf16.gmra.mxu0 %v1867
        %v3261 = vpop.f32.mrf.mxu0
        %v3262 = vadd.f32 %v3173, %v3261
        %v3263 = vpop.f32.mrf.mxu0
        %v3264 = vadd.f32 %v3175, %v3263
        %3265 = vdwg.mxu0
        %3266 = vmatpush.bf16.msra.mxu0 %v2513
        %3267 = vmatpush.bf16.msra.mxu0 %v2511
        %3268 = vmatpush.bf16.msra.mxu0 %v2509
        %3269 = vmatpush.bf16.msra.mxu0 %v2507
        %3270 = vmatpush.bf16.msra.mxu0 %v2505
        %3271 = vmatpush.bf16.msra.mxu0 %v2503
        %3272 = vmatpush.bf16.msra.mxu0 %v2501
        %3273 = vmatpush.bf16.msra.mxu0 %v2499
        %3274 = vmatmul.bf16.gmra.mxu0 %v1748
        %v3275 = vpop.f32.mrf.mxu0
        %v3276 = vadd.f32 %v3187, %v3275
        %v3277 = vpop.f32.mrf.mxu0
        %v3278 = vadd.f32 %v3189, %v3277
        %3279 = vmatmul.bf16.gmra.mxu0 %v1756
        %v3280 = vpop.f32.mrf.mxu0
        %v3281 = vadd.f32 %v3192, %v3280
        %v3282 = vpop.f32.mrf.mxu0
        %v3283 = vadd.f32 %v3194, %v3282
        %3284 = vmatmul.bf16.gmra.mxu0 %v1764
        %v3285 = vpop.f32.mrf.mxu0
        %v3286 = vadd.f32 %v3197, %v3285
        %v3287 = vpop.f32.mrf.mxu0
        %v3288 = vadd.f32 %v3199, %v3287
        %3289 = vmatmul.bf16.gmra.mxu0 %v1772
        %v3290 = vpop.f32.mrf.mxu0
        %v3291 = vadd.f32 %v3202, %v3290
        %v3292 = vpop.f32.mrf.mxu0
        %v3293 = vadd.f32 %v3204, %v3292
        %3294 = vmatmul.bf16.gmra.mxu0 %v1780
        %v3295 = vpop.f32.mrf.mxu0
        %v3296 = vadd.f32 %v3207, %v3295
        %v3297 = vpop.f32.mrf.mxu0
        %v3298 = vadd.f32 %v3209, %v3297
        %3299 = vmatmul.bf16.gmra.mxu0 %v1788
        %v3300 = vpop.f32.mrf.mxu0
        %v3301 = vadd.f32 %v3212, %v3300
        %v3302 = vpop.f32.mrf.mxu0
        %v3303 = vadd.f32 %v3214, %v3302
        %3304 = vmatmul.bf16.gmra.mxu0 %v1796
        %v3305 = vpop.f32.mrf.mxu0
        %v3306 = vadd.f32 %v3217, %v3305
        %v3307 = vpop.f32.mrf.mxu0
        %v3308 = vadd.f32 %v3219, %v3307
        %3309 = vmatmul.bf16.gmra.mxu0 %v1804
        %v3310 = vpop.f32.mrf.mxu0
        %v3311 = vadd.f32 %v3222, %v3310
        %v3312 = vpop.f32.mrf.mxu0
        %v3313 = vadd.f32 %v3224, %v3312
        %3314 = vmatmul.bf16.gmra.mxu0 %v1812
        %v3315 = vpop.f32.mrf.mxu0
        %v3316 = vadd.f32 %v3227, %v3315
        %v3317 = vpop.f32.mrf.mxu0
        %v3318 = vadd.f32 %v3229, %v3317
        %3319 = vmatmul.bf16.gmra.mxu0 %v1820
        %v3320 = vpop.f32.mrf.mxu0
        %v3321 = vadd.f32 %v3232, %v3320
        %v3322 = vpop.f32.mrf.mxu0
        %v3323 = vadd.f32 %v3234, %v3322
        %3324 = vmatmul.bf16.gmra.mxu0 %v1828
        %v3325 = vpop.f32.mrf.mxu0
        %v3326 = vadd.f32 %v3237, %v3325
        %v3327 = vpop.f32.mrf.mxu0
        %v3328 = vadd.f32 %v3239, %v3327
        %3329 = vmatmul.bf16.gmra.mxu0 %v1836
        %v3330 = vpop.f32.mrf.mxu0
        %v3331 = vadd.f32 %v3242, %v3330
        %v3332 = vpop.f32.mrf.mxu0
        %v3333 = vadd.f32 %v3244, %v3332
        %3334 = vmatmul.bf16.gmra.mxu0 %v1844
        %v3335 = vpop.f32.mrf.mxu0
        %v3336 = vadd.f32 %v3247, %v3335
        %v3337 = vpop.f32.mrf.mxu0
        %v3338 = vadd.f32 %v3249, %v3337
        %3339 = vmatmul.bf16.gmra.mxu0 %v1852
        %v3340 = vpop.f32.mrf.mxu0
        %v3341 = vadd.f32 %v3252, %v3340
        %v3342 = vpop.f32.mrf.mxu0
        %v3343 = vadd.f32 %v3254, %v3342
        %3344 = vmatmul.bf16.gmra.mxu0 %v1860
        %v3345 = vpop.f32.mrf.mxu0
        %v3346 = vadd.f32 %v3257, %v3345
        %v3347 = vpop.f32.mrf.mxu0
        %v3348 = vadd.f32 %v3259, %v3347
        %3349 = vmatmul.bf16.gmra.mxu0 %v1868
        %v3350 = vpop.f32.mrf.mxu0
        %v3351 = vadd.f32 %v3262, %v3350
        %v3352 = vpop.f32.mrf.mxu0
        %v3353 = vadd.f32 %v3264, %v3352
        %3354 = vdwg.mxu0
        %3355 = vmatpush.bf16.msra.mxu0 %v2402
        %3356 = vmatpush.bf16.msra.mxu0 %v2400
        %3357 = vmatpush.bf16.msra.mxu0 %v2398
        %3358 = vmatpush.bf16.msra.mxu0 %v2396
        %3359 = vmatpush.bf16.msra.mxu0 %v2394
        %3360 = vmatpush.bf16.msra.mxu0 %v2392
        %3361 = vmatpush.bf16.msra.mxu0 %v2390
        %3362 = vmatpush.bf16.msra.mxu0 %v2388
        %3363 = vmatmul.bf16.gmra.mxu0 %v1741
        %v3364 = vpop.f32.mrf.mxu0
        %v3365 = vadd.f32 %v2000, %v3364
        %v3366 = vpop.f32.mrf.mxu0
        %v3367 = vadd.f32 %v2000, %v3366
        %3368 = vmatmul.bf16.gmra.mxu0 %v1749
        %v3369 = vpop.f32.mrf.mxu0
        %v3370 = vadd.f32 %v2000, %v3369
        %v3371 = vpop.f32.mrf.mxu0
        %v3372 = vadd.f32 %v2000, %v3371
        %3373 = vmatmul.bf16.gmra.mxu0 %v1757
        %v3374 = vpop.f32.mrf.mxu0
        %v3375 = vadd.f32 %v2000, %v3374
        %v3376 = vpop.f32.mrf.mxu0
        %v3377 = vadd.f32 %v2000, %v3376
        %3378 = vmatmul.bf16.gmra.mxu0 %v1765
        %v3379 = vpop.f32.mrf.mxu0
        %v3380 = vadd.f32 %v2000, %v3379
        %v3381 = vpop.f32.mrf.mxu0
        %v3382 = vadd.f32 %v2000, %v3381
        %3383 = vmatmul.bf16.gmra.mxu0 %v1773
        %v3384 = vpop.f32.mrf.mxu0
        %v3385 = vadd.f32 %v2000, %v3384
        %v3386 = vpop.f32.mrf.mxu0
        %v3387 = vadd.f32 %v2000, %v3386
        %3388 = vmatmul.bf16.gmra.mxu0 %v1781
        %v3389 = vpop.f32.mrf.mxu0
        %v3390 = vadd.f32 %v2000, %v3389
        %v3391 = vpop.f32.mrf.mxu0
        %v3392 = vadd.f32 %v2000, %v3391
        %3393 = vmatmul.bf16.gmra.mxu0 %v1789
        %v3394 = vpop.f32.mrf.mxu0
        %v3395 = vadd.f32 %v2000, %v3394
        %v3396 = vpop.f32.mrf.mxu0
        %v3397 = vadd.f32 %v2000, %v3396
        %3398 = vmatmul.bf16.gmra.mxu0 %v1797
        %v3399 = vpop.f32.mrf.mxu0
        %v3400 = vadd.f32 %v2000, %v3399
        %v3401 = vpop.f32.mrf.mxu0
        %v3402 = vadd.f32 %v2000, %v3401
        %3403 = vmatmul.bf16.gmra.mxu0 %v1805
        %v3404 = vpop.f32.mrf.mxu0
        %v3405 = vadd.f32 %v2000, %v3404
        %v3406 = vpop.f32.mrf.mxu0
        %v3407 = vadd.f32 %v2000, %v3406
        %3408 = vmatmul.bf16.gmra.mxu0 %v1813
        %v3409 = vpop.f32.mrf.mxu0
        %v3410 = vadd.f32 %v2000, %v3409
        %v3411 = vpop.f32.mrf.mxu0
        %v3412 = vadd.f32 %v2000, %v3411
        %3413 = vmatmul.bf16.gmra.mxu0 %v1821
        %v3414 = vpop.f32.mrf.mxu0
        %v3415 = vadd.f32 %v2000, %v3414
        %v3416 = vpop.f32.mrf.mxu0
        %v3417 = vadd.f32 %v2000, %v3416
        %3418 = vmatmul.bf16.gmra.mxu0 %v1829
        %v3419 = vpop.f32.mrf.mxu0
        %v3420 = vadd.f32 %v2000, %v3419
        %v3421 = vpop.f32.mrf.mxu0
        %v3422 = vadd.f32 %v2000, %v3421
        %3423 = vmatmul.bf16.gmra.mxu0 %v1837
        %v3424 = vpop.f32.mrf.mxu0
        %v3425 = vadd.f32 %v2000, %v3424
        %v3426 = vpop.f32.mrf.mxu0
        %v3427 = vadd.f32 %v2000, %v3426
        %3428 = vmatmul.bf16.gmra.mxu0 %v1845
        %v3429 = vpop.f32.mrf.mxu0
        %v3430 = vadd.f32 %v2000, %v3429
        %v3431 = vpop.f32.mrf.mxu0
        %v3432 = vadd.f32 %v2000, %v3431
        %3433 = vmatmul.bf16.gmra.mxu0 %v1853
        %v3434 = vpop.f32.mrf.mxu0
        %v3435 = vadd.f32 %v2000, %v3434
        %v3436 = vpop.f32.mrf.mxu0
        %v3437 = vadd.f32 %v2000, %v3436
        %3438 = vmatmul.bf16.gmra.mxu0 %v1861
        %v3439 = vpop.f32.mrf.mxu0
        %v3440 = vadd.f32 %v2000, %v3439
        %v3441 = vpop.f32.mrf.mxu0
        %v3442 = vadd.f32 %v2000, %v3441
        %3443 = vdwg.mxu0
        %3444 = vmatpush.bf16.msra.mxu0 %v2418
        %3445 = vmatpush.bf16.msra.mxu0 %v2416
        %3446 = vmatpush.bf16.msra.mxu0 %v2414
        %3447 = vmatpush.bf16.msra.mxu0 %v2412
        %3448 = vmatpush.bf16.msra.mxu0 %v2410
        %3449 = vmatpush.bf16.msra.mxu0 %v2408
        %3450 = vmatpush.bf16.msra.mxu0 %v2406
        %3451 = vmatpush.bf16.msra.mxu0 %v2404
        %3452 = vmatmul.bf16.gmra.mxu0 %v1742
        %v3453 = vpop.f32.mrf.mxu0
        %v3454 = vadd.f32 %v3365, %v3453
        %v3455 = vpop.f32.mrf.mxu0
        %v3456 = vadd.f32 %v3367, %v3455
        %3457 = vmatmul.bf16.gmra.mxu0 %v1750
        %v3458 = vpop.f32.mrf.mxu0
        %v3459 = vadd.f32 %v3370, %v3458
        %v3460 = vpop.f32.mrf.mxu0
        %v3461 = vadd.f32 %v3372, %v3460
        %3462 = vmatmul.bf16.gmra.mxu0 %v1758
        %v3463 = vpop.f32.mrf.mxu0
        %v3464 = vadd.f32 %v3375, %v3463
        %v3465 = vpop.f32.mrf.mxu0
        %v3466 = vadd.f32 %v3377, %v3465
        %3467 = vmatmul.bf16.gmra.mxu0 %v1766
        %v3468 = vpop.f32.mrf.mxu0
        %v3469 = vadd.f32 %v3380, %v3468
        %v3470 = vpop.f32.mrf.mxu0
        %v3471 = vadd.f32 %v3382, %v3470
        %3472 = vmatmul.bf16.gmra.mxu0 %v1774
        %v3473 = vpop.f32.mrf.mxu0
        %v3474 = vadd.f32 %v3385, %v3473
        %v3475 = vpop.f32.mrf.mxu0
        %v3476 = vadd.f32 %v3387, %v3475
        %3477 = vmatmul.bf16.gmra.mxu0 %v1782
        %v3478 = vpop.f32.mrf.mxu0
        %v3479 = vadd.f32 %v3390, %v3478
        %v3480 = vpop.f32.mrf.mxu0
        %v3481 = vadd.f32 %v3392, %v3480
        %3482 = vmatmul.bf16.gmra.mxu0 %v1790
        %v3483 = vpop.f32.mrf.mxu0
        %v3484 = vadd.f32 %v3395, %v3483
        %v3485 = vpop.f32.mrf.mxu0
        %v3486 = vadd.f32 %v3397, %v3485
        %3487 = vmatmul.bf16.gmra.mxu0 %v1798
        %v3488 = vpop.f32.mrf.mxu0
        %v3489 = vadd.f32 %v3400, %v3488
        %v3490 = vpop.f32.mrf.mxu0
        %v3491 = vadd.f32 %v3402, %v3490
        %3492 = vmatmul.bf16.gmra.mxu0 %v1806
        %v3493 = vpop.f32.mrf.mxu0
        %v3494 = vadd.f32 %v3405, %v3493
        %v3495 = vpop.f32.mrf.mxu0
        %v3496 = vadd.f32 %v3407, %v3495
        %3497 = vmatmul.bf16.gmra.mxu0 %v1814
        %v3498 = vpop.f32.mrf.mxu0
        %v3499 = vadd.f32 %v3410, %v3498
        %v3500 = vpop.f32.mrf.mxu0
        %v3501 = vadd.f32 %v3412, %v3500
        %3502 = vmatmul.bf16.gmra.mxu0 %v1822
        %v3503 = vpop.f32.mrf.mxu0
        %v3504 = vadd.f32 %v3415, %v3503
        %v3505 = vpop.f32.mrf.mxu0
        %v3506 = vadd.f32 %v3417, %v3505
        %3507 = vmatmul.bf16.gmra.mxu0 %v1830
        %v3508 = vpop.f32.mrf.mxu0
        %v3509 = vadd.f32 %v3420, %v3508
        %v3510 = vpop.f32.mrf.mxu0
        %v3511 = vadd.f32 %v3422, %v3510
        %3512 = vmatmul.bf16.gmra.mxu0 %v1838
        %v3513 = vpop.f32.mrf.mxu0
        %v3514 = vadd.f32 %v3425, %v3513
        %v3515 = vpop.f32.mrf.mxu0
        %v3516 = vadd.f32 %v3427, %v3515
        %3517 = vmatmul.bf16.gmra.mxu0 %v1846
        %v3518 = vpop.f32.mrf.mxu0
        %v3519 = vadd.f32 %v3430, %v3518
        %v3520 = vpop.f32.mrf.mxu0
        %v3521 = vadd.f32 %v3432, %v3520
        %3522 = vmatmul.bf16.gmra.mxu0 %v1854
        %v3523 = vpop.f32.mrf.mxu0
        %v3524 = vadd.f32 %v3435, %v3523
        %v3525 = vpop.f32.mrf.mxu0
        %v3526 = vadd.f32 %v3437, %v3525
        %3527 = vmatmul.bf16.gmra.mxu0 %v1862
        %v3528 = vpop.f32.mrf.mxu0
        %v3529 = vadd.f32 %v3440, %v3528
        %v3530 = vpop.f32.mrf.mxu0
        %v3531 = vadd.f32 %v3442, %v3530
        %3532 = vdwg.mxu0
        %3533 = vmatpush.bf16.msra.mxu0 %v2434
        %3534 = vmatpush.bf16.msra.mxu0 %v2432
        %3535 = vmatpush.bf16.msra.mxu0 %v2430
        %3536 = vmatpush.bf16.msra.mxu0 %v2428
        %3537 = vmatpush.bf16.msra.mxu0 %v2426
        %3538 = vmatpush.bf16.msra.mxu0 %v2424
        %3539 = vmatpush.bf16.msra.mxu0 %v2422
        %3540 = vmatpush.bf16.msra.mxu0 %v2420
        %3541 = vmatmul.bf16.gmra.mxu0 %v1743
        %v3542 = vpop.f32.mrf.mxu0
        %v3543 = vadd.f32 %v3454, %v3542
        %v3544 = vpop.f32.mrf.mxu0
        %v3545 = vadd.f32 %v3456, %v3544
        %3546 = vmatmul.bf16.gmra.mxu0 %v1751
        %v3547 = vpop.f32.mrf.mxu0
        %v3548 = vadd.f32 %v3459, %v3547
        %v3549 = vpop.f32.mrf.mxu0
        %v3550 = vadd.f32 %v3461, %v3549
        %3551 = vmatmul.bf16.gmra.mxu0 %v1759
        %v3552 = vpop.f32.mrf.mxu0
        %v3553 = vadd.f32 %v3464, %v3552
        %v3554 = vpop.f32.mrf.mxu0
        %v3555 = vadd.f32 %v3466, %v3554
        %3556 = vmatmul.bf16.gmra.mxu0 %v1767
        %v3557 = vpop.f32.mrf.mxu0
        %v3558 = vadd.f32 %v3469, %v3557
        %v3559 = vpop.f32.mrf.mxu0
        %v3560 = vadd.f32 %v3471, %v3559
        %3561 = vmatmul.bf16.gmra.mxu0 %v1775
        %v3562 = vpop.f32.mrf.mxu0
        %v3563 = vadd.f32 %v3474, %v3562
        %v3564 = vpop.f32.mrf.mxu0
        %v3565 = vadd.f32 %v3476, %v3564
        %3566 = vmatmul.bf16.gmra.mxu0 %v1783
        %v3567 = vpop.f32.mrf.mxu0
        %v3568 = vadd.f32 %v3479, %v3567
        %v3569 = vpop.f32.mrf.mxu0
        %v3570 = vadd.f32 %v3481, %v3569
        %3571 = vmatmul.bf16.gmra.mxu0 %v1791
        %v3572 = vpop.f32.mrf.mxu0
        %v3573 = vadd.f32 %v3484, %v3572
        %v3574 = vpop.f32.mrf.mxu0
        %v3575 = vadd.f32 %v3486, %v3574
        %3576 = vmatmul.bf16.gmra.mxu0 %v1799
        %v3577 = vpop.f32.mrf.mxu0
        %v3578 = vadd.f32 %v3489, %v3577
        %v3579 = vpop.f32.mrf.mxu0
        %v3580 = vadd.f32 %v3491, %v3579
        %3581 = vmatmul.bf16.gmra.mxu0 %v1807
        %v3582 = vpop.f32.mrf.mxu0
        %v3583 = vadd.f32 %v3494, %v3582
        %v3584 = vpop.f32.mrf.mxu0
        %v3585 = vadd.f32 %v3496, %v3584
        %3586 = vmatmul.bf16.gmra.mxu0 %v1815
        %v3587 = vpop.f32.mrf.mxu0
        %v3588 = vadd.f32 %v3499, %v3587
        %v3589 = vpop.f32.mrf.mxu0
        %v3590 = vadd.f32 %v3501, %v3589
        %3591 = vmatmul.bf16.gmra.mxu0 %v1823
        %v3592 = vpop.f32.mrf.mxu0
        %v3593 = vadd.f32 %v3504, %v3592
        %v3594 = vpop.f32.mrf.mxu0
        %v3595 = vadd.f32 %v3506, %v3594
        %3596 = vmatmul.bf16.gmra.mxu0 %v1831
        %v3597 = vpop.f32.mrf.mxu0
        %v3598 = vadd.f32 %v3509, %v3597
        %v3599 = vpop.f32.mrf.mxu0
        %v3600 = vadd.f32 %v3511, %v3599
        %3601 = vmatmul.bf16.gmra.mxu0 %v1839
        %v3602 = vpop.f32.mrf.mxu0
        %v3603 = vadd.f32 %v3514, %v3602
        %v3604 = vpop.f32.mrf.mxu0
        %v3605 = vadd.f32 %v3516, %v3604
        %3606 = vmatmul.bf16.gmra.mxu0 %v1847
        %v3607 = vpop.f32.mrf.mxu0
        %v3608 = vadd.f32 %v3519, %v3607
        %v3609 = vpop.f32.mrf.mxu0
        %v3610 = vadd.f32 %v3521, %v3609
        %3611 = vmatmul.bf16.gmra.mxu0 %v1855
        %v3612 = vpop.f32.mrf.mxu0
        %v3613 = vadd.f32 %v3524, %v3612
        %v3614 = vpop.f32.mrf.mxu0
        %v3615 = vadd.f32 %v3526, %v3614
        %3616 = vmatmul.bf16.gmra.mxu0 %v1863
        %v3617 = vpop.f32.mrf.mxu0
        %v3618 = vadd.f32 %v3529, %v3617
        %v3619 = vpop.f32.mrf.mxu0
        %v3620 = vadd.f32 %v3531, %v3619
        %3621 = vdwg.mxu0
        %3622 = vmatpush.bf16.msra.mxu0 %v2450
        %3623 = vmatpush.bf16.msra.mxu0 %v2448
        %3624 = vmatpush.bf16.msra.mxu0 %v2446
        %3625 = vmatpush.bf16.msra.mxu0 %v2444
        %3626 = vmatpush.bf16.msra.mxu0 %v2442
        %3627 = vmatpush.bf16.msra.mxu0 %v2440
        %3628 = vmatpush.bf16.msra.mxu0 %v2438
        %3629 = vmatpush.bf16.msra.mxu0 %v2436
        %3630 = vmatmul.bf16.gmra.mxu0 %v1744
        %v3631 = vpop.f32.mrf.mxu0
        %v3632 = vadd.f32 %v3543, %v3631
        %v3633 = vpop.f32.mrf.mxu0
        %v3634 = vadd.f32 %v3545, %v3633
        %3635 = vmatmul.bf16.gmra.mxu0 %v1752
        %v3636 = vpop.f32.mrf.mxu0
        %v3637 = vadd.f32 %v3548, %v3636
        %v3638 = vpop.f32.mrf.mxu0
        %v3639 = vadd.f32 %v3550, %v3638
        %3640 = vmatmul.bf16.gmra.mxu0 %v1760
        %v3641 = vpop.f32.mrf.mxu0
        %v3642 = vadd.f32 %v3553, %v3641
        %v3643 = vpop.f32.mrf.mxu0
        %v3644 = vadd.f32 %v3555, %v3643
        %3645 = vmatmul.bf16.gmra.mxu0 %v1768
        %v3646 = vpop.f32.mrf.mxu0
        %v3647 = vadd.f32 %v3558, %v3646
        %v3648 = vpop.f32.mrf.mxu0
        %v3649 = vadd.f32 %v3560, %v3648
        %3650 = vmatmul.bf16.gmra.mxu0 %v1776
        %v3651 = vpop.f32.mrf.mxu0
        %v3652 = vadd.f32 %v3563, %v3651
        %v3653 = vpop.f32.mrf.mxu0
        %v3654 = vadd.f32 %v3565, %v3653
        %3655 = vmatmul.bf16.gmra.mxu0 %v1784
        %v3656 = vpop.f32.mrf.mxu0
        %v3657 = vadd.f32 %v3568, %v3656
        %v3658 = vpop.f32.mrf.mxu0
        %v3659 = vadd.f32 %v3570, %v3658
        %3660 = vmatmul.bf16.gmra.mxu0 %v1792
        %v3661 = vpop.f32.mrf.mxu0
        %v3662 = vadd.f32 %v3573, %v3661
        %v3663 = vpop.f32.mrf.mxu0
        %v3664 = vadd.f32 %v3575, %v3663
        %3665 = vmatmul.bf16.gmra.mxu0 %v1800
        %v3666 = vpop.f32.mrf.mxu0
        %v3667 = vadd.f32 %v3578, %v3666
        %v3668 = vpop.f32.mrf.mxu0
        %v3669 = vadd.f32 %v3580, %v3668
        %3670 = vmatmul.bf16.gmra.mxu0 %v1808
        %v3671 = vpop.f32.mrf.mxu0
        %v3672 = vadd.f32 %v3583, %v3671
        %v3673 = vpop.f32.mrf.mxu0
        %v3674 = vadd.f32 %v3585, %v3673
        %3675 = vmatmul.bf16.gmra.mxu0 %v1816
        %v3676 = vpop.f32.mrf.mxu0
        %v3677 = vadd.f32 %v3588, %v3676
        %v3678 = vpop.f32.mrf.mxu0
        %v3679 = vadd.f32 %v3590, %v3678
        %3680 = vmatmul.bf16.gmra.mxu0 %v1824
        %v3681 = vpop.f32.mrf.mxu0
        %v3682 = vadd.f32 %v3593, %v3681
        %v3683 = vpop.f32.mrf.mxu0
        %v3684 = vadd.f32 %v3595, %v3683
        %3685 = vmatmul.bf16.gmra.mxu0 %v1832
        %v3686 = vpop.f32.mrf.mxu0
        %v3687 = vadd.f32 %v3598, %v3686
        %v3688 = vpop.f32.mrf.mxu0
        %v3689 = vadd.f32 %v3600, %v3688
        %3690 = vmatmul.bf16.gmra.mxu0 %v1840
        %v3691 = vpop.f32.mrf.mxu0
        %v3692 = vadd.f32 %v3603, %v3691
        %v3693 = vpop.f32.mrf.mxu0
        %v3694 = vadd.f32 %v3605, %v3693
        %3695 = vmatmul.bf16.gmra.mxu0 %v1848
        %v3696 = vpop.f32.mrf.mxu0
        %v3697 = vadd.f32 %v3608, %v3696
        %v3698 = vpop.f32.mrf.mxu0
        %v3699 = vadd.f32 %v3610, %v3698
        %3700 = vmatmul.bf16.gmra.mxu0 %v1856
        %v3701 = vpop.f32.mrf.mxu0
        %v3702 = vadd.f32 %v3613, %v3701
        %v3703 = vpop.f32.mrf.mxu0
        %v3704 = vadd.f32 %v3615, %v3703
        %3705 = vmatmul.bf16.gmra.mxu0 %v1864
        %v3706 = vpop.f32.mrf.mxu0
        %v3707 = vadd.f32 %v3618, %v3706
        %v3708 = vpop.f32.mrf.mxu0
        %v3709 = vadd.f32 %v3620, %v3708
        %3710 = vdwg.mxu0
        %3711 = vmatpush.bf16.msra.mxu0 %v2466
        %3712 = vmatpush.bf16.msra.mxu0 %v2464
        %3713 = vmatpush.bf16.msra.mxu0 %v2462
        %3714 = vmatpush.bf16.msra.mxu0 %v2460
        %3715 = vmatpush.bf16.msra.mxu0 %v2458
        %3716 = vmatpush.bf16.msra.mxu0 %v2456
        %3717 = vmatpush.bf16.msra.mxu0 %v2454
        %3718 = vmatpush.bf16.msra.mxu0 %v2452
        %3719 = vmatmul.bf16.gmra.mxu0 %v1745
        %v3720 = vpop.f32.mrf.mxu0
        %v3721 = vadd.f32 %v3632, %v3720
        %v3722 = vpop.f32.mrf.mxu0
        %v3723 = vadd.f32 %v3634, %v3722
        %3724 = vmatmul.bf16.gmra.mxu0 %v1753
        %v3725 = vpop.f32.mrf.mxu0
        %v3726 = vadd.f32 %v3637, %v3725
        %v3727 = vpop.f32.mrf.mxu0
        %v3728 = vadd.f32 %v3639, %v3727
        %3729 = vmatmul.bf16.gmra.mxu0 %v1761
        %v3730 = vpop.f32.mrf.mxu0
        %v3731 = vadd.f32 %v3642, %v3730
        %v3732 = vpop.f32.mrf.mxu0
        %v3733 = vadd.f32 %v3644, %v3732
        %3734 = vmatmul.bf16.gmra.mxu0 %v1769
        %v3735 = vpop.f32.mrf.mxu0
        %v3736 = vadd.f32 %v3647, %v3735
        %v3737 = vpop.f32.mrf.mxu0
        %v3738 = vadd.f32 %v3649, %v3737
        %3739 = vmatmul.bf16.gmra.mxu0 %v1777
        %v3740 = vpop.f32.mrf.mxu0
        %v3741 = vadd.f32 %v3652, %v3740
        %v3742 = vpop.f32.mrf.mxu0
        %v3743 = vadd.f32 %v3654, %v3742
        %3744 = vmatmul.bf16.gmra.mxu0 %v1785
        %v3745 = vpop.f32.mrf.mxu0
        %v3746 = vadd.f32 %v3657, %v3745
        %v3747 = vpop.f32.mrf.mxu0
        %v3748 = vadd.f32 %v3659, %v3747
        %3749 = vmatmul.bf16.gmra.mxu0 %v1793
        %v3750 = vpop.f32.mrf.mxu0
        %v3751 = vadd.f32 %v3662, %v3750
        %v3752 = vpop.f32.mrf.mxu0
        %v3753 = vadd.f32 %v3664, %v3752
        %3754 = vmatmul.bf16.gmra.mxu0 %v1801
        %v3755 = vpop.f32.mrf.mxu0
        %v3756 = vadd.f32 %v3667, %v3755
        %v3757 = vpop.f32.mrf.mxu0
        %v3758 = vadd.f32 %v3669, %v3757
        %3759 = vmatmul.bf16.gmra.mxu0 %v1809
        %v3760 = vpop.f32.mrf.mxu0
        %v3761 = vadd.f32 %v3672, %v3760
        %v3762 = vpop.f32.mrf.mxu0
        %v3763 = vadd.f32 %v3674, %v3762
        %3764 = vmatmul.bf16.gmra.mxu0 %v1817
        %v3765 = vpop.f32.mrf.mxu0
        %v3766 = vadd.f32 %v3677, %v3765
        %v3767 = vpop.f32.mrf.mxu0
        %v3768 = vadd.f32 %v3679, %v3767
        %3769 = vmatmul.bf16.gmra.mxu0 %v1825
        %v3770 = vpop.f32.mrf.mxu0
        %v3771 = vadd.f32 %v3682, %v3770
        %v3772 = vpop.f32.mrf.mxu0
        %v3773 = vadd.f32 %v3684, %v3772
        %3774 = vmatmul.bf16.gmra.mxu0 %v1833
        %v3775 = vpop.f32.mrf.mxu0
        %v3776 = vadd.f32 %v3687, %v3775
        %v3777 = vpop.f32.mrf.mxu0
        %v3778 = vadd.f32 %v3689, %v3777
        %3779 = vmatmul.bf16.gmra.mxu0 %v1841
        %v3780 = vpop.f32.mrf.mxu0
        %v3781 = vadd.f32 %v3692, %v3780
        %v3782 = vpop.f32.mrf.mxu0
        %v3783 = vadd.f32 %v3694, %v3782
        %3784 = vmatmul.bf16.gmra.mxu0 %v1849
        %v3785 = vpop.f32.mrf.mxu0
        %v3786 = vadd.f32 %v3697, %v3785
        %v3787 = vpop.f32.mrf.mxu0
        %v3788 = vadd.f32 %v3699, %v3787
        %3789 = vmatmul.bf16.gmra.mxu0 %v1857
        %v3790 = vpop.f32.mrf.mxu0
        %v3791 = vadd.f32 %v3702, %v3790
        %v3792 = vpop.f32.mrf.mxu0
        %v3793 = vadd.f32 %v3704, %v3792
        %3794 = vmatmul.bf16.gmra.mxu0 %v1865
        %v3795 = vpop.f32.mrf.mxu0
        %v3796 = vadd.f32 %v3707, %v3795
        %v3797 = vpop.f32.mrf.mxu0
        %v3798 = vadd.f32 %v3709, %v3797
        %3799 = vdwg.mxu0
        %3800 = vmatpush.bf16.msra.mxu0 %v2482
        %3801 = vmatpush.bf16.msra.mxu0 %v2480
        %3802 = vmatpush.bf16.msra.mxu0 %v2478
        %3803 = vmatpush.bf16.msra.mxu0 %v2476
        %3804 = vmatpush.bf16.msra.mxu0 %v2474
        %3805 = vmatpush.bf16.msra.mxu0 %v2472
        %3806 = vmatpush.bf16.msra.mxu0 %v2470
        %3807 = vmatpush.bf16.msra.mxu0 %v2468
        %3808 = vmatmul.bf16.gmra.mxu0 %v1746
        %v3809 = vpop.f32.mrf.mxu0
        %v3810 = vadd.f32 %v3721, %v3809
        %v3811 = vpop.f32.mrf.mxu0
        %v3812 = vadd.f32 %v3723, %v3811
        %3813 = vmatmul.bf16.gmra.mxu0 %v1754
        %v3814 = vpop.f32.mrf.mxu0
        %v3815 = vadd.f32 %v3726, %v3814
        %v3816 = vpop.f32.mrf.mxu0
        %v3817 = vadd.f32 %v3728, %v3816
        %3818 = vmatmul.bf16.gmra.mxu0 %v1762
        %v3819 = vpop.f32.mrf.mxu0
        %v3820 = vadd.f32 %v3731, %v3819
        %v3821 = vpop.f32.mrf.mxu0
        %v3822 = vadd.f32 %v3733, %v3821
        %3823 = vmatmul.bf16.gmra.mxu0 %v1770
        %v3824 = vpop.f32.mrf.mxu0
        %v3825 = vadd.f32 %v3736, %v3824
        %v3826 = vpop.f32.mrf.mxu0
        %v3827 = vadd.f32 %v3738, %v3826
        %3828 = vmatmul.bf16.gmra.mxu0 %v1778
        %v3829 = vpop.f32.mrf.mxu0
        %v3830 = vadd.f32 %v3741, %v3829
        %v3831 = vpop.f32.mrf.mxu0
        %v3832 = vadd.f32 %v3743, %v3831
        %3833 = vmatmul.bf16.gmra.mxu0 %v1786
        %v3834 = vpop.f32.mrf.mxu0
        %v3835 = vadd.f32 %v3746, %v3834
        %v3836 = vpop.f32.mrf.mxu0
        %v3837 = vadd.f32 %v3748, %v3836
        %3838 = vmatmul.bf16.gmra.mxu0 %v1794
        %v3839 = vpop.f32.mrf.mxu0
        %v3840 = vadd.f32 %v3751, %v3839
        %v3841 = vpop.f32.mrf.mxu0
        %v3842 = vadd.f32 %v3753, %v3841
        %3843 = vmatmul.bf16.gmra.mxu0 %v1802
        %v3844 = vpop.f32.mrf.mxu0
        %v3845 = vadd.f32 %v3756, %v3844
        %v3846 = vpop.f32.mrf.mxu0
        %v3847 = vadd.f32 %v3758, %v3846
        %3848 = vmatmul.bf16.gmra.mxu0 %v1810
        %v3849 = vpop.f32.mrf.mxu0
        %v3850 = vadd.f32 %v3761, %v3849
        %v3851 = vpop.f32.mrf.mxu0
        %v3852 = vadd.f32 %v3763, %v3851
        %3853 = vmatmul.bf16.gmra.mxu0 %v1818
        %v3854 = vpop.f32.mrf.mxu0
        %v3855 = vadd.f32 %v3766, %v3854
        %v3856 = vpop.f32.mrf.mxu0
        %v3857 = vadd.f32 %v3768, %v3856
        %3858 = vmatmul.bf16.gmra.mxu0 %v1826
        %v3859 = vpop.f32.mrf.mxu0
        %v3860 = vadd.f32 %v3771, %v3859
        %v3861 = vpop.f32.mrf.mxu0
        %v3862 = vadd.f32 %v3773, %v3861
        %3863 = vmatmul.bf16.gmra.mxu0 %v1834
        %v3864 = vpop.f32.mrf.mxu0
        %v3865 = vadd.f32 %v3776, %v3864
        %v3866 = vpop.f32.mrf.mxu0
        %v3867 = vadd.f32 %v3778, %v3866
        %3868 = vmatmul.bf16.gmra.mxu0 %v1842
        %v3869 = vpop.f32.mrf.mxu0
        %v3870 = vadd.f32 %v3781, %v3869
        %v3871 = vpop.f32.mrf.mxu0
        %v3872 = vadd.f32 %v3783, %v3871
        %3873 = vmatmul.bf16.gmra.mxu0 %v1850
        %v3874 = vpop.f32.mrf.mxu0
        %v3875 = vadd.f32 %v3786, %v3874
        %v3876 = vpop.f32.mrf.mxu0
        %v3877 = vadd.f32 %v3788, %v3876
        %3878 = vmatmul.bf16.gmra.mxu0 %v1858
        %v3879 = vpop.f32.mrf.mxu0
        %v3880 = vadd.f32 %v3791, %v3879
        %v3881 = vpop.f32.mrf.mxu0
        %v3882 = vadd.f32 %v3793, %v3881
        %3883 = vmatmul.bf16.gmra.mxu0 %v1866
        %v3884 = vpop.f32.mrf.mxu0
        %v3885 = vadd.f32 %v3796, %v3884
        %v3886 = vpop.f32.mrf.mxu0
        %v3887 = vadd.f32 %v3798, %v3886
        %3888 = vdwg.mxu0
        %3889 = vmatpush.bf16.msra.mxu0 %v2498
        %3890 = vmatpush.bf16.msra.mxu0 %v2496
        %3891 = vmatpush.bf16.msra.mxu0 %v2494
        %3892 = vmatpush.bf16.msra.mxu0 %v2492
        %3893 = vmatpush.bf16.msra.mxu0 %v2490
        %3894 = vmatpush.bf16.msra.mxu0 %v2488
        %3895 = vmatpush.bf16.msra.mxu0 %v2486
        %3896 = vmatpush.bf16.msra.mxu0 %v2484
        %3897 = vmatmul.bf16.gmra.mxu0 %v1747
        %v3898 = vpop.f32.mrf.mxu0
        %v3899 = vadd.f32 %v3810, %v3898
        %v3900 = vpop.f32.mrf.mxu0
        %v3901 = vadd.f32 %v3812, %v3900
        %3902 = vmatmul.bf16.gmra.mxu0 %v1755
        %v3903 = vpop.f32.mrf.mxu0
        %v3904 = vadd.f32 %v3815, %v3903
        %v3905 = vpop.f32.mrf.mxu0
        %v3906 = vadd.f32 %v3817, %v3905
        %3907 = vmatmul.bf16.gmra.mxu0 %v1763
        %v3908 = vpop.f32.mrf.mxu0
        %v3909 = vadd.f32 %v3820, %v3908
        %v3910 = vpop.f32.mrf.mxu0
        %v3911 = vadd.f32 %v3822, %v3910
        %3912 = vmatmul.bf16.gmra.mxu0 %v1771
        %v3913 = vpop.f32.mrf.mxu0
        %v3914 = vadd.f32 %v3825, %v3913
        %v3915 = vpop.f32.mrf.mxu0
        %v3916 = vadd.f32 %v3827, %v3915
        %3917 = vmatmul.bf16.gmra.mxu0 %v1779
        %v3918 = vpop.f32.mrf.mxu0
        %v3919 = vadd.f32 %v3830, %v3918
        %v3920 = vpop.f32.mrf.mxu0
        %v3921 = vadd.f32 %v3832, %v3920
        %3922 = vmatmul.bf16.gmra.mxu0 %v1787
        %v3923 = vpop.f32.mrf.mxu0
        %v3924 = vadd.f32 %v3835, %v3923
        %v3925 = vpop.f32.mrf.mxu0
        %v3926 = vadd.f32 %v3837, %v3925
        %3927 = vmatmul.bf16.gmra.mxu0 %v1795
        %v3928 = vpop.f32.mrf.mxu0
        %v3929 = vadd.f32 %v3840, %v3928
        %v3930 = vpop.f32.mrf.mxu0
        %v3931 = vadd.f32 %v3842, %v3930
        %3932 = vmatmul.bf16.gmra.mxu0 %v1803
        %v3933 = vpop.f32.mrf.mxu0
        %v3934 = vadd.f32 %v3845, %v3933
        %v3935 = vpop.f32.mrf.mxu0
        %v3936 = vadd.f32 %v3847, %v3935
        %3937 = vmatmul.bf16.gmra.mxu0 %v1811
        %v3938 = vpop.f32.mrf.mxu0
        %v3939 = vadd.f32 %v3850, %v3938
        %v3940 = vpop.f32.mrf.mxu0
        %v3941 = vadd.f32 %v3852, %v3940
        %3942 = vmatmul.bf16.gmra.mxu0 %v1819
        %v3943 = vpop.f32.mrf.mxu0
        %v3944 = vadd.f32 %v3855, %v3943
        %v3945 = vpop.f32.mrf.mxu0
        %v3946 = vadd.f32 %v3857, %v3945
        %3947 = vmatmul.bf16.gmra.mxu0 %v1827
        %v3948 = vpop.f32.mrf.mxu0
        %v3949 = vadd.f32 %v3860, %v3948
        %v3950 = vpop.f32.mrf.mxu0
        %v3951 = vadd.f32 %v3862, %v3950
        %3952 = vmatmul.bf16.gmra.mxu0 %v1835
        %v3953 = vpop.f32.mrf.mxu0
        %v3954 = vadd.f32 %v3865, %v3953
        %v3955 = vpop.f32.mrf.mxu0
        %v3956 = vadd.f32 %v3867, %v3955
        %3957 = vmatmul.bf16.gmra.mxu0 %v1843
        %v3958 = vpop.f32.mrf.mxu0
        %v3959 = vadd.f32 %v3870, %v3958
        %v3960 = vpop.f32.mrf.mxu0
        %v3961 = vadd.f32 %v3872, %v3960
        %3962 = vmatmul.bf16.gmra.mxu0 %v1851
        %v3963 = vpop.f32.mrf.mxu0
        %v3964 = vadd.f32 %v3875, %v3963
        %v3965 = vpop.f32.mrf.mxu0
        %v3966 = vadd.f32 %v3877, %v3965
        %3967 = vmatmul.bf16.gmra.mxu0 %v1859
        %v3968 = vpop.f32.mrf.mxu0
        %v3969 = vadd.f32 %v3880, %v3968
        %v3970 = vpop.f32.mrf.mxu0
        %v3971 = vadd.f32 %v3882, %v3970
        %3972 = vmatmul.bf16.gmra.mxu0 %v1867
        %v3973 = vpop.f32.mrf.mxu0
        %v3974 = vadd.f32 %v3885, %v3973
        %v3975 = vpop.f32.mrf.mxu0
        %v3976 = vadd.f32 %v3887, %v3975
        %3977 = vdwg.mxu0
        %3978 = vmatpush.bf16.msra.mxu0 %v2514
        %3979 = vmatpush.bf16.msra.mxu0 %v2512
        %3980 = vmatpush.bf16.msra.mxu0 %v2510
        %3981 = vmatpush.bf16.msra.mxu0 %v2508
        %3982 = vmatpush.bf16.msra.mxu0 %v2506
        %3983 = vmatpush.bf16.msra.mxu0 %v2504
        %3984 = vmatpush.bf16.msra.mxu0 %v2502
        %3985 = vmatpush.bf16.msra.mxu0 %v2500
        %3986 = vmatmul.bf16.gmra.mxu0 %v1748
        %v3987 = vpop.f32.mrf.mxu0
        %v3988 = vadd.f32 %v3899, %v3987
        %v3989 = vpop.f32.mrf.mxu0
        %v3990 = vadd.f32 %v3901, %v3989
        %3991 = vmatmul.bf16.gmra.mxu0 %v1756
        %v3992 = vpop.f32.mrf.mxu0
        %v3993 = vadd.f32 %v3904, %v3992
        %v3994 = vpop.f32.mrf.mxu0
        %v3995 = vadd.f32 %v3906, %v3994
        %3996 = vmatmul.bf16.gmra.mxu0 %v1764
        %v3997 = vpop.f32.mrf.mxu0
        %v3998 = vadd.f32 %v3909, %v3997
        %v3999 = vpop.f32.mrf.mxu0
        %v4000 = vadd.f32 %v3911, %v3999
        %4001 = vmatmul.bf16.gmra.mxu0 %v1772
        %v4002 = vpop.f32.mrf.mxu0
        %v4003 = vadd.f32 %v3914, %v4002
        %v4004 = vpop.f32.mrf.mxu0
        %v4005 = vadd.f32 %v3916, %v4004
        %4006 = vmatmul.bf16.gmra.mxu0 %v1780
        %v4007 = vpop.f32.mrf.mxu0
        %v4008 = vadd.f32 %v3919, %v4007
        %v4009 = vpop.f32.mrf.mxu0
        %v4010 = vadd.f32 %v3921, %v4009
        %4011 = vmatmul.bf16.gmra.mxu0 %v1788
        %v4012 = vpop.f32.mrf.mxu0
        %v4013 = vadd.f32 %v3924, %v4012
        %v4014 = vpop.f32.mrf.mxu0
        %v4015 = vadd.f32 %v3926, %v4014
        %4016 = vmatmul.bf16.gmra.mxu0 %v1796
        %v4017 = vpop.f32.mrf.mxu0
        %v4018 = vadd.f32 %v3929, %v4017
        %v4019 = vpop.f32.mrf.mxu0
        %v4020 = vadd.f32 %v3931, %v4019
        %4021 = vmatmul.bf16.gmra.mxu0 %v1804
        %v4022 = vpop.f32.mrf.mxu0
        %v4023 = vadd.f32 %v3934, %v4022
        %v4024 = vpop.f32.mrf.mxu0
        %v4025 = vadd.f32 %v3936, %v4024
        %4026 = vmatmul.bf16.gmra.mxu0 %v1812
        %v4027 = vpop.f32.mrf.mxu0
        %v4028 = vadd.f32 %v3939, %v4027
        %v4029 = vpop.f32.mrf.mxu0
        %v4030 = vadd.f32 %v3941, %v4029
        %4031 = vmatmul.bf16.gmra.mxu0 %v1820
        %v4032 = vpop.f32.mrf.mxu0
        %v4033 = vadd.f32 %v3944, %v4032
        %v4034 = vpop.f32.mrf.mxu0
        %v4035 = vadd.f32 %v3946, %v4034
        %4036 = vmatmul.bf16.gmra.mxu0 %v1828
        %v4037 = vpop.f32.mrf.mxu0
        %v4038 = vadd.f32 %v3949, %v4037
        %v4039 = vpop.f32.mrf.mxu0
        %v4040 = vadd.f32 %v3951, %v4039
        %4041 = vmatmul.bf16.gmra.mxu0 %v1836
        %v4042 = vpop.f32.mrf.mxu0
        %v4043 = vadd.f32 %v3954, %v4042
        %v4044 = vpop.f32.mrf.mxu0
        %v4045 = vadd.f32 %v3956, %v4044
        %4046 = vmatmul.bf16.gmra.mxu0 %v1844
        %v4047 = vpop.f32.mrf.mxu0
        %v4048 = vadd.f32 %v3959, %v4047
        %v4049 = vpop.f32.mrf.mxu0
        %v4050 = vadd.f32 %v3961, %v4049
        %4051 = vmatmul.bf16.gmra.mxu0 %v1852
        %v4052 = vpop.f32.mrf.mxu0
        %v4053 = vadd.f32 %v3964, %v4052
        %v4054 = vpop.f32.mrf.mxu0
        %v4055 = vadd.f32 %v3966, %v4054
        %4056 = vmatmul.bf16.gmra.mxu0 %v1860
        %v4057 = vpop.f32.mrf.mxu0
        %v4058 = vadd.f32 %v3969, %v4057
        %v4059 = vpop.f32.mrf.mxu0
        %v4060 = vadd.f32 %v3971, %v4059
        %4061 = vmatmul.bf16.gmra.mxu0 %v1868
        %v4062 = vpop.f32.mrf.mxu0
        %v4063 = vadd.f32 %v3974, %v4062
        %v4064 = vpop.f32.mrf.mxu0
        %v4065 = vadd.f32 %v3976, %v4064
        %4066 = vdwg.mxu0
        %v4067 = vmax.f32 %v3276, 0.0
        %v4068 = vmax.f32 %v3988, 0.0
        %v4069 = vmax.f32 %v3278, 0.0
        %v4070 = vmax.f32 %v3990, 0.0
        %v4071 = vmax.f32 %v3281, 0.0
        %v4072 = vmax.f32 %v3993, 0.0
        %v4073 = vmax.f32 %v3283, 0.0
        %v4074 = vmax.f32 %v3995, 0.0
        %v4075 = vmax.f32 %v3286, 0.0
        %v4076 = vmax.f32 %v3998, 0.0
        %v4077 = vmax.f32 %v3288, 0.0
        %v4078 = vmax.f32 %v4000, 0.0
        %v4079 = vmax.f32 %v3291, 0.0
        %v4080 = vmax.f32 %v4003, 0.0
        %v4081 = vmax.f32 %v3293, 0.0
        %v4082 = vmax.f32 %v4005, 0.0
        %v4083 = vmax.f32 %v3296, 0.0
        %v4084 = vmax.f32 %v4008, 0.0
        %v4085 = vmax.f32 %v3298, 0.0
        %v4086 = vmax.f32 %v4010, 0.0
        %v4087 = vmax.f32 %v3301, 0.0
        %v4088 = vmax.f32 %v4013, 0.0
        %v4089 = vmax.f32 %v3303, 0.0
        %v4090 = vmax.f32 %v4015, 0.0
        %v4091 = vmax.f32 %v3306, 0.0
        %v4092 = vmax.f32 %v4018, 0.0
        %v4093 = vmax.f32 %v3308, 0.0
        %v4094 = vmax.f32 %v4020, 0.0
        %v4095 = vmax.f32 %v3311, 0.0
        %v4096 = vmax.f32 %v4023, 0.0
        %v4097 = vmax.f32 %v3313, 0.0
        %v4098 = vmax.f32 %v4025, 0.0
        %v4099 = vmax.f32 %v3316, 0.0
        %v4100 = vmax.f32 %v4028, 0.0
        %v4101 = vmax.f32 %v3318, 0.0
        %v4102 = vmax.f32 %v4030, 0.0
        %v4103 = vmax.f32 %v3321, 0.0
        %v4104 = vmax.f32 %v4033, 0.0
        %v4105 = vmax.f32 %v3323, 0.0
        %v4106 = vmax.f32 %v4035, 0.0
        %v4107 = vmax.f32 %v3326, 0.0
        %v4108 = vmax.f32 %v4038, 0.0
        %v4109 = vmax.f32 %v3328, 0.0
        %v4110 = vmax.f32 %v4040, 0.0
        %v4111 = vmax.f32 %v3331, 0.0
        %v4112 = vmax.f32 %v4043, 0.0
        %v4113 = vmax.f32 %v3333, 0.0
        %v4114 = vmax.f32 %v4045, 0.0
        %v4115 = vmax.f32 %v3336, 0.0
        %v4116 = vmax.f32 %v4048, 0.0
        %v4117 = vmax.f32 %v3338, 0.0
        %v4118 = vmax.f32 %v4050, 0.0
        %v4119 = vmax.f32 %v3341, 0.0
        %v4120 = vmax.f32 %v4053, 0.0
        %v4121 = vmax.f32 %v3343, 0.0
        %v4122 = vmax.f32 %v4055, 0.0
        %v4123 = vmax.f32 %v3346, 0.0
        %v4124 = vmax.f32 %v4058, 0.0
        %v4125 = vmax.f32 %v3348, 0.0
        %v4126 = vmax.f32 %v4060, 0.0
        %v4127 = vmax.f32 %v3351, 0.0
        %v4128 = vmax.f32 %v4063, 0.0
        %v4129 = vmax.f32 %v3353, 0.0
        %v4130 = vmax.f32 %v4065, 0.0
        %4131 = vst [vmem:[%s231] sm:$0xff] %v4067
        %4132 = vst [vmem:[%s231 + $0x8] sm:$0xff] %v4068
        %4133 = vst [vmem:[%s231 + $0x10] sm:$0xff] %v4069
        %4134 = vst [vmem:[%s231 + $0x18] sm:$0xff] %v4070
        %4135 = vst [vmem:[%s231 + $0x20] sm:$0xff] %v4071
        %4136 = vst [vmem:[%s231 + $0x28] sm:$0xff] %v4072
        %4137 = vst [vmem:[%s231 + $0x30] sm:$0xff] %v4073
        %4138 = vst [vmem:[%s231 + $0x38] sm:$0xff] %v4074
        %4139 = vst [vmem:[%s231 + $0x40] sm:$0xff] %v4075
        %4140 = vst [vmem:[%s231 + $0x48] sm:$0xff] %v4076
        %4141 = vst [vmem:[%s231 + $0x50] sm:$0xff] %v4077
        %4142 = vst [vmem:[%s231 + $0x58] sm:$0xff] %v4078
        %4143 = vst [vmem:[%s231 + $0x60] sm:$0xff] %v4079
        %4144 = vst [vmem:[%s231 + $0x68] sm:$0xff] %v4080
        %4145 = vst [vmem:[%s231 + $0x70] sm:$0xff] %v4081
        %4146 = vst [vmem:[%s231 + $0x78] sm:$0xff] %v4082
        %4147 = vst [vmem:[%s231 + $0x80] sm:$0xff] %v4083
        %4148 = vst [vmem:[%s231 + $0x88] sm:$0xff] %v4084
        %4149 = vst [vmem:[%s231 + $0x90] sm:$0xff] %v4085
        %4150 = vst [vmem:[%s231 + $0x98] sm:$0xff] %v4086
        %4151 = vst [vmem:[%s231 + $0xa0] sm:$0xff] %v4087
        %4152 = vst [vmem:[%s231 + $0xa8] sm:$0xff] %v4088
        %4153 = vst [vmem:[%s231 + $0xb0] sm:$0xff] %v4089
        %4154 = vst [vmem:[%s231 + $0xb8] sm:$0xff] %v4090
        %4155 = vst [vmem:[%s231 + $0xc0] sm:$0xff] %v4091
        %4156 = vst [vmem:[%s231 + $0xc8] sm:$0xff] %v4092
        %4157 = vst [vmem:[%s231 + $0xd0] sm:$0xff] %v4093
        %4158 = vst [vmem:[%s231 + $0xd8] sm:$0xff] %v4094
        %4159 = vst [vmem:[%s231 + $0xe0] sm:$0xff] %v4095
        %4160 = vst [vmem:[%s231 + $0xe8] sm:$0xff] %v4096
        %4161 = vst [vmem:[%s231 + $0xf0] sm:$0xff] %v4097
        %4162 = vst [vmem:[%s231 + $0xf8] sm:$0xff] %v4098
        %4163 = vst [vmem:[%s231 + $0x100] sm:$0xff] %v4099
        %4164 = vst [vmem:[%s231 + $0x108] sm:$0xff] %v4100
        %4165 = vst [vmem:[%s231 + $0x110] sm:$0xff] %v4101
        %4166 = vst [vmem:[%s231 + $0x118] sm:$0xff] %v4102
        %4167 = vst [vmem:[%s231 + $0x120] sm:$0xff] %v4103
        %4168 = vst [vmem:[%s231 + $0x128] sm:$0xff] %v4104
        %4169 = vst [vmem:[%s231 + $0x130] sm:$0xff] %v4105
        %4170 = vst [vmem:[%s231 + $0x138] sm:$0xff] %v4106
        %4171 = vst [vmem:[%s231 + $0x140] sm:$0xff] %v4107
        %4172 = vst [vmem:[%s231 + $0x148] sm:$0xff] %v4108
        %4173 = vst [vmem:[%s231 + $0x150] sm:$0xff] %v4109
        %4174 = vst [vmem:[%s231 + $0x158] sm:$0xff] %v4110
        %4175 = vst [vmem:[%s231 + $0x160] sm:$0xff] %v4111
        %4176 = vst [vmem:[%s231 + $0x168] sm:$0xff] %v4112
        %4177 = vst [vmem:[%s231 + $0x170] sm:$0xff] %v4113
        %4178 = vst [vmem:[%s231 + $0x178] sm:$0xff] %v4114
        %4179 = vst [vmem:[%s231 + $0x180] sm:$0xff] %v4115
        %4180 = vst [vmem:[%s231 + $0x188] sm:$0xff] %v4116
        %4181 = vst [vmem:[%s231 + $0x190] sm:$0xff] %v4117
        %4182 = vst [vmem:[%s231 + $0x198] sm:$0xff] %v4118
        %4183 = vst [vmem:[%s231 + $0x1a0] sm:$0xff] %v4119
        %4184 = vst [vmem:[%s231 + $0x1a8] sm:$0xff] %v4120
        %4185 = vst [vmem:[%s231 + $0x1b0] sm:$0xff] %v4121
        %4186 = vst [vmem:[%s231 + $0x1b8] sm:$0xff] %v4122
        %4187 = vst [vmem:[%s231 + $0x1c0] sm:$0xff] %v4123
        %4188 = vst [vmem:[%s231 + $0x1c8] sm:$0xff] %v4124
        %4189 = vst [vmem:[%s231 + $0x1d0] sm:$0xff] %v4125
        %4190 = vst [vmem:[%s231 + $0x1d8] sm:$0xff] %v4126
        %4191 = vst [vmem:[%s231 + $0x1e0] sm:$0xff] %v4127
        %4192 = vst [vmem:[%s231 + $0x1e8] sm:$0xff] %v4128
        %4193 = vst [vmem:[%s231 + $0x1f0] sm:$0xff] %v4129
        %4194 = vst [vmem:[%s231 + $0x1f8] sm:$0xff] %v4130
        %s4195 = sand.u32 %s142, 1
        %s4196 = scalar_lea.sflag [#allocation3], %s4195
        %s4197 = sand.u32 %s142, 1
        %s4198 = smul.addr %s4197, 512
        %s4199 = scalar_lea.vmem [#allocation2], %s4198
        // Predicated region
        $region41: #{par_forward.1} parent=39 // pred_check
          %p4200 = pneg %p152
        $region42: #{par_forward.1} parent=39 // pred_check_branch
          %4202 = sbr.rel (%p4200) target = $region44
        $region43: #{par_forward.1} parent=39 // pred_region
          %s4203 = smul.u32 32, %s19
          %4205 = vsyncadd %s4196, 0
          %s4206 = smul.addr %s4203, 2
          %s4207 = smul.addr %s4206, 8
          %s4208 = scalar_lea.hbm %s5, %s4207
          %s4209 = sshll.u32 %s4199, 4
          %s4210 = int_to_ptr.vmem [resolvable:$true] %s4209
          %s4211 = sshll.u32 %s4208, 4
          %s4212 = int_to_ptr.hbm [resolvable:$true] %s4211
          %4217 = dma.vmem_to_hbm [thread:$0]  %s4210, 8192, %s4212, %s4196, 256, 256, 16
        $region44: #{par_forward.1} parent=39 // pred_fallthru
          _
      $region40: #{par_forward.1} parent=5 // pred_fallthru
        _
      %p4218 = scmp.le.s32.totalorder 2, %s14
      // Predicated region
      $region45: #{par_forward.1} parent=5 // pred_check
        %p4219 = pneg %p4218
      $region46: #{par_forward.1} parent=5 // pred_check_branch
        %4221 = sbr.rel (%p4219) target = $region48
      $region47: #{par_forward.1} parent=5 // pred_region
        %s4222 = ssub.s32 %s14, 2
        // Predicated region
        $region49: #{par_forward.1} parent=47 // pred_check
          %p4223 = pneg %p158
        $region50: #{par_forward.1} parent=47 // pred_check_branch
          %4225 = sbr.rel (%p4223) target = $region52
        $region51: #{par_forward.1} parent=47 // pred_region
          %s4226 = sand.u32 %s143, 1
          %s4227 = scalar_lea.sflag [#allocation3], %s4226
          %s4228 = sand.u32 %s143, 1
          %s4229 = smul.addr %s4228, 512
          %s4230 = scalar_lea.vmem [#allocation2], %s4229
          %4232 = dma.done %s4227, 8192
        $region52: #{par_forward.1} parent=47 // pred_fallthru
          _
      $region48: #{par_forward.1} parent=5 // pred_fallthru
        _
    $region6: #{par_forward.1} parent=1 // loop_footer
      %s18 = sadd.s32 1, %s14
    $region7: #{par_forward.1} parent=1 // loop_footer_branch
      %13 = sbr.rel target = $region3
    $region8: #{par_forward.1} parent=1 // loop_exit
      _
    %4233 = vsyncpa [#allocation3], 1
    %s4234 = scalar_lea.sflag [#allocation3], 1
    %4235 = vsyncpa %s4234, 1

</llo_original>
